<compile_context>
chip_gen: v5e
topology: v5e:2x2
jax: 0.10.0
libtpu: 0.0.40
codegen_flags: <defaults>
</compile_context>

<pallas_src>
import jax
import jax.numpy as jnp
from jax import lax
from jax.experimental import pallas as pl
from jax.experimental.pallas import tpu as pltpu

GRU_CONFIG = dict(hidden_dim=32, num_layers=2, dropout=0.2)


def _gru_fc_kernel(gi0_ref,            # (T, 3H, Bb) f32 : precomputed W_ih0 @ x_t + b_ih0
                   whh0_ref, bhh0_ref,  # (3H, H) bf16, (3H, 1) f32
                   w1_ref, b1_ref,      # (6H, 2H) bf16 block-diag [ih1|0;0|hh1], (6H,1) f32
                   fc1w_ref, fc1b_ref,  # (H/2, H) bf16, (H/2, 1) f32
                   fc2w_ref, fc2b_ref,  # (1, H/2) bf16, (1, 1) f32
                   out_ref):            # (1, Bb) f32
    T = gi0_ref.shape[0]
    H = whh0_ref.shape[1]
    B = gi0_ref.shape[2]
    bf16 = jnp.bfloat16

    # Hoist weight loads and bias broadcasts out of the time loop.
    whh0 = whh0_ref[...]                                    # (3H, H) bf16
    w1 = w1_ref[...]                                        # (6H, 2H) bf16
    bhh0 = jnp.broadcast_to(bhh0_ref[...], (3 * H, B))      # (3H, B) f32
    b1 = jnp.broadcast_to(b1_ref[...], (6 * H, B))          # (6H, B) f32

    def gates(gi, gh, h):
        # PyTorch nn.GRU gate order [r, z, n]; sublane-aligned static slices.
        r = jax.nn.sigmoid(gi[0:H] + gh[0:H])
        z = jax.nn.sigmoid(gi[H:2 * H] + gh[H:2 * H])
        n = jnp.tanh(gi[2 * H:3 * H] + r * gh[2 * H:3 * H])
        return (1.0 - z) * n + z * h

    def step(t, carry):
        h0, h1 = carry
        # Layer 0: input projection already precomputed -> only the recurrent dot here.
        gh0 = jnp.dot(whh0, h0.astype(bf16),
                      preferred_element_type=jnp.float32) + bhh0          # (3H, B)
        h0 = gates(gi0_ref[t], gh0, h0)
        # TODO(synk): nn.GRU inter-layer dropout (p=0.2) is identity at inference; omitted.
        # Layer 1: gi1 and gh1 fused into ONE block-diagonal matmul.
        hcat = jnp.concatenate([h0, h1], axis=0).astype(bf16)             # (2H, B)
        g1 = jnp.dot(w1, hcat, preferred_element_type=jnp.float32) + b1   # (6H, B)
        h1 = gates(g1[0:3 * H], g1[3 * H:6 * H], h1)
        return (h0, h1)

    h0 = jnp.zeros((H, B), jnp.float32)
    h1 = jnp.zeros((H, B), jnp.float32)
    # Fully unrolled: lets the scheduler interleave MXU/EUP/VPU work across steps/layers.
    _, h1 = lax.fori_loop(0, T, step, (h0, h1), unroll=True)   # h1 == gru_out[:, -1, :].T

    # fc head: Linear(H, H//2) -> ReLU -> (Dropout: identity at eval) -> Linear(H//2, 1)
    y = jnp.dot(fc1w_ref[...], h1.astype(bf16),
                preferred_element_type=jnp.float32) + fc1b_ref[...]       # (H/2, B)
    y = jnp.maximum(y, 0.0)
    out_ref[...] = jnp.dot(fc2w_ref[...], y.astype(bf16),
                           preferred_element_type=jnp.float32) + fc2b_ref[...]  # (1, B)


def gru_model_forward(x, params):
    """x: (B, T, D) float32 (batch_first, matching PyTorch). Returns (B,)."""
    B, T, D = x.shape
    H = params['weight_hh_l0'].shape[1]
    H2, H3 = H // 2, 3 * H
    bf16 = jnp.bfloat16

    # Layer-0 input projection for all timesteps as one big matmul (time-major,
    # features x batch). Replaces T tiny K=2 matmuls on the recurrence critical path
    # and removes the old transpose of x.
    gi0_all = (jnp.einsum('gd,btd->tgb', params['weight_ih_l0'], x.astype(jnp.float32))
               + params['bias_ih_l0'][None, :, None])                     # (T, 3H, B)

    # Block-diagonal stack of layer-1 weights so [gi1; gh1] comes from one matmul/step.
    wih1, whh1 = params['weight_ih_l1'], params['weight_hh_l1']
    zeros = jnp.zeros((H3, H), jnp.float32)
    w1_blk = jnp.concatenate(
        [jnp.concatenate([wih1, zeros], axis=1),
         jnp.concatenate([zeros, whh1], axis=1)], axis=0).astype(bf16)    # (6H, 2H)
    b1_blk = jnp.concatenate([params['bias_ih_l1'], params['bias_hh_l1']])[:, None]

    whh0 = params['weight_hh_l0'].astype(bf16)
    bhh0 = params['bias_hh_l0'][:, None]
    fc1w = params['fc1_weight'].astype(bf16)
    fc1b = params['fc1_bias'][:, None]
    fc2w = params['fc2_weight'].astype(bf16)
    fc2b = params['fc2_bias'][:, None]

    # Batch on the lane axis; block it (<=128 lanes) on a "parallel" grid axis so v7x's
    # two TensorCores can split a real batch.
    Bb = min(B, 128)
    grid = (pl.cdiv(B, Bb),)

    def full(shape):
        return pl.BlockSpec(shape, lambda i, _s=shape: tuple(0 for _ in _s))

    # TODO(synk): for very long T on v7x (64 MiB VMEM), stream gi0_all over a T grid axis
    # with h0/h1 carried in VMEM scratch; unnecessary at these shapes.
    out = pl.pallas_call(
        _gru_fc_kernel,
        out_shape=jax.ShapeDtypeStruct((1, B), jnp.float32),
        grid=grid,
        in_specs=[
            pl.BlockSpec((T, H3, Bb), lambda i: (0, 0, i)),   # gi0_all
            full((H3, H)), full((H3, 1)),                     # whh0, bhh0
            full((2 * H3, 2 * H)), full((2 * H3, 1)),         # w1_blk, b1_blk
            full((H2, H)), full((H2, 1)),                     # fc1
            full((1, H2)), full((1, 1)),                      # fc2
        ],
        out_specs=pl.BlockSpec((1, Bb), lambda i: (0, i)),    # lane-dense output
        compiler_params=pltpu.CompilerParams(dimension_semantics=("parallel",)),
    )(gi0_all, whh0, bhh0, w1_blk, b1_blk, fc1w, fc1b, fc2w, fc2b)
    return out[0, :]                                          # .squeeze(-1)


def init_params(key, input_dim, hidden_dim):
    """Deterministic init mirroring PyTorch parameter shapes (uniform +-1/sqrt(H))."""
    H = hidden_dim
    ks = jax.random.split(key, 12)
    lim = 1.0 / jnp.sqrt(jnp.float32(H))

    def u(k_, shape, l):
        return jax.random.uniform(k_, shape, jnp.float32, -l, l)

    p = {
        'weight_ih_l0': u(ks[0], (3 * H, input_dim), lim),
        'weight_hh_l0': u(ks[1], (3 * H, H), lim),
        'bias_ih_l0':   u(ks[2], (3 * H,), lim),
        'bias_hh_l0':   u(ks[3], (3 * H,), lim),
        'weight_ih_l1': u(ks[4], (3 * H, H), lim),
        'weight_hh_l1': u(ks[5], (3 * H, H), lim),
        'bias_ih_l1':   u(ks[6], (3 * H,), lim),
        'bias_hh_l1':   u(ks[7], (3 * H,), lim),
    }
    lf1 = 1.0 / jnp.sqrt(jnp.float32(H))
    lf2 = 1.0 / jnp.sqrt(jnp.float32(H // 2))
    p['fc1_weight'] = u(ks[8], (H // 2, H), lf1)
    p['fc1_bias'] = u(ks[9], (H // 2,), lf1)
    p['fc2_weight'] = u(ks[10], (1, H // 2), lf2)
    p['fc2_bias'] = u(ks[11], (1,), lf2)
    return p


def gru_model_ref(x, params):
    """Pure-JAX reference with the same numerics (bf16 MXU operands, f32 accumulate)."""
    H = params['weight_hh_l0'].shape[1]
    B, T, D = x.shape
    bf16 = jnp.bfloat16

    def dotf(w, a):
        return jnp.dot(w.astype(bf16), a.astype(bf16), preferred_element_type=jnp.float32)

    gi0_all = (jnp.einsum('gd,btd->tgb', params['weight_ih_l0'], x)
               + params['bias_ih_l0'][None, :, None])

    def gates(gi, gh, h):
        r = jax.nn.sigmoid(gi[:H] + gh[:H])
        z = jax.nn.sigmoid(gi[H:2 * H] + gh[H:2 * H])
        n = jnp.tanh(gi[2 * H:] + r * gh[2 * H:])
        return (1.0 - z) * n + z * h

    h0 = jnp.zeros((H, B), jnp.float32)
    h1 = jnp.zeros((H, B), jnp.float32)
    for t in range(T):
        gh0 = dotf(params['weight_hh_l0'], h0) + params['bias_hh_l0'][:, None]
        h0 = gates(gi0_all[t], gh0, h0)
        gi1 = dotf(params['weight_ih_l1'], h0) + params['bias_ih_l1'][:, None]
        gh1 = dotf(params['weight_hh_l1'], h1) + params['bias_hh_l1'][:, None]
        h1 = gates(gi1, gh1, h1)
    y = jnp.maximum(dotf(params['fc1_weight'], h1) + params['fc1_bias'][:, None], 0.0)
    out = dotf(params['fc2_weight'], y) + params['fc2_bias'][:, None]
    return out[0]


if __name__ == "__main__":
    B, T, D = 2, 8, 2          # batch, seq_len, input_dim (GRUModel input_dim=2)
    H = GRU_CONFIG['hidden_dim']

    root = jax.random.PRNGKey(0)
    kx, kp = jax.random.split(root)
    x = jax.random.normal(kx, (B, T, D), jnp.float32)
    params = init_params(kp, D, H)

    out = jax.block_until_ready(gru_model_forward(x, params))
    ref = jax.block_until_ready(gru_model_ref(x, params))

    assert out.shape == (B,), out.shape
    assert jnp.allclose(out, ref, atol=1e-3, rtol=1e-3), (out, ref)

    print("KERNEL_OK")
</pallas_src>

<mosaic_0001>
module attributes {stable_mosaic.version = 11 : i64} {
  func.func @_gru_fc_kernel(%arg0: i32, %arg1: memref<8x96x2xf32, #tpu.memory_space<vmem>>, %arg2: memref<96x32xbf16, #tpu.memory_space<vmem>>, %arg3: memref<96x1xf32, #tpu.memory_space<vmem>>, %arg4: memref<192x64xbf16, #tpu.memory_space<vmem>>, %arg5: memref<192x1xf32, #tpu.memory_space<vmem>>, %arg6: memref<16x32xbf16, #tpu.memory_space<vmem>>, %arg7: memref<16x1xf32, #tpu.memory_space<vmem>>, %arg8: memref<1x16xbf16, #tpu.memory_space<vmem>>, %arg9: memref<1x1xf32, #tpu.memory_space<vmem>>, %arg10: memref<1x2xf32, #tpu.memory_space<vmem>>) attributes {dimension_semantics = [#tpu.dimension_semantics<parallel>], iteration_bounds = array<i64: 1>, scalar_prefetch = 0 : i64, scratch_operands = 0 : i64, tpu.core_type = #tpu.core_type<tc>, window_params = [{transform_indices = @transform_0, window_bounds = array<i64: 8, 96, 2>}, {pipeline_mode = #tpu.pipeline_mode<synchronous>, transform_indices = @transform_1, window_bounds = array<i64: 96, 32>}, {pipeline_mode = #tpu.pipeline_mode<synchronous>, transform_indices = @transform_2, window_bounds = array<i64: 96, 1>}, {pipeline_mode = #tpu.pipeline_mode<synchronous>, transform_indices = @transform_3, window_bounds = array<i64: 192, 64>}, {pipeline_mode = #tpu.pipeline_mode<synchronous>, transform_indices = @transform_4, window_bounds = array<i64: 192, 1>}, {pipeline_mode = #tpu.pipeline_mode<synchronous>, transform_indices = @transform_5, window_bounds = array<i64: 16, 32>}, {pipeline_mode = #tpu.pipeline_mode<synchronous>, transform_indices = @transform_6, window_bounds = array<i64: 16, 1>}, {pipeline_mode = #tpu.pipeline_mode<synchronous>, transform_indices = @transform_7, window_bounds = array<i64: 1, 16>}, {pipeline_mode = #tpu.pipeline_mode<synchronous>, transform_indices = @transform_8, window_bounds = array<i64: 1, 1>}, {transform_indices = @transform_9, window_bounds = array<i64: 1, 2>}]} {
    %c0 = arith.constant 0 : index
    %c0_0 = arith.constant 0 : index
    %0 = vector.load %arg2[%c0, %c0_0] : memref<96x32xbf16, #tpu.memory_space<vmem>>, vector<96x32xbf16>
    %c0_1 = arith.constant 0 : index
    %c0_2 = arith.constant 0 : index
    %1 = vector.load %arg4[%c0_1, %c0_2] : memref<192x64xbf16, #tpu.memory_space<vmem>>, vector<192x64xbf16>
    %c0_3 = arith.constant 0 : index
    %c0_4 = arith.constant 0 : index
    %2 = vector.load %arg3[%c0_3, %c0_4] : memref<96x1xf32, #tpu.memory_space<vmem>>, vector<96x1xf32>
    %3 = vector.shape_cast %2 : vector<96x1xf32> to vector<96x1xf32>
    %4 = vector.broadcast %3 : vector<96x1xf32> to vector<96x2xf32>
    %c0_5 = arith.constant 0 : index
    %c0_6 = arith.constant 0 : index
    %5 = vector.load %arg5[%c0_5, %c0_6] : memref<192x1xf32, #tpu.memory_space<vmem>>, vector<192x1xf32>
    %6 = vector.shape_cast %5 : vector<192x1xf32> to vector<192x1xf32>
    %7 = vector.broadcast %6 : vector<192x1xf32> to vector<192x2xf32>
    %cst = arith.constant 0.000000e+00 : f32
    %8 = vector.broadcast %cst : f32 to vector<32x2xf32>
    %cst_7 = arith.constant 0.000000e+00 : f32
    %9 = vector.broadcast %cst_7 : f32 to vector<32x2xf32>
    %c0_i32 = arith.constant 0 : i32
    %10 = arith.truncf %8 : vector<32x2xf32> to vector<32x2xbf16>
    %cst_8 = arith.constant dense<0.000000e+00> : vector<96x2xf32>
    %11 = tpu.matmul %0, %10, %cst_8 {dimension_numbers = #tpu.dot_dimension_numbers<[1], [0], [0], [1], [0, 0, 1, 1], [], []>} : vector<96x32xbf16>, vector<32x2xbf16>, vector<96x2xf32> -> vector<96x2xf32>
    %12 = arith.addf %11, %4 : vector<96x2xf32>
    %13 = arith.index_cast %c0_i32 : i32 to index
    %c0_9 = arith.constant 0 : index
    %c0_10 = arith.constant 0 : index
    %14 = vector.load %arg1[%13, %c0_9, %c0_10] : memref<8x96x2xf32, #tpu.memory_space<vmem>>, vector<1x96x2xf32>
    %15 = vector.shape_cast %14 : vector<1x96x2xf32> to vector<96x2xf32>
    %16 = vector.extract_strided_slice %15 {offsets = [0, 0], sizes = [32, 2], strides = [1, 1]} : vector<96x2xf32> to vector<32x2xf32>
    %17 = vector.extract_strided_slice %12 {offsets = [0, 0], sizes = [32, 2], strides = [1, 1]} : vector<96x2xf32> to vector<32x2xf32>
    %18 = arith.addf %16, %17 : vector<32x2xf32>
    %19 = arith.negf %18 : vector<32x2xf32>
    %20 = math.exp %19 : vector<32x2xf32>
    %cst_11 = arith.constant 1.000000e+00 : f32
    %21 = vector.broadcast %cst_11 : f32 to vector<32x2xf32>
    %22 = arith.addf %21, %20 : vector<32x2xf32>
    %23 = arith.divf %21, %22 : vector<32x2xf32>
    %24 = vector.extract_strided_slice %15 {offsets = [32, 0], sizes = [32, 2], strides = [1, 1]} : vector<96x2xf32> to vector<32x2xf32>
    %25 = vector.extract_strided_slice %12 {offsets = [32, 0], sizes = [32, 2], strides = [1, 1]} : vector<96x2xf32> to vector<32x2xf32>
    %26 = arith.addf %24, %25 : vector<32x2xf32>
    %27 = arith.negf %26 : vector<32x2xf32>
    %28 = math.exp %27 : vector<32x2xf32>
    %cst_12 = arith.constant 1.000000e+00 : f32
    %29 = vector.broadcast %cst_12 : f32 to vector<32x2xf32>
    %30 = arith.addf %29, %28 : vector<32x2xf32>
    %31 = arith.divf %29, %30 : vector<32x2xf32>
    %32 = vector.extract_strided_slice %15 {offsets = [64, 0], sizes = [32, 2], strides = [1, 1]} : vector<96x2xf32> to vector<32x2xf32>
    %33 = vector.extract_strided_slice %12 {offsets = [64, 0], sizes = [32, 2], strides = [1, 1]} : vector<96x2xf32> to vector<32x2xf32>
    %34 = arith.mulf %23, %33 : vector<32x2xf32>
    %35 = arith.addf %32, %34 : vector<32x2xf32>
    %36 = math.tanh %35 : vector<32x2xf32>
    %cst_13 = arith.constant 1.000000e+00 : f32
    %37 = vector.broadcast %cst_13 : f32 to vector<32x2xf32>
    %38 = arith.subf %37, %31 : vector<32x2xf32>
    %39 = arith.mulf %38, %36 : vector<32x2xf32>
    %40 = arith.mulf %31, %8 : vector<32x2xf32>
    %41 = arith.addf %39, %40 : vector<32x2xf32>
    %42 = tpu.concatenate %41, %9 in 0 : vector<32x2xf32>, vector<32x2xf32> -> vector<64x2xf32>
    %43 = arith.truncf %42 : vector<64x2xf32> to vector<64x2xbf16>
    %cst_14 = arith.constant dense<0.000000e+00> : vector<192x2xf32>
    %44 = tpu.matmul %1, %43, %cst_14 {dimension_numbers = #tpu.dot_dimension_numbers<[1], [0], [0], [1], [0, 0, 1, 1], [], []>} : vector<192x64xbf16>, vector<64x2xbf16>, vector<192x2xf32> -> vector<192x2xf32>
    %45 = arith.addf %44, %7 : vector<192x2xf32>
    %46 = vector.extract_strided_slice %45 {offsets = [0, 0], sizes = [96, 2], strides = [1, 1]} : vector<192x2xf32> to vector<96x2xf32>
    %47 = vector.extract_strided_slice %45 {offsets = [96, 0], sizes = [96, 2], strides = [1, 1]} : vector<192x2xf32> to vector<96x2xf32>
    %48 = vector.extract_strided_slice %46 {offsets = [0, 0], sizes = [32, 2], strides = [1, 1]} : vector<96x2xf32> to vector<32x2xf32>
    %49 = vector.extract_strided_slice %47 {offsets = [0, 0], sizes = [32, 2], strides = [1, 1]} : vector<96x2xf32> to vector<32x2xf32>
    %50 = arith.addf %48, %49 : vector<32x2xf32>
    %51 = arith.negf %50 : vector<32x2xf32>
    %52 = math.exp %51 : vector<32x2xf32>
    %cst_15 = arith.constant 1.000000e+00 : f32
    %53 = vector.broadcast %cst_15 : f32 to vector<32x2xf32>
    %54 = arith.addf %53, %52 : vector<32x2xf32>
    %55 = arith.divf %53, %54 : vector<32x2xf32>
    %56 = vector.extract_strided_slice %46 {offsets = [32, 0], sizes = [32, 2], strides = [1, 1]} : vector<96x2xf32> to vector<32x2xf32>
    %57 = vector.extract_strided_slice %47 {offsets = [32, 0], sizes = [32, 2], strides = [1, 1]} : vector<96x2xf32> to vector<32x2xf32>
    %58 = arith.addf %56, %57 : vector<32x2xf32>
    %59 = arith.negf %58 : vector<32x2xf32>
    %60 = math.exp %59 : vector<32x2xf32>
    %cst_16 = arith.constant 1.000000e+00 : f32
    %61 = vector.broadcast %cst_16 : f32 to vector<32x2xf32>
    %62 = arith.addf %61, %60 : vector<32x2xf32>
    %63 = arith.divf %61, %62 : vector<32x2xf32>
    %64 = vector.extract_strided_slice %46 {offsets = [64, 0], sizes = [32, 2], strides = [1, 1]} : vector<96x2xf32> to vector<32x2xf32>
    %65 = vector.extract_strided_slice %47 {offsets = [64, 0], sizes = [32, 2], strides = [1, 1]} : vector<96x2xf32> to vector<32x2xf32>
    %66 = arith.mulf %55, %65 : vector<32x2xf32>
    %67 = arith.addf %64, %66 : vector<32x2xf32>
    %68 = math.tanh %67 : vector<32x2xf32>
    %cst_17 = arith.constant 1.000000e+00 : f32
    %69 = vector.broadcast %cst_17 : f32 to vector<32x2xf32>
    %70 = arith.subf %69, %63 : vector<32x2xf32>
    %71 = arith.mulf %70, %68 : vector<32x2xf32>
    %72 = arith.mulf %63, %9 : vector<32x2xf32>
    %73 = arith.addf %71, %72 : vector<32x2xf32>
    %c1_i32 = arith.constant 1 : i32
    %74 = arith.truncf %41 : vector<32x2xf32> to vector<32x2xbf16>
    %cst_18 = arith.constant dense<0.000000e+00> : vector<96x2xf32>
    %75 = tpu.matmul %0, %74, %cst_18 {dimension_numbers = #tpu.dot_dimension_numbers<[1], [0], [0], [1], [0, 0, 1, 1], [], []>} : vector<96x32xbf16>, vector<32x2xbf16>, vector<96x2xf32> -> vector<96x2xf32>
    %76 = arith.addf %75, %4 : vector<96x2xf32>
    %77 = arith.index_cast %c1_i32 : i32 to index
    %c0_19 = arith.constant 0 : index
    %c0_20 = arith.constant 0 : index
    %78 = vector.load %arg1[%77, %c0_19, %c0_20] : memref<8x96x2xf32, #tpu.memory_space<vmem>>, vector<1x96x2xf32>
    %79 = vector.shape_cast %78 : vector<1x96x2xf32> to vector<96x2xf32>
    %80 = vector.extract_strided_slice %79 {offsets = [0, 0], sizes = [32, 2], strides = [1, 1]} : vector<96x2xf32> to vector<32x2xf32>
    %81 = vector.extract_strided_slice %76 {offsets = [0, 0], sizes = [32, 2], strides = [1, 1]} : vector<96x2xf32> to vector<32x2xf32>
    %82 = arith.addf %80, %81 : vector<32x2xf32>
    %83 = arith.negf %82 : vector<32x2xf32>
    %84 = math.exp %83 : vector<32x2xf32>
    %cst_21 = arith.constant 1.000000e+00 : f32
    %85 = vector.broadcast %cst_21 : f32 to vector<32x2xf32>
    %86 = arith.addf %85, %84 : vector<32x2xf32>
    %87 = arith.divf %85, %86 : vector<32x2xf32>
    %88 = vector.extract_strided_slice %79 {offsets = [32, 0], sizes = [32, 2], strides = [1, 1]} : vector<96x2xf32> to vector<32x2xf32>
    %89 = vector.extract_strided_slice %76 {offsets = [32, 0], sizes = [32, 2], strides = [1, 1]} : vector<96x2xf32> to vector<32x2xf32>
    %90 = arith.addf %88, %89 : vector<32x2xf32>
    %91 = arith.negf %90 : vector<32x2xf32>
    %92 = math.exp %91 : vector<32x2xf32>
    %cst_22 = arith.constant 1.000000e+00 : f32
    %93 = vector.broadcast %cst_22 : f32 to vector<32x2xf32>
    %94 = arith.addf %93, %92 : vector<32x2xf32>
    %95 = arith.divf %93, %94 : vector<32x2xf32>
    %96 = vector.extract_strided_slice %79 {offsets = [64, 0], sizes = [32, 2], strides = [1, 1]} : vector<96x2xf32> to vector<32x2xf32>
    %97 = vector.extract_strided_slice %76 {offsets = [64, 0], sizes = [32, 2], strides = [1, 1]} : vector<96x2xf32> to vector<32x2xf32>
    %98 = arith.mulf %87, %97 : vector<32x2xf32>
    %99 = arith.addf %96, %98 : vector<32x2xf32>
    %100 = math.tanh %99 : vector<32x2xf32>
    %cst_23 = arith.constant 1.000000e+00 : f32
    %101 = vector.broadcast %cst_23 : f32 to vector<32x2xf32>
    %102 = arith.subf %101, %95 : vector<32x2xf32>
    %103 = arith.mulf %102, %100 : vector<32x2xf32>
    %104 = arith.mulf %95, %41 : vector<32x2xf32>
    %105 = arith.addf %103, %104 : vector<32x2xf32>
    %106 = tpu.concatenate %105, %73 in 0 : vector<32x2xf32>, vector<32x2xf32> -> vector<64x2xf32>
    %107 = arith.truncf %106 : vector<64x2xf32> to vector<64x2xbf16>
    %cst_24 = arith.constant dense<0.000000e+00> : vector<192x2xf32>
    %108 = tpu.matmul %1, %107, %cst_24 {dimension_numbers = #tpu.dot_dimension_numbers<[1], [0], [0], [1], [0, 0, 1, 1], [], []>} : vector<192x64xbf16>, vector<64x2xbf16>, vector<192x2xf32> -> vector<192x2xf32>
    %109 = arith.addf %108, %7 : vector<192x2xf32>
    %110 = vector.extract_strided_slice %109 {offsets = [0, 0], sizes = [96, 2], strides = [1, 1]} : vector<192x2xf32> to vector<96x2xf32>
    %111 = vector.extract_strided_slice %109 {offsets = [96, 0], sizes = [96, 2], strides = [1, 1]} : vector<192x2xf32> to vector<96x2xf32>
    %112 = vector.extract_strided_slice %110 {offsets = [0, 0], sizes = [32, 2], strides = [1, 1]} : vector<96x2xf32> to vector<32x2xf32>
    %113 = vector.extract_strided_slice %111 {offsets = [0, 0], sizes = [32, 2], strides = [1, 1]} : vector<96x2xf32> to vector<32x2xf32>
    %114 = arith.addf %112, %113 : vector<32x2xf32>
    %115 = arith.negf %114 : vector<32x2xf32>
    %116 = math.exp %115 : vector<32x2xf32>
    %cst_25 = arith.constant 1.000000e+00 : f32
    %117 = vector.broadcast %cst_25 : f32 to vector<32x2xf32>
    %118 = arith.addf %117, %116 : vector<32x2xf32>
    %119 = arith.divf %117, %118 : vector<32x2xf32>
    %120 = vector.extract_strided_slice %110 {offsets = [32, 0], sizes = [32, 2], strides = [1, 1]} : vector<96x2xf32> to vector<32x2xf32>
    %121 = vector.extract_strided_slice %111 {offsets = [32, 0], sizes = [32, 2], strides = [1, 1]} : vector<96x2xf32> to vector<32x2xf32>
    %122 = arith.addf %120, %121 : vector<32x2xf32>
    %123 = arith.negf %122 : vector<32x2xf32>
    %124 = math.exp %123 : vector<32x2xf32>
    %cst_26 = arith.constant 1.000000e+00 : f32
    %125 = vector.broadcast %cst_26 : f32 to vector<32x2xf32>
    %126 = arith.addf %125, %124 : vector<32x2xf32>
    %127 = arith.divf %125, %126 : vector<32x2xf32>
    %128 = vector.extract_strided_slice %110 {offsets = [64, 0], sizes = [32, 2], strides = [1, 1]} : vector<96x2xf32> to vector<32x2xf32>
    %129 = vector.extract_strided_slice %111 {offsets = [64, 0], sizes = [32, 2], strides = [1, 1]} : vector<96x2xf32> to vector<32x2xf32>
    %130 = arith.mulf %119, %129 : vector<32x2xf32>
    %131 = arith.addf %128, %130 : vector<32x2xf32>
    %132 = math.tanh %131 : vector<32x2xf32>
    %cst_27 = arith.constant 1.000000e+00 : f32
    %133 = vector.broadcast %cst_27 : f32 to vector<32x2xf32>
    %134 = arith.subf %133, %127 : vector<32x2xf32>
    %135 = arith.mulf %134, %132 : vector<32x2xf32>
    %136 = arith.mulf %127, %73 : vector<32x2xf32>
    %137 = arith.addf %135, %136 : vector<32x2xf32>
    %c2_i32 = arith.constant 2 : i32
    %138 = arith.truncf %105 : vector<32x2xf32> to vector<32x2xbf16>
    %cst_28 = arith.constant dense<0.000000e+00> : vector<96x2xf32>
    %139 = tpu.matmul %0, %138, %cst_28 {dimension_numbers = #tpu.dot_dimension_numbers<[1], [0], [0], [1], [0, 0, 1, 1], [], []>} : vector<96x32xbf16>, vector<32x2xbf16>, vector<96x2xf32> -> vector<96x2xf32>
    %140 = arith.addf %139, %4 : vector<96x2xf32>
    %141 = arith.index_cast %c2_i32 : i32 to index
    %c0_29 = arith.constant 0 : index
    %c0_30 = arith.constant 0 : index
    %142 = vector.load %arg1[%141, %c0_29, %c0_30] : memref<8x96x2xf32, #tpu.memory_space<vmem>>, vector<1x96x2xf32>
    %143 = vector.shape_cast %142 : vector<1x96x2xf32> to vector<96x2xf32>
    %144 = vector.extract_strided_slice %143 {offsets = [0, 0], sizes = [32, 2], strides = [1, 1]} : vector<96x2xf32> to vector<32x2xf32>
    %145 = vector.extract_strided_slice %140 {offsets = [0, 0], sizes = [32, 2], strides = [1, 1]} : vector<96x2xf32> to vector<32x2xf32>
    %146 = arith.addf %144, %145 : vector<32x2xf32>
    %147 = arith.negf %146 : vector<32x2xf32>
    %148 = math.exp %147 : vector<32x2xf32>
    %cst_31 = arith.constant 1.000000e+00 : f32
    %149 = vector.broadcast %cst_31 : f32 to vector<32x2xf32>
    %150 = arith.addf %149, %148 : vector<32x2xf32>
    %151 = arith.divf %149, %150 : vector<32x2xf32>
    %152 = vector.extract_strided_slice %143 {offsets = [32, 0], sizes = [32, 2], strides = [1, 1]} : vector<96x2xf32> to vector<32x2xf32>
    %153 = vector.extract_strided_slice %140 {offsets = [32, 0], sizes = [32, 2], strides = [1, 1]} : vector<96x2xf32> to vector<32x2xf32>
    %154 = arith.addf %152, %153 : vector<32x2xf32>
    %155 = arith.negf %154 : vector<32x2xf32>
    %156 = math.exp %155 : vector<32x2xf32>
    %cst_32 = arith.constant 1.000000e+00 : f32
    %157 = vector.broadcast %cst_32 : f32 to vector<32x2xf32>
    %158 = arith.addf %157, %156 : vector<32x2xf32>
    %159 = arith.divf %157, %158 : vector<32x2xf32>
    %160 = vector.extract_strided_slice %143 {offsets = [64, 0], sizes = [32, 2], strides = [1, 1]} : vector<96x2xf32> to vector<32x2xf32>
    %161 = vector.extract_strided_slice %140 {offsets = [64, 0], sizes = [32, 2], strides = [1, 1]} : vector<96x2xf32> to vector<32x2xf32>
    %162 = arith.mulf %151, %161 : vector<32x2xf32>
    %163 = arith.addf %160, %162 : vector<32x2xf32>
    %164 = math.tanh %163 : vector<32x2xf32>
    %cst_33 = arith.constant 1.000000e+00 : f32
    %165 = vector.broadcast %cst_33 : f32 to vector<32x2xf32>
    %166 = arith.subf %165, %159 : vector<32x2xf32>
    %167 = arith.mulf %166, %164 : vector<32x2xf32>
    %168 = arith.mulf %159, %105 : vector<32x2xf32>
    %169 = arith.addf %167, %168 : vector<32x2xf32>
    %170 = tpu.concatenate %169, %137 in 0 : vector<32x2xf32>, vector<32x2xf32> -> vector<64x2xf32>
    %171 = arith.truncf %170 : vector<64x2xf32> to vector<64x2xbf16>
    %cst_34 = arith.constant dense<0.000000e+00> : vector<192x2xf32>
    %172 = tpu.matmul %1, %171, %cst_34 {dimension_numbers = #tpu.dot_dimension_numbers<[1], [0], [0], [1], [0, 0, 1, 1], [], []>} : vector<192x64xbf16>, vector<64x2xbf16>, vector<192x2xf32> -> vector<192x2xf32>
    %173 = arith.addf %172, %7 : vector<192x2xf32>
    %174 = vector.extract_strided_slice %173 {offsets = [0, 0], sizes = [96, 2], strides = [1, 1]} : vector<192x2xf32> to vector<96x2xf32>
    %175 = vector.extract_strided_slice %173 {offsets = [96, 0], sizes = [96, 2], strides = [1, 1]} : vector<192x2xf32> to vector<96x2xf32>
    %176 = vector.extract_strided_slice %174 {offsets = [0, 0], sizes = [32, 2], strides = [1, 1]} : vector<96x2xf32> to vector<32x2xf32>
    %177 = vector.extract_strided_slice %175 {offsets = [0, 0], sizes = [32, 2], strides = [1, 1]} : vector<96x2xf32> to vector<32x2xf32>
    %178 = arith.addf %176, %177 : vector<32x2xf32>
    %179 = arith.negf %178 : vector<32x2xf32>
    %180 = math.exp %179 : vector<32x2xf32>
    %cst_35 = arith.constant 1.000000e+00 : f32
    %181 = vector.broadcast %cst_35 : f32 to vector<32x2xf32>
    %182 = arith.addf %181, %180 : vector<32x2xf32>
    %183 = arith.divf %181, %182 : vector<32x2xf32>
    %184 = vector.extract_strided_slice %174 {offsets = [32, 0], sizes = [32, 2], strides = [1, 1]} : vector<96x2xf32> to vector<32x2xf32>
    %185 = vector.extract_strided_slice %175 {offsets = [32, 0], sizes = [32, 2], strides = [1, 1]} : vector<96x2xf32> to vector<32x2xf32>
    %186 = arith.addf %184, %185 : vector<32x2xf32>
    %187 = arith.negf %186 : vector<32x2xf32>
    %188 = math.exp %187 : vector<32x2xf32>
    %cst_36 = arith.constant 1.000000e+00 : f32
    %189 = vector.broadcast %cst_36 : f32 to vector<32x2xf32>
    %190 = arith.addf %189, %188 : vector<32x2xf32>
    %191 = arith.divf %189, %190 : vector<32x2xf32>
    %192 = vector.extract_strided_slice %174 {offsets = [64, 0], sizes = [32, 2], strides = [1, 1]} : vector<96x2xf32> to vector<32x2xf32>
    %193 = vector.extract_strided_slice %175 {offsets = [64, 0], sizes = [32, 2], strides = [1, 1]} : vector<96x2xf32> to vector<32x2xf32>
    %194 = arith.mulf %183, %193 : vector<32x2xf32>
    %195 = arith.addf %192, %194 : vector<32x2xf32>
    %196 = math.tanh %195 : vector<32x2xf32>
    %cst_37 = arith.constant 1.000000e+00 : f32
    %197 = vector.broadcast %cst_37 : f32 to vector<32x2xf32>
    %198 = arith.subf %197, %191 : vector<32x2xf32>
    %199 = arith.mulf %198, %196 : vector<32x2xf32>
    %200 = arith.mulf %191, %137 : vector<32x2xf32>
    %201 = arith.addf %199, %200 : vector<32x2xf32>
    %c3_i32 = arith.constant 3 : i32
    %202 = arith.truncf %169 : vector<32x2xf32> to vector<32x2xbf16>
    %cst_38 = arith.constant dense<0.000000e+00> : vector<96x2xf32>
    %203 = tpu.matmul %0, %202, %cst_38 {dimension_numbers = #tpu.dot_dimension_numbers<[1], [0], [0], [1], [0, 0, 1, 1], [], []>} : vector<96x32xbf16>, vector<32x2xbf16>, vector<96x2xf32> -> vector<96x2xf32>
    %204 = arith.addf %203, %4 : vector<96x2xf32>
    %205 = arith.index_cast %c3_i32 : i32 to index
    %c0_39 = arith.constant 0 : index
    %c0_40 = arith.constant 0 : index
    %206 = vector.load %arg1[%205, %c0_39, %c0_40] : memref<8x96x2xf32, #tpu.memory_space<vmem>>, vector<1x96x2xf32>
    %207 = vector.shape_cast %206 : vector<1x96x2xf32> to vector<96x2xf32>
    %208 = vector.extract_strided_slice %207 {offsets = [0, 0], sizes = [32, 2], strides = [1, 1]} : vector<96x2xf32> to vector<32x2xf32>
    %209 = vector.extract_strided_slice %204 {offsets = [0, 0], sizes = [32, 2], strides = [1, 1]} : vector<96x2xf32> to vector<32x2xf32>
    %210 = arith.addf %208, %209 : vector<32x2xf32>
    %211 = arith.negf %210 : vector<32x2xf32>
    %212 = math.exp %211 : vector<32x2xf32>
    %cst_41 = arith.constant 1.000000e+00 : f32
    %213 = vector.broadcast %cst_41 : f32 to vector<32x2xf32>
    %214 = arith.addf %213, %212 : vector<32x2xf32>
    %215 = arith.divf %213, %214 : vector<32x2xf32>
    %216 = vector.extract_strided_slice %207 {offsets = [32, 0], sizes = [32, 2], strides = [1, 1]} : vector<96x2xf32> to vector<32x2xf32>
    %217 = vector.extract_strided_slice %204 {offsets = [32, 0], sizes = [32, 2], strides = [1, 1]} : vector<96x2xf32> to vector<32x2xf32>
    %218 = arith.addf %216, %217 : vector<32x2xf32>
    %219 = arith.negf %218 : vector<32x2xf32>
    %220 = math.exp %219 : vector<32x2xf32>
    %cst_42 = arith.constant 1.000000e+00 : f32
    %221 = vector.broadcast %cst_42 : f32 to vector<32x2xf32>
    %222 = arith.addf %221, %220 : vector<32x2xf32>
    %223 = arith.divf %221, %222 : vector<32x2xf32>
    %224 = vector.extract_strided_slice %207 {offsets = [64, 0], sizes = [32, 2], strides = [1, 1]} : vector<96x2xf32> to vector<32x2xf32>
    %225 = vector.extract_strided_slice %204 {offsets = [64, 0], sizes = [32, 2], strides = [1, 1]} : vector<96x2xf32> to vector<32x2xf32>
    %226 = arith.mulf %215, %225 : vector<32x2xf32>
    %227 = arith.addf %224, %226 : vector<32x2xf32>
    %228 = math.tanh %227 : vector<32x2xf32>
    %cst_43 = arith.constant 1.000000e+00 : f32
    %229 = vector.broadcast %cst_43 : f32 to vector<32x2xf32>
    %230 = arith.subf %229, %223 : vector<32x2xf32>
    %231 = arith.mulf %230, %228 : vector<32x2xf32>
    %232 = arith.mulf %223, %169 : vector<32x2xf32>
    %233 = arith.addf %231, %232 : vector<32x2xf32>
    %234 = tpu.concatenate %233, %201 in 0 : vector<32x2xf32>, vector<32x2xf32> -> vector<64x2xf32>
    %235 = arith.truncf %234 : vector<64x2xf32> to vector<64x2xbf16>
    %cst_44 = arith.constant dense<0.000000e+00> : vector<192x2xf32>
    %236 = tpu.matmul %1, %235, %cst_44 {dimension_numbers = #tpu.dot_dimension_numbers<[1], [0], [0], [1], [0, 0, 1, 1], [], []>} : vector<192x64xbf16>, vector<64x2xbf16>, vector<192x2xf32> -> vector<192x2xf32>
    %237 = arith.addf %236, %7 : vector<192x2xf32>
    %238 = vector.extract_strided_slice %237 {offsets = [0, 0], sizes = [96, 2], strides = [1, 1]} : vector<192x2xf32> to vector<96x2xf32>
    %239 = vector.extract_strided_slice %237 {offsets = [96, 0], sizes = [96, 2], strides = [1, 1]} : vector<192x2xf32> to vector<96x2xf32>
    %240 = vector.extract_strided_slice %238 {offsets = [0, 0], sizes = [32, 2], strides = [1, 1]} : vector<96x2xf32> to vector<32x2xf32>
    %241 = vector.extract_strided_slice %239 {offsets = [0, 0], sizes = [32, 2], strides = [1, 1]} : vector<96x2xf32> to vector<32x2xf32>
    %242 = arith.addf %240, %241 : vector<32x2xf32>
    %243 = arith.negf %242 : vector<32x2xf32>
    %244 = math.exp %243 : vector<32x2xf32>
    %cst_45 = arith.constant 1.000000e+00 : f32
    %245 = vector.broadcast %cst_45 : f32 to vector<32x2xf32>
    %246 = arith.addf %245, %244 : vector<32x2xf32>
    %247 = arith.divf %245, %246 : vector<32x2xf32>
    %248 = vector.extract_strided_slice %238 {offsets = [32, 0], sizes = [32, 2], strides = [1, 1]} : vector<96x2xf32> to vector<32x2xf32>
    %249 = vector.extract_strided_slice %239 {offsets = [32, 0], sizes = [32, 2], strides = [1, 1]} : vector<96x2xf32> to vector<32x2xf32>
    %250 = arith.addf %248, %249 : vector<32x2xf32>
    %251 = arith.negf %250 : vector<32x2xf32>
    %252 = math.exp %251 : vector<32x2xf32>
    %cst_46 = arith.constant 1.000000e+00 : f32
    %253 = vector.broadcast %cst_46 : f32 to vector<32x2xf32>
    %254 = arith.addf %253, %252 : vector<32x2xf32>
    %255 = arith.divf %253, %254 : vector<32x2xf32>
    %256 = vector.extract_strided_slice %238 {offsets = [64, 0], sizes = [32, 2], strides = [1, 1]} : vector<96x2xf32> to vector<32x2xf32>
    %257 = vector.extract_strided_slice %239 {offsets = [64, 0], sizes = [32, 2], strides = [1, 1]} : vector<96x2xf32> to vector<32x2xf32>
    %258 = arith.mulf %247, %257 : vector<32x2xf32>
    %259 = arith.addf %256, %258 : vector<32x2xf32>
    %260 = math.tanh %259 : vector<32x2xf32>
    %cst_47 = arith.constant 1.000000e+00 : f32
    %261 = vector.broadcast %cst_47 : f32 to vector<32x2xf32>
    %262 = arith.subf %261, %255 : vector<32x2xf32>
    %263 = arith.mulf %262, %260 : vector<32x2xf32>
    %264 = arith.mulf %255, %201 : vector<32x2xf32>
    %265 = arith.addf %263, %264 : vector<32x2xf32>
    %c4_i32 = arith.constant 4 : i32
    %266 = arith.truncf %233 : vector<32x2xf32> to vector<32x2xbf16>
    %cst_48 = arith.constant dense<0.000000e+00> : vector<96x2xf32>
    %267 = tpu.matmul %0, %266, %cst_48 {dimension_numbers = #tpu.dot_dimension_numbers<[1], [0], [0], [1], [0, 0, 1, 1], [], []>} : vector<96x32xbf16>, vector<32x2xbf16>, vector<96x2xf32> -> vector<96x2xf32>
    %268 = arith.addf %267, %4 : vector<96x2xf32>
    %269 = arith.index_cast %c4_i32 : i32 to index
    %c0_49 = arith.constant 0 : index
    %c0_50 = arith.constant 0 : index
    %270 = vector.load %arg1[%269, %c0_49, %c0_50] : memref<8x96x2xf32, #tpu.memory_space<vmem>>, vector<1x96x2xf32>
    %271 = vector.shape_cast %270 : vector<1x96x2xf32> to vector<96x2xf32>
    %272 = vector.extract_strided_slice %271 {offsets = [0, 0], sizes = [32, 2], strides = [1, 1]} : vector<96x2xf32> to vector<32x2xf32>
    %273 = vector.extract_strided_slice %268 {offsets = [0, 0], sizes = [32, 2], strides = [1, 1]} : vector<96x2xf32> to vector<32x2xf32>
    %274 = arith.addf %272, %273 : vector<32x2xf32>
    %275 = arith.negf %274 : vector<32x2xf32>
    %276 = math.exp %275 : vector<32x2xf32>
    %cst_51 = arith.constant 1.000000e+00 : f32
    %277 = vector.broadcast %cst_51 : f32 to vector<32x2xf32>
    %278 = arith.addf %277, %276 : vector<32x2xf32>
    %279 = arith.divf %277, %278 : vector<32x2xf32>
    %280 = vector.extract_strided_slice %271 {offsets = [32, 0], sizes = [32, 2], strides = [1, 1]} : vector<96x2xf32> to vector<32x2xf32>
    %281 = vector.extract_strided_slice %268 {offsets = [32, 0], sizes = [32, 2], strides = [1, 1]} : vector<96x2xf32> to vector<32x2xf32>
    %282 = arith.addf %280, %281 : vector<32x2xf32>
    %283 = arith.negf %282 : vector<32x2xf32>
    %284 = math.exp %283 : vector<32x2xf32>
    %cst_52 = arith.constant 1.000000e+00 : f32
    %285 = vector.broadcast %cst_52 : f32 to vector<32x2xf32>
    %286 = arith.addf %285, %284 : vector<32x2xf32>
    %287 = arith.divf %285, %286 : vector<32x2xf32>
    %288 = vector.extract_strided_slice %271 {offsets = [64, 0], sizes = [32, 2], strides = [1, 1]} : vector<96x2xf32> to vector<32x2xf32>
    %289 = vector.extract_strided_slice %268 {offsets = [64, 0], sizes = [32, 2], strides = [1, 1]} : vector<96x2xf32> to vector<32x2xf32>
    %290 = arith.mulf %279, %289 : vector<32x2xf32>
    %291 = arith.addf %288, %290 : vector<32x2xf32>
    %292 = math.tanh %291 : vector<32x2xf32>
    %cst_53 = arith.constant 1.000000e+00 : f32
    %293 = vector.broadcast %cst_53 : f32 to vector<32x2xf32>
    %294 = arith.subf %293, %287 : vector<32x2xf32>
    %295 = arith.mulf %294, %292 : vector<32x2xf32>
    %296 = arith.mulf %287, %233 : vector<32x2xf32>
    %297 = arith.addf %295, %296 : vector<32x2xf32>
    %298 = tpu.concatenate %297, %265 in 0 : vector<32x2xf32>, vector<32x2xf32> -> vector<64x2xf32>
    %299 = arith.truncf %298 : vector<64x2xf32> to vector<64x2xbf16>
    %cst_54 = arith.constant dense<0.000000e+00> : vector<192x2xf32>
    %300 = tpu.matmul %1, %299, %cst_54 {dimension_numbers = #tpu.dot_dimension_numbers<[1], [0], [0], [1], [0, 0, 1, 1], [], []>} : vector<192x64xbf16>, vector<64x2xbf16>, vector<192x2xf32> -> vector<192x2xf32>
    %301 = arith.addf %300, %7 : vector<192x2xf32>
    %302 = vector.extract_strided_slice %301 {offsets = [0, 0], sizes = [96, 2], strides = [1, 1]} : vector<192x2xf32> to vector<96x2xf32>
    %303 = vector.extract_strided_slice %301 {offsets = [96, 0], sizes = [96, 2], strides = [1, 1]} : vector<192x2xf32> to vector<96x2xf32>
    %304 = vector.extract_strided_slice %302 {offsets = [0, 0], sizes = [32, 2], strides = [1, 1]} : vector<96x2xf32> to vector<32x2xf32>
    %305 = vector.extract_strided_slice %303 {offsets = [0, 0], sizes = [32, 2], strides = [1, 1]} : vector<96x2xf32> to vector<32x2xf32>
    %306 = arith.addf %304, %305 : vector<32x2xf32>
    %307 = arith.negf %306 : vector<32x2xf32>
    %308 = math.exp %307 : vector<32x2xf32>
    %cst_55 = arith.constant 1.000000e+00 : f32
    %309 = vector.broadcast %cst_55 : f32 to vector<32x2xf32>
    %310 = arith.addf %309, %308 : vector<32x2xf32>
    %311 = arith.divf %309, %310 : vector<32x2xf32>
    %312 = vector.extract_strided_slice %302 {offsets = [32, 0], sizes = [32, 2], strides = [1, 1]} : vector<96x2xf32> to vector<32x2xf32>
    %313 = vector.extract_strided_slice %303 {offsets = [32, 0], sizes = [32, 2], strides = [1, 1]} : vector<96x2xf32> to vector<32x2xf32>
    %314 = arith.addf %312, %313 : vector<32x2xf32>
    %315 = arith.negf %314 : vector<32x2xf32>
    %316 = math.exp %315 : vector<32x2xf32>
    %cst_56 = arith.constant 1.000000e+00 : f32
    %317 = vector.broadcast %cst_56 : f32 to vector<32x2xf32>
    %318 = arith.addf %317, %316 : vector<32x2xf32>
    %319 = arith.divf %317, %318 : vector<32x2xf32>
    %320 = vector.extract_strided_slice %302 {offsets = [64, 0], sizes = [32, 2], strides = [1, 1]} : vector<96x2xf32> to vector<32x2xf32>
    %321 = vector.extract_strided_slice %303 {offsets = [64, 0], sizes = [32, 2], strides = [1, 1]} : vector<96x2xf32> to vector<32x2xf32>
    %322 = arith.mulf %311, %321 : vector<32x2xf32>
    %323 = arith.addf %320, %322 : vector<32x2xf32>
    %324 = math.tanh %323 : vector<32x2xf32>
    %cst_57 = arith.constant 1.000000e+00 : f32
    %325 = vector.broadcast %cst_57 : f32 to vector<32x2xf32>
    %326 = arith.subf %325, %319 : vector<32x2xf32>
    %327 = arith.mulf %326, %324 : vector<32x2xf32>
    %328 = arith.mulf %319, %265 : vector<32x2xf32>
    %329 = arith.addf %327, %328 : vector<32x2xf32>
    %c5_i32 = arith.constant 5 : i32
    %330 = arith.truncf %297 : vector<32x2xf32> to vector<32x2xbf16>
    %cst_58 = arith.constant dense<0.000000e+00> : vector<96x2xf32>
    %331 = tpu.matmul %0, %330, %cst_58 {dimension_numbers = #tpu.dot_dimension_numbers<[1], [0], [0], [1], [0, 0, 1, 1], [], []>} : vector<96x32xbf16>, vector<32x2xbf16>, vector<96x2xf32> -> vector<96x2xf32>
    %332 = arith.addf %331, %4 : vector<96x2xf32>
    %333 = arith.index_cast %c5_i32 : i32 to index
    %c0_59 = arith.constant 0 : index
    %c0_60 = arith.constant 0 : index
    %334 = vector.load %arg1[%333, %c0_59, %c0_60] : memref<8x96x2xf32, #tpu.memory_space<vmem>>, vector<1x96x2xf32>
    %335 = vector.shape_cast %334 : vector<1x96x2xf32> to vector<96x2xf32>
    %336 = vector.extract_strided_slice %335 {offsets = [0, 0], sizes = [32, 2], strides = [1, 1]} : vector<96x2xf32> to vector<32x2xf32>
    %337 = vector.extract_strided_slice %332 {offsets = [0, 0], sizes = [32, 2], strides = [1, 1]} : vector<96x2xf32> to vector<32x2xf32>
    %338 = arith.addf %336, %337 : vector<32x2xf32>
    %339 = arith.negf %338 : vector<32x2xf32>
    %340 = math.exp %339 : vector<32x2xf32>
    %cst_61 = arith.constant 1.000000e+00 : f32
    %341 = vector.broadcast %cst_61 : f32 to vector<32x2xf32>
    %342 = arith.addf %341, %340 : vector<32x2xf32>
    %343 = arith.divf %341, %342 : vector<32x2xf32>
    %344 = vector.extract_strided_slice %335 {offsets = [32, 0], sizes = [32, 2], strides = [1, 1]} : vector<96x2xf32> to vector<32x2xf32>
    %345 = vector.extract_strided_slice %332 {offsets = [32, 0], sizes = [32, 2], strides = [1, 1]} : vector<96x2xf32> to vector<32x2xf32>
    %346 = arith.addf %344, %345 : vector<32x2xf32>
    %347 = arith.negf %346 : vector<32x2xf32>
    %348 = math.exp %347 : vector<32x2xf32>
    %cst_62 = arith.constant 1.000000e+00 : f32
    %349 = vector.broadcast %cst_62 : f32 to vector<32x2xf32>
    %350 = arith.addf %349, %348 : vector<32x2xf32>
    %351 = arith.divf %349, %350 : vector<32x2xf32>
    %352 = vector.extract_strided_slice %335 {offsets = [64, 0], sizes = [32, 2], strides = [1, 1]} : vector<96x2xf32> to vector<32x2xf32>
    %353 = vector.extract_strided_slice %332 {offsets = [64, 0], sizes = [32, 2], strides = [1, 1]} : vector<96x2xf32> to vector<32x2xf32>
    %354 = arith.mulf %343, %353 : vector<32x2xf32>
    %355 = arith.addf %352, %354 : vector<32x2xf32>
    %356 = math.tanh %355 : vector<32x2xf32>
    %cst_63 = arith.constant 1.000000e+00 : f32
    %357 = vector.broadcast %cst_63 : f32 to vector<32x2xf32>
    %358 = arith.subf %357, %351 : vector<32x2xf32>
    %359 = arith.mulf %358, %356 : vector<32x2xf32>
    %360 = arith.mulf %351, %297 : vector<32x2xf32>
    %361 = arith.addf %359, %360 : vector<32x2xf32>
    %362 = tpu.concatenate %361, %329 in 0 : vector<32x2xf32>, vector<32x2xf32> -> vector<64x2xf32>
    %363 = arith.truncf %362 : vector<64x2xf32> to vector<64x2xbf16>
    %cst_64 = arith.constant dense<0.000000e+00> : vector<192x2xf32>
    %364 = tpu.matmul %1, %363, %cst_64 {dimension_numbers = #tpu.dot_dimension_numbers<[1], [0], [0], [1], [0, 0, 1, 1], [], []>} : vector<192x64xbf16>, vector<64x2xbf16>, vector<192x2xf32> -> vector<192x2xf32>
    %365 = arith.addf %364, %7 : vector<192x2xf32>
    %366 = vector.extract_strided_slice %365 {offsets = [0, 0], sizes = [96, 2], strides = [1, 1]} : vector<192x2xf32> to vector<96x2xf32>
    %367 = vector.extract_strided_slice %365 {offsets = [96, 0], sizes = [96, 2], strides = [1, 1]} : vector<192x2xf32> to vector<96x2xf32>
    %368 = vector.extract_strided_slice %366 {offsets = [0, 0], sizes = [32, 2], strides = [1, 1]} : vector<96x2xf32> to vector<32x2xf32>
    %369 = vector.extract_strided_slice %367 {offsets = [0, 0], sizes = [32, 2], strides = [1, 1]} : vector<96x2xf32> to vector<32x2xf32>
    %370 = arith.addf %368, %369 : vector<32x2xf32>
    %371 = arith.negf %370 : vector<32x2xf32>
    %372 = math.exp %371 : vector<32x2xf32>
    %cst_65 = arith.constant 1.000000e+00 : f32
    %373 = vector.broadcast %cst_65 : f32 to vector<32x2xf32>
    %374 = arith.addf %373, %372 : vector<32x2xf32>
    %375 = arith.divf %373, %374 : vector<32x2xf32>
    %376 = vector.extract_strided_slice %366 {offsets = [32, 0], sizes = [32, 2], strides = [1, 1]} : vector<96x2xf32> to vector<32x2xf32>
    %377 = vector.extract_strided_slice %367 {offsets = [32, 0], sizes = [32, 2], strides = [1, 1]} : vector<96x2xf32> to vector<32x2xf32>
    %378 = arith.addf %376, %377 : vector<32x2xf32>
    %379 = arith.negf %378 : vector<32x2xf32>
    %380 = math.exp %379 : vector<32x2xf32>
    %cst_66 = arith.constant 1.000000e+00 : f32
    %381 = vector.broadcast %cst_66 : f32 to vector<32x2xf32>
    %382 = arith.addf %381, %380 : vector<32x2xf32>
    %383 = arith.divf %381, %382 : vector<32x2xf32>
    %384 = vector.extract_strided_slice %366 {offsets = [64, 0], sizes = [32, 2], strides = [1, 1]} : vector<96x2xf32> to vector<32x2xf32>
    %385 = vector.extract_strided_slice %367 {offsets = [64, 0], sizes = [32, 2], strides = [1, 1]} : vector<96x2xf32> to vector<32x2xf32>
    %386 = arith.mulf %375, %385 : vector<32x2xf32>
    %387 = arith.addf %384, %386 : vector<32x2xf32>
    %388 = math.tanh %387 : vector<32x2xf32>
    %cst_67 = arith.constant 1.000000e+00 : f32
    %389 = vector.broadcast %cst_67 : f32 to vector<32x2xf32>
    %390 = arith.subf %389, %383 : vector<32x2xf32>
    %391 = arith.mulf %390, %388 : vector<32x2xf32>
    %392 = arith.mulf %383, %329 : vector<32x2xf32>
    %393 = arith.addf %391, %392 : vector<32x2xf32>
    %c6_i32 = arith.constant 6 : i32
    %394 = arith.truncf %361 : vector<32x2xf32> to vector<32x2xbf16>
    %cst_68 = arith.constant dense<0.000000e+00> : vector<96x2xf32>
    %395 = tpu.matmul %0, %394, %cst_68 {dimension_numbers = #tpu.dot_dimension_numbers<[1], [0], [0], [1], [0, 0, 1, 1], [], []>} : vector<96x32xbf16>, vector<32x2xbf16>, vector<96x2xf32> -> vector<96x2xf32>
    %396 = arith.addf %395, %4 : vector<96x2xf32>
    %397 = arith.index_cast %c6_i32 : i32 to index
    %c0_69 = arith.constant 0 : index
    %c0_70 = arith.constant 0 : index
    %398 = vector.load %arg1[%397, %c0_69, %c0_70] : memref<8x96x2xf32, #tpu.memory_space<vmem>>, vector<1x96x2xf32>
    %399 = vector.shape_cast %398 : vector<1x96x2xf32> to vector<96x2xf32>
    %400 = vector.extract_strided_slice %399 {offsets = [0, 0], sizes = [32, 2], strides = [1, 1]} : vector<96x2xf32> to vector<32x2xf32>
    %401 = vector.extract_strided_slice %396 {offsets = [0, 0], sizes = [32, 2], strides = [1, 1]} : vector<96x2xf32> to vector<32x2xf32>
    %402 = arith.addf %400, %401 : vector<32x2xf32>
    %403 = arith.negf %402 : vector<32x2xf32>
    %404 = math.exp %403 : vector<32x2xf32>
    %cst_71 = arith.constant 1.000000e+00 : f32
    %405 = vector.broadcast %cst_71 : f32 to vector<32x2xf32>
    %406 = arith.addf %405, %404 : vector<32x2xf32>
    %407 = arith.divf %405, %406 : vector<32x2xf32>
    %408 = vector.extract_strided_slice %399 {offsets = [32, 0], sizes = [32, 2], strides = [1, 1]} : vector<96x2xf32> to vector<32x2xf32>
    %409 = vector.extract_strided_slice %396 {offsets = [32, 0], sizes = [32, 2], strides = [1, 1]} : vector<96x2xf32> to vector<32x2xf32>
    %410 = arith.addf %408, %409 : vector<32x2xf32>
    %411 = arith.negf %410 : vector<32x2xf32>
    %412 = math.exp %411 : vector<32x2xf32>
    %cst_72 = arith.constant 1.000000e+00 : f32
    %413 = vector.broadcast %cst_72 : f32 to vector<32x2xf32>
    %414 = arith.addf %413, %412 : vector<32x2xf32>
    %415 = arith.divf %413, %414 : vector<32x2xf32>
    %416 = vector.extract_strided_slice %399 {offsets = [64, 0], sizes = [32, 2], strides = [1, 1]} : vector<96x2xf32> to vector<32x2xf32>
    %417 = vector.extract_strided_slice %396 {offsets = [64, 0], sizes = [32, 2], strides = [1, 1]} : vector<96x2xf32> to vector<32x2xf32>
    %418 = arith.mulf %407, %417 : vector<32x2xf32>
    %419 = arith.addf %416, %418 : vector<32x2xf32>
    %420 = math.tanh %419 : vector<32x2xf32>
    %cst_73 = arith.constant 1.000000e+00 : f32
    %421 = vector.broadcast %cst_73 : f32 to vector<32x2xf32>
    %422 = arith.subf %421, %415 : vector<32x2xf32>
    %423 = arith.mulf %422, %420 : vector<32x2xf32>
    %424 = arith.mulf %415, %361 : vector<32x2xf32>
    %425 = arith.addf %423, %424 : vector<32x2xf32>
    %426 = tpu.concatenate %425, %393 in 0 : vector<32x2xf32>, vector<32x2xf32> -> vector<64x2xf32>
    %427 = arith.truncf %426 : vector<64x2xf32> to vector<64x2xbf16>
    %cst_74 = arith.constant dense<0.000000e+00> : vector<192x2xf32>
    %428 = tpu.matmul %1, %427, %cst_74 {dimension_numbers = #tpu.dot_dimension_numbers<[1], [0], [0], [1], [0, 0, 1, 1], [], []>} : vector<192x64xbf16>, vector<64x2xbf16>, vector<192x2xf32> -> vector<192x2xf32>
    %429 = arith.addf %428, %7 : vector<192x2xf32>
    %430 = vector.extract_strided_slice %429 {offsets = [0, 0], sizes = [96, 2], strides = [1, 1]} : vector<192x2xf32> to vector<96x2xf32>
    %431 = vector.extract_strided_slice %429 {offsets = [96, 0], sizes = [96, 2], strides = [1, 1]} : vector<192x2xf32> to vector<96x2xf32>
    %432 = vector.extract_strided_slice %430 {offsets = [0, 0], sizes = [32, 2], strides = [1, 1]} : vector<96x2xf32> to vector<32x2xf32>
    %433 = vector.extract_strided_slice %431 {offsets = [0, 0], sizes = [32, 2], strides = [1, 1]} : vector<96x2xf32> to vector<32x2xf32>
    %434 = arith.addf %432, %433 : vector<32x2xf32>
    %435 = arith.negf %434 : vector<32x2xf32>
    %436 = math.exp %435 : vector<32x2xf32>
    %cst_75 = arith.constant 1.000000e+00 : f32
    %437 = vector.broadcast %cst_75 : f32 to vector<32x2xf32>
    %438 = arith.addf %437, %436 : vector<32x2xf32>
    %439 = arith.divf %437, %438 : vector<32x2xf32>
    %440 = vector.extract_strided_slice %430 {offsets = [32, 0], sizes = [32, 2], strides = [1, 1]} : vector<96x2xf32> to vector<32x2xf32>
    %441 = vector.extract_strided_slice %431 {offsets = [32, 0], sizes = [32, 2], strides = [1, 1]} : vector<96x2xf32> to vector<32x2xf32>
    %442 = arith.addf %440, %441 : vector<32x2xf32>
    %443 = arith.negf %442 : vector<32x2xf32>
    %444 = math.exp %443 : vector<32x2xf32>
    %cst_76 = arith.constant 1.000000e+00 : f32
    %445 = vector.broadcast %cst_76 : f32 to vector<32x2xf32>
    %446 = arith.addf %445, %444 : vector<32x2xf32>
    %447 = arith.divf %445, %446 : vector<32x2xf32>
    %448 = vector.extract_strided_slice %430 {offsets = [64, 0], sizes = [32, 2], strides = [1, 1]} : vector<96x2xf32> to vector<32x2xf32>
    %449 = vector.extract_strided_slice %431 {offsets = [64, 0], sizes = [32, 2], strides = [1, 1]} : vector<96x2xf32> to vector<32x2xf32>
    %450 = arith.mulf %439, %449 : vector<32x2xf32>
    %451 = arith.addf %448, %450 : vector<32x2xf32>
    %452 = math.tanh %451 : vector<32x2xf32>
    %cst_77 = arith.constant 1.000000e+00 : f32
    %453 = vector.broadcast %cst_77 : f32 to vector<32x2xf32>
    %454 = arith.subf %453, %447 : vector<32x2xf32>
    %455 = arith.mulf %454, %452 : vector<32x2xf32>
    %456 = arith.mulf %447, %393 : vector<32x2xf32>
    %457 = arith.addf %455, %456 : vector<32x2xf32>
    %c7_i32 = arith.constant 7 : i32
    %458 = arith.truncf %425 : vector<32x2xf32> to vector<32x2xbf16>
    %cst_78 = arith.constant dense<0.000000e+00> : vector<96x2xf32>
    %459 = tpu.matmul %0, %458, %cst_78 {dimension_numbers = #tpu.dot_dimension_numbers<[1], [0], [0], [1], [0, 0, 1, 1], [], []>} : vector<96x32xbf16>, vector<32x2xbf16>, vector<96x2xf32> -> vector<96x2xf32>
    %460 = arith.addf %459, %4 : vector<96x2xf32>
    %461 = arith.index_cast %c7_i32 : i32 to index
    %c0_79 = arith.constant 0 : index
    %c0_80 = arith.constant 0 : index
    %462 = vector.load %arg1[%461, %c0_79, %c0_80] : memref<8x96x2xf32, #tpu.memory_space<vmem>>, vector<1x96x2xf32>
    %463 = vector.shape_cast %462 : vector<1x96x2xf32> to vector<96x2xf32>
    %464 = vector.extract_strided_slice %463 {offsets = [0, 0], sizes = [32, 2], strides = [1, 1]} : vector<96x2xf32> to vector<32x2xf32>
    %465 = vector.extract_strided_slice %460 {offsets = [0, 0], sizes = [32, 2], strides = [1, 1]} : vector<96x2xf32> to vector<32x2xf32>
    %466 = arith.addf %464, %465 : vector<32x2xf32>
    %467 = arith.negf %466 : vector<32x2xf32>
    %468 = math.exp %467 : vector<32x2xf32>
    %cst_81 = arith.constant 1.000000e+00 : f32
    %469 = vector.broadcast %cst_81 : f32 to vector<32x2xf32>
    %470 = arith.addf %469, %468 : vector<32x2xf32>
    %471 = arith.divf %469, %470 : vector<32x2xf32>
    %472 = vector.extract_strided_slice %463 {offsets = [32, 0], sizes = [32, 2], strides = [1, 1]} : vector<96x2xf32> to vector<32x2xf32>
    %473 = vector.extract_strided_slice %460 {offsets = [32, 0], sizes = [32, 2], strides = [1, 1]} : vector<96x2xf32> to vector<32x2xf32>
    %474 = arith.addf %472, %473 : vector<32x2xf32>
    %475 = arith.negf %474 : vector<32x2xf32>
    %476 = math.exp %475 : vector<32x2xf32>
    %cst_82 = arith.constant 1.000000e+00 : f32
    %477 = vector.broadcast %cst_82 : f32 to vector<32x2xf32>
    %478 = arith.addf %477, %476 : vector<32x2xf32>
    %479 = arith.divf %477, %478 : vector<32x2xf32>
    %480 = vector.extract_strided_slice %463 {offsets = [64, 0], sizes = [32, 2], strides = [1, 1]} : vector<96x2xf32> to vector<32x2xf32>
    %481 = vector.extract_strided_slice %460 {offsets = [64, 0], sizes = [32, 2], strides = [1, 1]} : vector<96x2xf32> to vector<32x2xf32>
    %482 = arith.mulf %471, %481 : vector<32x2xf32>
    %483 = arith.addf %480, %482 : vector<32x2xf32>
    %484 = math.tanh %483 : vector<32x2xf32>
    %cst_83 = arith.constant 1.000000e+00 : f32
    %485 = vector.broadcast %cst_83 : f32 to vector<32x2xf32>
    %486 = arith.subf %485, %479 : vector<32x2xf32>
    %487 = arith.mulf %486, %484 : vector<32x2xf32>
    %488 = arith.mulf %479, %425 : vector<32x2xf32>
    %489 = arith.addf %487, %488 : vector<32x2xf32>
    %490 = tpu.concatenate %489, %457 in 0 : vector<32x2xf32>, vector<32x2xf32> -> vector<64x2xf32>
    %491 = arith.truncf %490 : vector<64x2xf32> to vector<64x2xbf16>
    %cst_84 = arith.constant dense<0.000000e+00> : vector<192x2xf32>
    %492 = tpu.matmul %1, %491, %cst_84 {dimension_numbers = #tpu.dot_dimension_numbers<[1], [0], [0], [1], [0, 0, 1, 1], [], []>} : vector<192x64xbf16>, vector<64x2xbf16>, vector<192x2xf32> -> vector<192x2xf32>
    %493 = arith.addf %492, %7 : vector<192x2xf32>
    %494 = vector.extract_strided_slice %493 {offsets = [0, 0], sizes = [96, 2], strides = [1, 1]} : vector<192x2xf32> to vector<96x2xf32>
    %495 = vector.extract_strided_slice %493 {offsets = [96, 0], sizes = [96, 2], strides = [1, 1]} : vector<192x2xf32> to vector<96x2xf32>
    %496 = vector.extract_strided_slice %494 {offsets = [0, 0], sizes = [32, 2], strides = [1, 1]} : vector<96x2xf32> to vector<32x2xf32>
    %497 = vector.extract_strided_slice %495 {offsets = [0, 0], sizes = [32, 2], strides = [1, 1]} : vector<96x2xf32> to vector<32x2xf32>
    %498 = arith.addf %496, %497 : vector<32x2xf32>
    %499 = arith.negf %498 : vector<32x2xf32>
    %500 = math.exp %499 : vector<32x2xf32>
    %cst_85 = arith.constant 1.000000e+00 : f32
    %501 = vector.broadcast %cst_85 : f32 to vector<32x2xf32>
    %502 = arith.addf %501, %500 : vector<32x2xf32>
    %503 = arith.divf %501, %502 : vector<32x2xf32>
    %504 = vector.extract_strided_slice %494 {offsets = [32, 0], sizes = [32, 2], strides = [1, 1]} : vector<96x2xf32> to vector<32x2xf32>
    %505 = vector.extract_strided_slice %495 {offsets = [32, 0], sizes = [32, 2], strides = [1, 1]} : vector<96x2xf32> to vector<32x2xf32>
    %506 = arith.addf %504, %505 : vector<32x2xf32>
    %507 = arith.negf %506 : vector<32x2xf32>
    %508 = math.exp %507 : vector<32x2xf32>
    %cst_86 = arith.constant 1.000000e+00 : f32
    %509 = vector.broadcast %cst_86 : f32 to vector<32x2xf32>
    %510 = arith.addf %509, %508 : vector<32x2xf32>
    %511 = arith.divf %509, %510 : vector<32x2xf32>
    %512 = vector.extract_strided_slice %494 {offsets = [64, 0], sizes = [32, 2], strides = [1, 1]} : vector<96x2xf32> to vector<32x2xf32>
    %513 = vector.extract_strided_slice %495 {offsets = [64, 0], sizes = [32, 2], strides = [1, 1]} : vector<96x2xf32> to vector<32x2xf32>
    %514 = arith.mulf %503, %513 : vector<32x2xf32>
    %515 = arith.addf %512, %514 : vector<32x2xf32>
    %516 = math.tanh %515 : vector<32x2xf32>
    %cst_87 = arith.constant 1.000000e+00 : f32
    %517 = vector.broadcast %cst_87 : f32 to vector<32x2xf32>
    %518 = arith.subf %517, %511 : vector<32x2xf32>
    %519 = arith.mulf %518, %516 : vector<32x2xf32>
    %520 = arith.mulf %511, %457 : vector<32x2xf32>
    %521 = arith.addf %519, %520 : vector<32x2xf32>
    %c8_i32 = arith.constant 8 : i32
    %c0_88 = arith.constant 0 : index
    %c0_89 = arith.constant 0 : index
    %522 = vector.load %arg6[%c0_88, %c0_89] : memref<16x32xbf16, #tpu.memory_space<vmem>>, vector<16x32xbf16>
    %523 = arith.truncf %521 : vector<32x2xf32> to vector<32x2xbf16>
    %cst_90 = arith.constant dense<0.000000e+00> : vector<16x2xf32>
    %524 = tpu.matmul %522, %523, %cst_90 {dimension_numbers = #tpu.dot_dimension_numbers<[1], [0], [0], [1], [0, 0, 1, 1], [], []>} : vector<16x32xbf16>, vector<32x2xbf16>, vector<16x2xf32> -> vector<16x2xf32>
    %c0_91 = arith.constant 0 : index
    %c0_92 = arith.constant 0 : index
    %525 = vector.load %arg7[%c0_91, %c0_92] : memref<16x1xf32, #tpu.memory_space<vmem>>, vector<16x1xf32>
    %526 = vector.broadcast %525 : vector<16x1xf32> to vector<16x2xf32>
    %527 = arith.addf %524, %526 : vector<16x2xf32>
    %cst_93 = arith.constant 0.000000e+00 : f32
    %528 = vector.broadcast %cst_93 : f32 to vector<16x2xf32>
    %529 = arith.maximumf %527, %528 : vector<16x2xf32>
    %c0_94 = arith.constant 0 : index
    %c0_95 = arith.constant 0 : index
    %530 = vector.load %arg8[%c0_94, %c0_95] : memref<1x16xbf16, #tpu.memory_space<vmem>>, vector<1x16xbf16>
    %531 = arith.truncf %529 : vector<16x2xf32> to vector<16x2xbf16>
    %cst_96 = arith.constant dense<0.000000e+00> : vector<1x2xf32>
    %532 = tpu.matmul %530, %531, %cst_96 {dimension_numbers = #tpu.dot_dimension_numbers<[1], [0], [0], [1], [0, 0, 1, 1], [], []>} : vector<1x16xbf16>, vector<16x2xbf16>, vector<1x2xf32> -> vector<1x2xf32>
    %c0_97 = arith.constant 0 : index
    %c0_98 = arith.constant 0 : index
    %533 = vector.load %arg9[%c0_97, %c0_98] : memref<1x1xf32, #tpu.memory_space<vmem>>, vector<1x1xf32>
    %534 = vector.broadcast %533 : vector<1x1xf32> to vector<1x2xf32>
    %535 = arith.addf %532, %534 : vector<1x2xf32>
    %c0_99 = arith.constant 0 : index
    %c0_100 = arith.constant 0 : index
    %536 = vector.load %arg10[%c0_99, %c0_100] : memref<1x2xf32, #tpu.memory_space<vmem>>, vector<1x2xf32>
    tpu.vector_store %arg10[%c0_99, %c0_100], %535 {strides = array<i32>} : memref<1x2xf32, #tpu.memory_space<vmem>>, vector<1x2xf32>,
    return
  }
  func.func @transform_0(%arg0: i32) -> (i32, i32, i32) {
    %c0_i32 = arith.constant 0 : i32
    %c0_i32_0 = arith.constant 0 : i32
    %c0_i32_1 = arith.constant 0 : i32
    return %c0_i32, %c0_i32_0, %arg0 : i32, i32, i32
  }
  func.func @transform_1(%arg0: i32) -> (i32, i32) {
    %c0_i32 = arith.constant 0 : i32
    %c0_i32_0 = arith.constant 0 : i32
    %c0_i32_1 = arith.constant 0 : i32
    return %c0_i32, %c0_i32_0 : i32, i32
  }
  func.func @transform_2(%arg0: i32) -> (i32, i32) {
    %c0_i32 = arith.constant 0 : i32
    %c0_i32_0 = arith.constant 0 : i32
    %c0_i32_1 = arith.constant 0 : i32
    return %c0_i32, %c0_i32_0 : i32, i32
  }
  func.func @transform_3(%arg0: i32) -> (i32, i32) {
    %c0_i32 = arith.constant 0 : i32
    %c0_i32_0 = arith.constant 0 : i32
    %c0_i32_1 = arith.constant 0 : i32
    return %c0_i32, %c0_i32_0 : i32, i32
  }
  func.func @transform_4(%arg0: i32) -> (i32, i32) {
    %c0_i32 = arith.constant 0 : i32
    %c0_i32_0 = arith.constant 0 : i32
    %c0_i32_1 = arith.constant 0 : i32
    return %c0_i32, %c0_i32_0 : i32, i32
  }
  func.func @transform_5(%arg0: i32) -> (i32, i32) {
    %c0_i32 = arith.constant 0 : i32
    %c0_i32_0 = arith.constant 0 : i32
    %c0_i32_1 = arith.constant 0 : i32
    return %c0_i32, %c0_i32_0 : i32, i32
  }
  func.func @transform_6(%arg0: i32) -> (i32, i32) {
    %c0_i32 = arith.constant 0 : i32
    %c0_i32_0 = arith.constant 0 : i32
    %c0_i32_1 = arith.constant 0 : i32
    return %c0_i32, %c0_i32_0 : i32, i32
  }
  func.func @transform_7(%arg0: i32) -> (i32, i32) {
    %c0_i32 = arith.constant 0 : i32
    %c0_i32_0 = arith.constant 0 : i32
    %c0_i32_1 = arith.constant 0 : i32
    return %c0_i32, %c0_i32_0 : i32, i32
  }
  func.func @transform_8(%arg0: i32) -> (i32, i32) {
    %c0_i32 = arith.constant 0 : i32
    %c0_i32_0 = arith.constant 0 : i32
    %c0_i32_1 = arith.constant 0 : i32
    return %c0_i32, %c0_i32_0 : i32, i32
  }
  func.func @transform_9(%arg0: i32) -> (i32, i32) {
    %c0_i32 = arith.constant 0 : i32
    %c0_i32_0 = arith.constant 0 : i32
    return %c0_i32, %arg0 : i32, i32
  }
}

</mosaic_0001>

<llo_original>
// kernel: tpu_custom_call.1
$region0: #{tpu_custom_call.1}
  #allocation0 [shape = 'u32[]', space=smem, size = 0x4, offset = 0x4, fixed_abs, tag = 'smem constant byte address 0x4 - core index']
  #allocation1 [shape = 'u32[72,128]{1,0:T(1,128)}', space=vmem, size = 0x9000, scoped, tag = 'internal scratch']
  #allocation2 [shape = 'f32[1,1]{1,0:T(1,128)S(1)}', space=vmem, size = 0x200, scoped, tag = 'scoped memory for tpu_custom_call.1']
  %s0 = inlined_call_operand.vmem [shape: f32[8,96,2], index: 0, kind: input, shape index: {}]
  %s1 = inlined_call_operand.vmem [shape: bf16[96,32], index: 1, kind: input, shape index: {}]
  %s2 = inlined_call_operand.vmem [shape: f32[96,1], index: 2, kind: input, shape index: {}]
  %s3 = inlined_call_operand.vmem [shape: bf16[192,64], index: 3, kind: input, shape index: {}]
  %s4 = inlined_call_operand.vmem [shape: f32[192,1], index: 4, kind: input, shape index: {}]
  %s5 = inlined_call_operand.vmem [shape: bf16[16,32], index: 5, kind: input, shape index: {}]
  %s6 = inlined_call_operand.vmem [shape: f32[16,1], index: 6, kind: input, shape index: {}]
  %s7 = inlined_call_operand.vmem [shape: bf16[1,16], index: 7, kind: input, shape index: {}]
  %s8 = inlined_call_operand.<no memory space> [shape: f32[1,1], index: 8, kind: input, shape index: {}]
  %s9 = inlined_call_operand.hbm [shape: f32[1,2], index: 9, kind: output, shape index: {}]
  %s10 = sld [smem:[#allocation0]]
  $region46: #{tpu_custom_call.1} parent=0
    _
  %s12 = ssub.s32 1, %s10
  %s13 = scalar_select 0, %s12, %s10
  %v14 = vstv %s8
  %15 = vst [vmem:[#allocation2] sm:$0x1] %v14
  $region1: #{tpu_custom_call.1} parent=0
    #allocation3 [shape = 'u8[512]{0}', space=vmem, size = 0x400, scoped, tag = 'output window, operand 0, single buffered']
    #allocation4 [shape = 's32[1]{0}', space=sflag, size = 0x4, scoped, tag = 'scoped memory for tpu_custom_call.1']
    %16 = vsyncpa [#allocation4], 0
    // Predicated region
    $region2: #{tpu_custom_call.1} parent=1 // pred_check
      _
    $region3: #{tpu_custom_call.1} parent=1 // pred_check_branch
      %18 = sbr.rel (0) target = $region5
    $region4: #{tpu_custom_call.1} parent=1 // pred_region
      _
    $region5: #{tpu_custom_call.1} parent=1 // pred_fallthru
      _
    // Predicated region
    $region6: #{tpu_custom_call.1} parent=1 // pred_check
      _
    $region7: #{tpu_custom_call.1} parent=1 // pred_check_branch
      %20 = sbr.rel (0) target = $region9
    $region8: #{tpu_custom_call.1} parent=1 // pred_region
      _
    $region9: #{tpu_custom_call.1} parent=1 // pred_fallthru
      _
    // Predicated region
    $region10: #{tpu_custom_call.1} parent=1 // pred_check
      _
    $region11: #{tpu_custom_call.1} parent=1 // pred_check_branch
      %22 = sbr.rel (0) target = $region13
    $region12: #{tpu_custom_call.1} parent=1 // pred_region
      _
    $region13: #{tpu_custom_call.1} parent=1 // pred_fallthru
      _
    // Predicated region
    $region14: #{tpu_custom_call.1} parent=1 // pred_check
      _
    $region15: #{tpu_custom_call.1} parent=1 // pred_check_branch
      %24 = sbr.rel (0) target = $region17
    $region16: #{tpu_custom_call.1} parent=1 // pred_region
      _
    $region17: #{tpu_custom_call.1} parent=1 // pred_fallthru
      _
    // Predicated region
    $region18: #{tpu_custom_call.1} parent=1 // pred_check
      _
    $region19: #{tpu_custom_call.1} parent=1 // pred_check_branch
      %26 = sbr.rel (0) target = $region21
    $region20: #{tpu_custom_call.1} parent=1 // pred_region
      _
    $region21: #{tpu_custom_call.1} parent=1 // pred_fallthru
      _
    // Predicated region
    $region22: #{tpu_custom_call.1} parent=1 // pred_check
      _
    $region23: #{tpu_custom_call.1} parent=1 // pred_check_branch
      %28 = sbr.rel (0) target = $region25
    $region24: #{tpu_custom_call.1} parent=1 // pred_region
      _
    $region25: #{tpu_custom_call.1} parent=1 // pred_fallthru
      _
    // Predicated region
    $region26: #{tpu_custom_call.1} parent=1 // pred_check
      _
    $region27: #{tpu_custom_call.1} parent=1 // pred_check_branch
      %30 = sbr.rel (0) target = $region29
    $region28: #{tpu_custom_call.1} parent=1 // pred_region
      _
    $region29: #{tpu_custom_call.1} parent=1 // pred_fallthru
      _
    // Predicated region
    $region30: #{tpu_custom_call.1} parent=1 // pred_check
      _
    $region31: #{tpu_custom_call.1} parent=1 // pred_check_branch
      %32 = sbr.rel (0) target = $region33
    $region32: #{tpu_custom_call.1} parent=1 // pred_region
      _
    $region33: #{tpu_custom_call.1} parent=1 // pred_fallthru
      _
    // Predicated region
    $region34: #{tpu_custom_call.1} parent=1 // pred_check
      _
    $region35: #{tpu_custom_call.1} parent=1 // pred_check_branch
      %34 = sbr.rel (0) target = $region37
    $region36: #{tpu_custom_call.1} parent=1 // pred_region
      _
    $region37: #{tpu_custom_call.1} parent=1 // pred_fallthru
      _
    %v36 = vld [vmem:[%s1] sm:$0xf]
    %v37 = vld [vmem:[%s1 + $0x4] sm:$0xf]
    %v38 = vld [vmem:[%s1 + $0x8] sm:$0xf]
    %v39 = vld [vmem:[%s1 + $0xc] sm:$0xf]
    %v40 = vld [vmem:[%s1 + $0x10] sm:$0xf]
    %v41 = vld [vmem:[%s1 + $0x14] sm:$0xf]
    %v42 = vld [vmem:[%s1 + $0x18] sm:$0xf]
    %v43 = vld [vmem:[%s1 + $0x1c] sm:$0xf]
    %v44 = vld [vmem:[%s1 + $0x20] sm:$0xf]
    %v45 = vld [vmem:[%s1 + $0x24] sm:$0xf]
    %v46 = vld [vmem:[%s1 + $0x28] sm:$0xf]
    %v47 = vld [vmem:[%s1 + $0x2c] sm:$0xf]
    %v48 = vld [vmem:[%s3] sm:$0xf]
    %v49 = vld [vmem:[%s3 + $0x4] sm:$0xf]
    %v50 = vld [vmem:[%s3 + $0x8] sm:$0xf]
    %v51 = vld [vmem:[%s3 + $0xc] sm:$0xf]
    %v52 = vld [vmem:[%s3 + $0x10] sm:$0xf]
    %v53 = vld [vmem:[%s3 + $0x14] sm:$0xf]
    %v54 = vld [vmem:[%s3 + $0x18] sm:$0xf]
    %v55 = vld [vmem:[%s3 + $0x1c] sm:$0xf]
    %v56 = vld [vmem:[%s3 + $0x20] sm:$0xf]
    %v57 = vld [vmem:[%s3 + $0x24] sm:$0xf]
    %v58 = vld [vmem:[%s3 + $0x28] sm:$0xf]
    %v59 = vld [vmem:[%s3 + $0x2c] sm:$0xf]
    %v60 = vld [vmem:[%s3 + $0x30] sm:$0xf]
    %v61 = vld [vmem:[%s3 + $0x34] sm:$0xf]
    %v62 = vld [vmem:[%s3 + $0x38] sm:$0xf]
    %v63 = vld [vmem:[%s3 + $0x3c] sm:$0xf]
    %v64 = vld [vmem:[%s3 + $0x40] sm:$0xf]
    %v65 = vld [vmem:[%s3 + $0x44] sm:$0xf]
    %v66 = vld [vmem:[%s3 + $0x48] sm:$0xf]
    %v67 = vld [vmem:[%s3 + $0x4c] sm:$0xf]
    %v68 = vld [vmem:[%s3 + $0x50] sm:$0xf]
    %v69 = vld [vmem:[%s3 + $0x54] sm:$0xf]
    %v70 = vld [vmem:[%s3 + $0x58] sm:$0xf]
    %v71 = vld [vmem:[%s3 + $0x5c] sm:$0xf]
    %v72 = vld [vmem:[%s2] sm:$0xff]
    %v73 = vld [vmem:[%s2 + $0x8] sm:$0xff]
    %v74 = vld [vmem:[%s2 + $0x10] sm:$0xff]
    %v75 = vld [vmem:[%s2 + $0x18] sm:$0xff]
    %v76 = vld [vmem:[%s2 + $0x20] sm:$0xff]
    %v77 = vld [vmem:[%s2 + $0x28] sm:$0xff]
    %v78 = vld [vmem:[%s2 + $0x30] sm:$0xff]
    %v79 = vld [vmem:[%s2 + $0x38] sm:$0xff]
    %v80 = vld [vmem:[%s2 + $0x40] sm:$0xff]
    %v81 = vld [vmem:[%s2 + $0x48] sm:$0xff]
    %v82 = vld [vmem:[%s2 + $0x50] sm:$0xff]
    %v83 = vld [vmem:[%s2 + $0x58] sm:$0xff]
    %85 = vset.pattern.permute.xlu0 0
    %86 = vperm.xlu0 %85, %v72
    %v87 = vpop.permute.xlu0 %86
    %90 = vset.pattern.permute.xlu0 0
    %91 = vperm.xlu0 %90, %v73
    %v92 = vpop.permute.xlu0 %91
    %95 = vset.pattern.permute.xlu0 0
    %96 = vperm.xlu0 %95, %v74
    %v97 = vpop.permute.xlu0 %96
    %100 = vset.pattern.permute.xlu0 0
    %101 = vperm.xlu0 %100, %v75
    %v102 = vpop.permute.xlu0 %101
    %105 = vset.pattern.permute.xlu0 0
    %106 = vperm.xlu0 %105, %v76
    %v107 = vpop.permute.xlu0 %106
    %110 = vset.pattern.permute.xlu0 0
    %111 = vperm.xlu0 %110, %v77
    %v112 = vpop.permute.xlu0 %111
    %115 = vset.pattern.permute.xlu0 0
    %116 = vperm.xlu0 %115, %v78
    %v117 = vpop.permute.xlu0 %116
    %120 = vset.pattern.permute.xlu0 0
    %121 = vperm.xlu0 %120, %v79
    %v122 = vpop.permute.xlu0 %121
    %125 = vset.pattern.permute.xlu0 0
    %126 = vperm.xlu0 %125, %v80
    %v127 = vpop.permute.xlu0 %126
    %130 = vset.pattern.permute.xlu0 0
    %131 = vperm.xlu0 %130, %v81
    %v132 = vpop.permute.xlu0 %131
    %135 = vset.pattern.permute.xlu0 0
    %136 = vperm.xlu0 %135, %v82
    %v137 = vpop.permute.xlu0 %136
    %140 = vset.pattern.permute.xlu0 0
    %141 = vperm.xlu0 %140, %v83
    %v142 = vpop.permute.xlu0 %141
    %v144 = vld [vmem:[%s4] sm:$0xff]
    %v145 = vld [vmem:[%s4 + $0x8] sm:$0xff]
    %v146 = vld [vmem:[%s4 + $0x10] sm:$0xff]
    %v147 = vld [vmem:[%s4 + $0x18] sm:$0xff]
    %v148 = vld [vmem:[%s4 + $0x20] sm:$0xff]
    %v149 = vld [vmem:[%s4 + $0x28] sm:$0xff]
    %v150 = vld [vmem:[%s4 + $0x30] sm:$0xff]
    %v151 = vld [vmem:[%s4 + $0x38] sm:$0xff]
    %v152 = vld [vmem:[%s4 + $0x40] sm:$0xff]
    %v153 = vld [vmem:[%s4 + $0x48] sm:$0xff]
    %v154 = vld [vmem:[%s4 + $0x50] sm:$0xff]
    %v155 = vld [vmem:[%s4 + $0x58] sm:$0xff]
    %v156 = vld [vmem:[%s4 + $0x60] sm:$0xff]
    %v157 = vld [vmem:[%s4 + $0x68] sm:$0xff]
    %v158 = vld [vmem:[%s4 + $0x70] sm:$0xff]
    %v159 = vld [vmem:[%s4 + $0x78] sm:$0xff]
    %v160 = vld [vmem:[%s4 + $0x80] sm:$0xff]
    %v161 = vld [vmem:[%s4 + $0x88] sm:$0xff]
    %v162 = vld [vmem:[%s4 + $0x90] sm:$0xff]
    %v163 = vld [vmem:[%s4 + $0x98] sm:$0xff]
    %v164 = vld [vmem:[%s4 + $0xa0] sm:$0xff]
    %v165 = vld [vmem:[%s4 + $0xa8] sm:$0xff]
    %v166 = vld [vmem:[%s4 + $0xb0] sm:$0xff]
    %v167 = vld [vmem:[%s4 + $0xb8] sm:$0xff]
    %169 = vset.pattern.permute.xlu0 0
    %170 = vperm.xlu0 %169, %v144
    %v171 = vpop.permute.xlu0 %170
    %174 = vset.pattern.permute.xlu0 0
    %175 = vperm.xlu0 %174, %v145
    %v176 = vpop.permute.xlu0 %175
    %179 = vset.pattern.permute.xlu0 0
    %180 = vperm.xlu0 %179, %v146
    %v181 = vpop.permute.xlu0 %180
    %184 = vset.pattern.permute.xlu0 0
    %185 = vperm.xlu0 %184, %v147
    %v186 = vpop.permute.xlu0 %185
    %189 = vset.pattern.permute.xlu0 0
    %190 = vperm.xlu0 %189, %v148
    %v191 = vpop.permute.xlu0 %190
    %194 = vset.pattern.permute.xlu0 0
    %195 = vperm.xlu0 %194, %v149
    %v196 = vpop.permute.xlu0 %195
    %199 = vset.pattern.permute.xlu0 0
    %200 = vperm.xlu0 %199, %v150
    %v201 = vpop.permute.xlu0 %200
    %204 = vset.pattern.permute.xlu0 0
    %205 = vperm.xlu0 %204, %v151
    %v206 = vpop.permute.xlu0 %205
    %209 = vset.pattern.permute.xlu0 0
    %210 = vperm.xlu0 %209, %v152
    %v211 = vpop.permute.xlu0 %210
    %214 = vset.pattern.permute.xlu0 0
    %215 = vperm.xlu0 %214, %v153
    %v216 = vpop.permute.xlu0 %215
    %219 = vset.pattern.permute.xlu0 0
    %220 = vperm.xlu0 %219, %v154
    %v221 = vpop.permute.xlu0 %220
    %224 = vset.pattern.permute.xlu0 0
    %225 = vperm.xlu0 %224, %v155
    %v226 = vpop.permute.xlu0 %225
    %229 = vset.pattern.permute.xlu0 0
    %230 = vperm.xlu0 %229, %v156
    %v231 = vpop.permute.xlu0 %230
    %234 = vset.pattern.permute.xlu0 0
    %235 = vperm.xlu0 %234, %v157
    %v236 = vpop.permute.xlu0 %235
    %239 = vset.pattern.permute.xlu0 0
    %240 = vperm.xlu0 %239, %v158
    %v241 = vpop.permute.xlu0 %240
    %244 = vset.pattern.permute.xlu0 0
    %245 = vperm.xlu0 %244, %v159
    %v246 = vpop.permute.xlu0 %245
    %249 = vset.pattern.permute.xlu0 0
    %250 = vperm.xlu0 %249, %v160
    %v251 = vpop.permute.xlu0 %250
    %254 = vset.pattern.permute.xlu0 0
    %255 = vperm.xlu0 %254, %v161
    %v256 = vpop.permute.xlu0 %255
    %259 = vset.pattern.permute.xlu0 0
    %260 = vperm.xlu0 %259, %v162
    %v261 = vpop.permute.xlu0 %260
    %264 = vset.pattern.permute.xlu0 0
    %265 = vperm.xlu0 %264, %v163
    %v266 = vpop.permute.xlu0 %265
    %269 = vset.pattern.permute.xlu0 0
    %270 = vperm.xlu0 %269, %v164
    %v271 = vpop.permute.xlu0 %270
    %274 = vset.pattern.permute.xlu0 0
    %275 = vperm.xlu0 %274, %v165
    %v276 = vpop.permute.xlu0 %275
    %279 = vset.pattern.permute.xlu0 0
    %280 = vperm.xlu0 %279, %v166
    %v281 = vpop.permute.xlu0 %280
    %284 = vset.pattern.permute.xlu0 0
    %285 = vperm.xlu0 %284, %v167
    %v286 = vpop.permute.xlu0 %285
    %v300 = vunpack.c.l.b16 %v36
    %v301 = vunpack.c.l.b16 %v37
    %v302 = vunpack.c.l.b16 %v38
    %v303 = vunpack.c.l.b16 %v39
    %v304 = vunpack.c.l.b16 %v40
    %v305 = vunpack.c.l.b16 %v41
    %v306 = vunpack.c.l.b16 %v42
    %v307 = vunpack.c.l.b16 %v43
    %v308 = vunpack.c.l.b16 %v44
    %v309 = vunpack.c.l.b16 %v45
    %v310 = vunpack.c.l.b16 %v46
    %v311 = vunpack.c.l.b16 %v47
    %v312 = vpack.c.b16 %v301, %v300
    %v313 = vpack.c.b16 %v303, %v302
    %v314 = vpack.c.b16 %v305, %v304
    %v315 = vpack.c.b16 %v307, %v306
    %v316 = vpack.c.b16 %v309, %v308
    %v317 = vpack.c.b16 %v311, %v310
    %vm318 = vcmask 261120
    %v320 = vsel %vm318, %v312, 0
    %v323 = vsel %vm318, %v313, 0
    %v326 = vsel %vm318, %v314, 0
    %v329 = vsel %vm318, %v315, 0
    %v332 = vsel %vm318, %v316, 0
    %v335 = vsel %vm318, %v317, 0
    %337 = vmatpush.bf16.msra.mxu0 0
    %338 = vmatpush.bf16.msra.mxu0 0
    %339 = vmatpush.bf16.msra.mxu0 0
    %340 = vmatpush.bf16.msra.mxu0 0
    %341 = vmatpush.bf16.msra.mxu0 0
    %342 = vmatpush.bf16.msra.mxu0 0
    %343 = vmatpush.bf16.msra.mxu0 0
    %344 = vmatpush.bf16.msra.mxu0 0
    %345 = vmatmul.bf16.gmra.mxu0 %v320
    %v346 = vpop.f32.mrf.mxu0
    %v347 = vadd.f32 %v87, %v346
    %v348 = vpop.f32.mrf.mxu0
    %v349 = vadd.f32 %v92, %v348
    %350 = vmatmul.bf16.gmra.mxu0 %v323
    %v351 = vpop.f32.mrf.mxu0
    %v352 = vadd.f32 %v97, %v351
    %v353 = vpop.f32.mrf.mxu0
    %v354 = vadd.f32 %v102, %v353
    %355 = vmatmul.bf16.gmra.mxu0 %v326
    %v356 = vpop.f32.mrf.mxu0
    %v357 = vadd.f32 %v107, %v356
    %v358 = vpop.f32.mrf.mxu0
    %v359 = vadd.f32 %v112, %v358
    %360 = vmatmul.bf16.gmra.mxu0 %v329
    %v361 = vpop.f32.mrf.mxu0
    %v362 = vadd.f32 %v117, %v361
    %v363 = vpop.f32.mrf.mxu0
    %v364 = vadd.f32 %v122, %v363
    %365 = vmatmul.bf16.gmra.mxu0 %v332
    %v366 = vpop.f32.mrf.mxu0
    %v367 = vadd.f32 %v127, %v366
    %v368 = vpop.f32.mrf.mxu0
    %v369 = vadd.f32 %v132, %v368
    %370 = vmatmul.bf16.gmra.mxu0 %v335
    %v371 = vpop.f32.mrf.mxu0
    %v372 = vadd.f32 %v137, %v371
    %v373 = vpop.f32.mrf.mxu0
    %v374 = vadd.f32 %v142, %v373
    %375 = vdwg.mxu0
    %v376 = vld [vmem:[%s0] sm:$0xff]
    %v377 = vld [vmem:[%s0 + $0x8] sm:$0xff]
    %v378 = vld [vmem:[%s0 + $0x10] sm:$0xff]
    %v379 = vld [vmem:[%s0 + $0x18] sm:$0xff]
    %v380 = vld [vmem:[%s0 + $0x20] sm:$0xff]
    %v381 = vld [vmem:[%s0 + $0x28] sm:$0xff]
    %v382 = vld [vmem:[%s0 + $0x30] sm:$0xff]
    %v383 = vld [vmem:[%s0 + $0x38] sm:$0xff]
    %v384 = vld [vmem:[%s0 + $0x40] sm:$0xff]
    %v385 = vld [vmem:[%s0 + $0x48] sm:$0xff]
    %v386 = vld [vmem:[%s0 + $0x50] sm:$0xff]
    %v387 = vld [vmem:[%s0 + $0x58] sm:$0xff]
    %v388 = vadd.f32 %v376, %v347
    %v389 = vadd.f32 %v377, %v349
    %v390 = vadd.f32 %v378, %v352
    %v391 = vadd.f32 %v379, %v354
    %v392 = vxor.u32 %v388, 2147483648
    %v393 = vxor.u32 %v389, 2147483648
    %v394 = vxor.u32 %v390, 2147483648
    %v395 = vxor.u32 %v391, 2147483648
    %v396 = vmul.f32 %v392, 1.442695
    %v397 = vpow.pop %v396
    %v398 = vmul.f32 %v393, 1.442695
    %v399 = vpow.pop %v398
    %v400 = vmul.f32 %v394, 1.442695
    %v401 = vpow.pop %v400
    %v402 = vmul.f32 %v395, 1.442695
    %v403 = vpow.pop %v402
    %v404 = vadd.f32 %v397, 1.0
    %v405 = vadd.f32 %v399, 1.0
    %v406 = vadd.f32 %v401, 1.0
    %v407 = vadd.f32 %v403, 1.0
    %v408 = vrcp.pop %v404
    %v409 = vmul.f32 %v404, %v408
    %v410 = vsub.f32 1.0, %v409
    %v411 = vmul.f32 %v408, %v410
    %v412 = vadd.f32 %v408, %v411
    %vm413 = vweird.f32 %v404
    %vm414 = vweird.f32 %v408
    %vm415 = vmor %vm413, %vm414
    %v416 = vsel %vm415, %v408, %v412
    %v417 = vand.u32 2147483647, %v404
    %vm418 = vcmp.eq.f32.partialorder %v417, 8.507059e+37
    %v419 = vand.u32 %v404, 2147483648
    %v420 = vor.u32 1.1754944e-38, %v419
    %v421 = vsel %vm418, %v420, %v416
    %v422 = vmul.f32 1.0, %v421
    %v423 = vrcp.pop %v405
    %v424 = vmul.f32 %v405, %v423
    %v425 = vsub.f32 1.0, %v424
    %v426 = vmul.f32 %v423, %v425
    %v427 = vadd.f32 %v423, %v426
    %vm428 = vweird.f32 %v405
    %vm429 = vweird.f32 %v423
    %vm430 = vmor %vm428, %vm429
    %v431 = vsel %vm430, %v423, %v427
    %v432 = vand.u32 2147483647, %v405
    %vm433 = vcmp.eq.f32.partialorder %v432, 8.507059e+37
    %v434 = vand.u32 %v405, 2147483648
    %v435 = vor.u32 1.1754944e-38, %v434
    %v436 = vsel %vm433, %v435, %v431
    %v437 = vmul.f32 1.0, %v436
    %v438 = vrcp.pop %v406
    %v439 = vmul.f32 %v406, %v438
    %v440 = vsub.f32 1.0, %v439
    %v441 = vmul.f32 %v438, %v440
    %v442 = vadd.f32 %v438, %v441
    %vm443 = vweird.f32 %v406
    %vm444 = vweird.f32 %v438
    %vm445 = vmor %vm443, %vm444
    %v446 = vsel %vm445, %v438, %v442
    %v447 = vand.u32 2147483647, %v406
    %vm448 = vcmp.eq.f32.partialorder %v447, 8.507059e+37
    %v449 = vand.u32 %v406, 2147483648
    %v450 = vor.u32 1.1754944e-38, %v449
    %v451 = vsel %vm448, %v450, %v446
    %v452 = vmul.f32 1.0, %v451
    %v453 = vrcp.pop %v407
    %v454 = vmul.f32 %v407, %v453
    %v455 = vsub.f32 1.0, %v454
    %v456 = vmul.f32 %v453, %v455
    %v457 = vadd.f32 %v453, %v456
    %vm458 = vweird.f32 %v407
    %vm459 = vweird.f32 %v453
    %vm460 = vmor %vm458, %vm459
    %v461 = vsel %vm460, %v453, %v457
    %v462 = vand.u32 2147483647, %v407
    %vm463 = vcmp.eq.f32.partialorder %v462, 8.507059e+37
    %v464 = vand.u32 %v407, 2147483648
    %v465 = vor.u32 1.1754944e-38, %v464
    %v466 = vsel %vm463, %v465, %v461
    %v467 = vmul.f32 1.0, %v466
    %v468 = vadd.f32 %v380, %v357
    %v469 = vadd.f32 %v381, %v359
    %v470 = vadd.f32 %v382, %v362
    %v471 = vadd.f32 %v383, %v364
    %v472 = vxor.u32 %v468, 2147483648
    %v473 = vxor.u32 %v469, 2147483648
    %v474 = vxor.u32 %v470, 2147483648
    %v475 = vxor.u32 %v471, 2147483648
    %v476 = vmul.f32 %v472, 1.442695
    %v477 = vpow.pop %v476
    %v478 = vmul.f32 %v473, 1.442695
    %v479 = vpow.pop %v478
    %v480 = vmul.f32 %v474, 1.442695
    %v481 = vpow.pop %v480
    %v482 = vmul.f32 %v475, 1.442695
    %v483 = vpow.pop %v482
    %v484 = vadd.f32 %v477, 1.0
    %v485 = vadd.f32 %v479, 1.0
    %v486 = vadd.f32 %v481, 1.0
    %v487 = vadd.f32 %v483, 1.0
    %v488 = vrcp.pop %v484
    %v489 = vmul.f32 %v484, %v488
    %v490 = vsub.f32 1.0, %v489
    %v491 = vmul.f32 %v488, %v490
    %v492 = vadd.f32 %v488, %v491
    %vm493 = vweird.f32 %v484
    %vm494 = vweird.f32 %v488
    %vm495 = vmor %vm493, %vm494
    %v496 = vsel %vm495, %v488, %v492
    %v497 = vand.u32 2147483647, %v484
    %vm498 = vcmp.eq.f32.partialorder %v497, 8.507059e+37
    %v499 = vand.u32 %v484, 2147483648
    %v500 = vor.u32 1.1754944e-38, %v499
    %v501 = vsel %vm498, %v500, %v496
    %v502 = vmul.f32 1.0, %v501
    %v503 = vrcp.pop %v485
    %v504 = vmul.f32 %v485, %v503
    %v505 = vsub.f32 1.0, %v504
    %v506 = vmul.f32 %v503, %v505
    %v507 = vadd.f32 %v503, %v506
    %vm508 = vweird.f32 %v485
    %vm509 = vweird.f32 %v503
    %vm510 = vmor %vm508, %vm509
    %v511 = vsel %vm510, %v503, %v507
    %v512 = vand.u32 2147483647, %v485
    %vm513 = vcmp.eq.f32.partialorder %v512, 8.507059e+37
    %v514 = vand.u32 %v485, 2147483648
    %v515 = vor.u32 1.1754944e-38, %v514
    %v516 = vsel %vm513, %v515, %v511
    %v517 = vmul.f32 1.0, %v516
    %v518 = vrcp.pop %v486
    %v519 = vmul.f32 %v486, %v518
    %v520 = vsub.f32 1.0, %v519
    %v521 = vmul.f32 %v518, %v520
    %v522 = vadd.f32 %v518, %v521
    %vm523 = vweird.f32 %v486
    %vm524 = vweird.f32 %v518
    %vm525 = vmor %vm523, %vm524
    %v526 = vsel %vm525, %v518, %v522
    %v527 = vand.u32 2147483647, %v486
    %vm528 = vcmp.eq.f32.partialorder %v527, 8.507059e+37
    %v529 = vand.u32 %v486, 2147483648
    %v530 = vor.u32 1.1754944e-38, %v529
    %v531 = vsel %vm528, %v530, %v526
    %v532 = vmul.f32 1.0, %v531
    %v533 = vrcp.pop %v487
    %v534 = vmul.f32 %v487, %v533
    %v535 = vsub.f32 1.0, %v534
    %v536 = vmul.f32 %v533, %v535
    %v537 = vadd.f32 %v533, %v536
    %vm538 = vweird.f32 %v487
    %vm539 = vweird.f32 %v533
    %vm540 = vmor %vm538, %vm539
    %v541 = vsel %vm540, %v533, %v537
    %v542 = vand.u32 2147483647, %v487
    %vm543 = vcmp.eq.f32.partialorder %v542, 8.507059e+37
    %v544 = vand.u32 %v487, 2147483648
    %v545 = vor.u32 1.1754944e-38, %v544
    %v546 = vsel %vm543, %v545, %v541
    %v547 = vmul.f32 1.0, %v546
    %v548 = vmul.f32 %v422, %v367
    %v549 = vmul.f32 %v437, %v369
    %v550 = vmul.f32 %v452, %v372
    %v551 = vmul.f32 %v467, %v374
    %v552 = vadd.f32 %v384, %v548
    %v553 = vadd.f32 %v385, %v549
    %v554 = vadd.f32 %v386, %v550
    %v555 = vadd.f32 %v387, %v551
    %v556 = vtanh.pop %v552
    %v557 = vtanh.pop %v553
    %v558 = vtanh.pop %v554
    %v559 = vtanh.pop %v555
    %v560 = vsub.f32 1.0, %v502
    %v561 = vsub.f32 1.0, %v517
    %v562 = vsub.f32 1.0, %v532
    %v563 = vsub.f32 1.0, %v547
    %v564 = vmul.f32 %v560, %v556
    %v565 = vmul.f32 %v561, %v557
    %v566 = vmul.f32 %v562, %v558
    %v567 = vmul.f32 %v563, %v559
    %v568 = vmul.f32 %v502, 0.0
    %v569 = vmul.f32 %v517, 0.0
    %v570 = vmul.f32 %v532, 0.0
    %v571 = vmul.f32 %v547, 0.0
    %v572 = vadd.f32 %v564, %v568
    %v573 = vadd.f32 %v565, %v569
    %v574 = vadd.f32 %v566, %v570
    %v575 = vadd.f32 %v567, %v571
    %v576 = vpack.c.bf16 %v573, %v572
    %v577 = vpack.c.bf16 %v575, %v574
    %v578 = vpack.c.bf16 0.0, 0.0
    %v603 = vunpack.c.l.b16 %v48
    %v604 = vunpack.c.l.b16 %v49
    %v605 = vunpack.c.l.b16 %v50
    %v606 = vunpack.c.l.b16 %v51
    %v607 = vunpack.c.l.b16 %v52
    %v608 = vunpack.c.l.b16 %v53
    %v609 = vunpack.c.l.b16 %v54
    %v610 = vunpack.c.l.b16 %v55
    %v611 = vunpack.c.l.b16 %v56
    %v612 = vunpack.c.l.b16 %v57
    %v613 = vunpack.c.l.b16 %v58
    %v614 = vunpack.c.l.b16 %v59
    %v615 = vunpack.c.l.b16 %v60
    %v616 = vunpack.c.l.b16 %v61
    %v617 = vunpack.c.l.b16 %v62
    %v618 = vunpack.c.l.b16 %v63
    %v619 = vunpack.c.l.b16 %v64
    %v620 = vunpack.c.l.b16 %v65
    %v621 = vunpack.c.l.b16 %v66
    %v622 = vunpack.c.l.b16 %v67
    %v623 = vunpack.c.l.b16 %v68
    %v624 = vunpack.c.l.b16 %v69
    %v625 = vunpack.c.l.b16 %v70
    %v626 = vunpack.c.l.b16 %v71
    %v627 = vpack.c.b16 %v604, %v603
    %v628 = vpack.c.b16 %v606, %v605
    %v629 = vpack.c.b16 %v608, %v607
    %v630 = vpack.c.b16 %v610, %v609
    %v631 = vpack.c.b16 %v612, %v611
    %v632 = vpack.c.b16 %v614, %v613
    %v633 = vpack.c.b16 %v616, %v615
    %v634 = vpack.c.b16 %v618, %v617
    %v635 = vpack.c.b16 %v620, %v619
    %v636 = vpack.c.b16 %v622, %v621
    %v637 = vpack.c.b16 %v624, %v623
    %v638 = vpack.c.b16 %v626, %v625
    %vm639 = vcmask 523264
    %v641 = vsel %vm639, %v627, 0
    %v644 = vsel %vm639, %v628, 0
    %v647 = vsel %vm639, %v629, 0
    %v650 = vsel %vm639, %v630, 0
    %v653 = vsel %vm639, %v631, 0
    %v656 = vsel %vm639, %v632, 0
    %v659 = vsel %vm639, %v633, 0
    %v662 = vsel %vm639, %v634, 0
    %v665 = vsel %vm639, %v635, 0
    %v668 = vsel %vm639, %v636, 0
    %v671 = vsel %vm639, %v637, 0
    %v674 = vsel %vm639, %v638, 0
    %676 = vmatpush.bf16.msra.mxu0 0
    %677 = vmatpush.bf16.msra.mxu0 0
    %678 = vmatpush.bf16.msra.mxu0 0
    %679 = vmatpush.bf16.msra.mxu0 0
    %680 = vmatpush.bf16.msra.mxu0 %v578
    %681 = vmatpush.bf16.msra.mxu0 %v578
    %682 = vmatpush.bf16.msra.mxu0 %v577
    %683 = vmatpush.bf16.msra.mxu0 %v576
    %684 = vmatmul.bf16.gmra.mxu0 %v641
    %v685 = vpop.f32.mrf.mxu0
    %v686 = vadd.f32 %v171, %v685
    %v687 = vpop.f32.mrf.mxu0
    %v688 = vadd.f32 %v176, %v687
    %689 = vmatmul.bf16.gmra.mxu0 %v644
    %v690 = vpop.f32.mrf.mxu0
    %v691 = vadd.f32 %v181, %v690
    %v692 = vpop.f32.mrf.mxu0
    %v693 = vadd.f32 %v186, %v692
    %694 = vmatmul.bf16.gmra.mxu0 %v647
    %v695 = vpop.f32.mrf.mxu0
    %v696 = vadd.f32 %v191, %v695
    %v697 = vpop.f32.mrf.mxu0
    %v698 = vadd.f32 %v196, %v697
    %699 = vmatmul.bf16.gmra.mxu0 %v650
    %v700 = vpop.f32.mrf.mxu0
    %v701 = vadd.f32 %v201, %v700
    %v702 = vpop.f32.mrf.mxu0
    %v703 = vadd.f32 %v206, %v702
    %704 = vmatmul.bf16.gmra.mxu0 %v653
    %v705 = vpop.f32.mrf.mxu0
    %v706 = vadd.f32 %v211, %v705
    %v707 = vpop.f32.mrf.mxu0
    %v708 = vadd.f32 %v216, %v707
    %709 = vmatmul.bf16.gmra.mxu0 %v656
    %v710 = vpop.f32.mrf.mxu0
    %v711 = vadd.f32 %v221, %v710
    %v712 = vpop.f32.mrf.mxu0
    %v713 = vadd.f32 %v226, %v712
    %714 = vmatmul.bf16.gmra.mxu0 %v659
    %v715 = vpop.f32.mrf.mxu0
    %v716 = vadd.f32 %v231, %v715
    %v717 = vpop.f32.mrf.mxu0
    %v718 = vadd.f32 %v236, %v717
    %719 = vmatmul.bf16.gmra.mxu0 %v662
    %v720 = vpop.f32.mrf.mxu0
    %v721 = vadd.f32 %v241, %v720
    %v722 = vpop.f32.mrf.mxu0
    %v723 = vadd.f32 %v246, %v722
    %724 = vmatmul.bf16.gmra.mxu0 %v665
    %v725 = vpop.f32.mrf.mxu0
    %v726 = vadd.f32 %v251, %v725
    %v727 = vpop.f32.mrf.mxu0
    %v728 = vadd.f32 %v256, %v727
    %729 = vmatmul.bf16.gmra.mxu0 %v668
    %v730 = vpop.f32.mrf.mxu0
    %v731 = vadd.f32 %v261, %v730
    %v732 = vpop.f32.mrf.mxu0
    %v733 = vadd.f32 %v266, %v732
    %734 = vmatmul.bf16.gmra.mxu0 %v671
    %v735 = vpop.f32.mrf.mxu0
    %v736 = vadd.f32 %v271, %v735
    %v737 = vpop.f32.mrf.mxu0
    %v738 = vadd.f32 %v276, %v737
    %739 = vmatmul.bf16.gmra.mxu0 %v674
    %v740 = vpop.f32.mrf.mxu0
    %v741 = vadd.f32 %v281, %v740
    %v742 = vpop.f32.mrf.mxu0
    %v743 = vadd.f32 %v286, %v742
    %744 = vdwg.mxu0
    %v745 = vadd.f32 %v686, %v716
    %v746 = vadd.f32 %v688, %v718
    %v747 = vadd.f32 %v691, %v721
    %v748 = vadd.f32 %v693, %v723
    %v749 = vxor.u32 %v745, 2147483648
    %v750 = vxor.u32 %v746, 2147483648
    %v751 = vxor.u32 %v747, 2147483648
    %v752 = vxor.u32 %v748, 2147483648
    %v753 = vmul.f32 %v749, 1.442695
    %v754 = vpow.pop %v753
    %v755 = vmul.f32 %v750, 1.442695
    %v756 = vpow.pop %v755
    %v757 = vmul.f32 %v751, 1.442695
    %v758 = vpow.pop %v757
    %v759 = vmul.f32 %v752, 1.442695
    %v760 = vpow.pop %v759
    %v761 = vadd.f32 %v754, 1.0
    %v762 = vadd.f32 %v756, 1.0
    %v763 = vadd.f32 %v758, 1.0
    %v764 = vadd.f32 %v760, 1.0
    %v765 = vrcp.pop %v761
    %v766 = vmul.f32 %v761, %v765
    %v767 = vsub.f32 1.0, %v766
    %v768 = vmul.f32 %v765, %v767
    %v769 = vadd.f32 %v765, %v768
    %vm770 = vweird.f32 %v761
    %vm771 = vweird.f32 %v765
    %vm772 = vmor %vm770, %vm771
    %v773 = vsel %vm772, %v765, %v769
    %v774 = vand.u32 2147483647, %v761
    %vm775 = vcmp.eq.f32.partialorder %v774, 8.507059e+37
    %v776 = vand.u32 %v761, 2147483648
    %v777 = vor.u32 1.1754944e-38, %v776
    %v778 = vsel %vm775, %v777, %v773
    %v779 = vmul.f32 1.0, %v778
    %v780 = vrcp.pop %v762
    %v781 = vmul.f32 %v762, %v780
    %v782 = vsub.f32 1.0, %v781
    %v783 = vmul.f32 %v780, %v782
    %v784 = vadd.f32 %v780, %v783
    %vm785 = vweird.f32 %v762
    %vm786 = vweird.f32 %v780
    %vm787 = vmor %vm785, %vm786
    %v788 = vsel %vm787, %v780, %v784
    %v789 = vand.u32 2147483647, %v762
    %vm790 = vcmp.eq.f32.partialorder %v789, 8.507059e+37
    %v791 = vand.u32 %v762, 2147483648
    %v792 = vor.u32 1.1754944e-38, %v791
    %v793 = vsel %vm790, %v792, %v788
    %v794 = vmul.f32 1.0, %v793
    %v795 = vrcp.pop %v763
    %v796 = vmul.f32 %v763, %v795
    %v797 = vsub.f32 1.0, %v796
    %v798 = vmul.f32 %v795, %v797
    %v799 = vadd.f32 %v795, %v798
    %vm800 = vweird.f32 %v763
    %vm801 = vweird.f32 %v795
    %vm802 = vmor %vm800, %vm801
    %v803 = vsel %vm802, %v795, %v799
    %v804 = vand.u32 2147483647, %v763
    %vm805 = vcmp.eq.f32.partialorder %v804, 8.507059e+37
    %v806 = vand.u32 %v763, 2147483648
    %v807 = vor.u32 1.1754944e-38, %v806
    %v808 = vsel %vm805, %v807, %v803
    %v809 = vmul.f32 1.0, %v808
    %v810 = vrcp.pop %v764
    %v811 = vmul.f32 %v764, %v810
    %v812 = vsub.f32 1.0, %v811
    %v813 = vmul.f32 %v810, %v812
    %v814 = vadd.f32 %v810, %v813
    %vm815 = vweird.f32 %v764
    %vm816 = vweird.f32 %v810
    %vm817 = vmor %vm815, %vm816
    %v818 = vsel %vm817, %v810, %v814
    %v819 = vand.u32 2147483647, %v764
    %vm820 = vcmp.eq.f32.partialorder %v819, 8.507059e+37
    %v821 = vand.u32 %v764, 2147483648
    %v822 = vor.u32 1.1754944e-38, %v821
    %v823 = vsel %vm820, %v822, %v818
    %v824 = vmul.f32 1.0, %v823
    %v825 = vadd.f32 %v696, %v726
    %v826 = vadd.f32 %v698, %v728
    %v827 = vadd.f32 %v701, %v731
    %v828 = vadd.f32 %v703, %v733
    %v829 = vxor.u32 %v825, 2147483648
    %v830 = vxor.u32 %v826, 2147483648
    %v831 = vxor.u32 %v827, 2147483648
    %v832 = vxor.u32 %v828, 2147483648
    %v833 = vmul.f32 %v829, 1.442695
    %v834 = vpow.pop %v833
    %v835 = vmul.f32 %v830, 1.442695
    %v836 = vpow.pop %v835
    %v837 = vmul.f32 %v831, 1.442695
    %v838 = vpow.pop %v837
    %v839 = vmul.f32 %v832, 1.442695
    %v840 = vpow.pop %v839
    %v841 = vadd.f32 %v834, 1.0
    %v842 = vadd.f32 %v836, 1.0
    %v843 = vadd.f32 %v838, 1.0
    %v844 = vadd.f32 %v840, 1.0
    %v845 = vrcp.pop %v841
    %v846 = vmul.f32 %v841, %v845
    %v847 = vsub.f32 1.0, %v846
    %v848 = vmul.f32 %v845, %v847
    %v849 = vadd.f32 %v845, %v848
    %vm850 = vweird.f32 %v841
    %vm851 = vweird.f32 %v845
    %vm852 = vmor %vm850, %vm851
    %v853 = vsel %vm852, %v845, %v849
    %v854 = vand.u32 2147483647, %v841
    %vm855 = vcmp.eq.f32.partialorder %v854, 8.507059e+37
    %v856 = vand.u32 %v841, 2147483648
    %v857 = vor.u32 1.1754944e-38, %v856
    %v858 = vsel %vm855, %v857, %v853
    %v859 = vmul.f32 1.0, %v858
    %v860 = vrcp.pop %v842
    %v861 = vmul.f32 %v842, %v860
    %v862 = vsub.f32 1.0, %v861
    %v863 = vmul.f32 %v860, %v862
    %v864 = vadd.f32 %v860, %v863
    %vm865 = vweird.f32 %v842
    %vm866 = vweird.f32 %v860
    %vm867 = vmor %vm865, %vm866
    %v868 = vsel %vm867, %v860, %v864
    %v869 = vand.u32 2147483647, %v842
    %vm870 = vcmp.eq.f32.partialorder %v869, 8.507059e+37
    %v871 = vand.u32 %v842, 2147483648
    %v872 = vor.u32 1.1754944e-38, %v871
    %v873 = vsel %vm870, %v872, %v868
    %v874 = vmul.f32 1.0, %v873
    %v875 = vrcp.pop %v843
    %v876 = vmul.f32 %v843, %v875
    %v877 = vsub.f32 1.0, %v876
    %v878 = vmul.f32 %v875, %v877
    %v879 = vadd.f32 %v875, %v878
    %vm880 = vweird.f32 %v843
    %vm881 = vweird.f32 %v875
    %vm882 = vmor %vm880, %vm881
    %v883 = vsel %vm882, %v875, %v879
    %v884 = vand.u32 2147483647, %v843
    %vm885 = vcmp.eq.f32.partialorder %v884, 8.507059e+37
    %v886 = vand.u32 %v843, 2147483648
    %v887 = vor.u32 1.1754944e-38, %v886
    %v888 = vsel %vm885, %v887, %v883
    %v889 = vmul.f32 1.0, %v888
    %v890 = vrcp.pop %v844
    %v891 = vmul.f32 %v844, %v890
    %v892 = vsub.f32 1.0, %v891
    %v893 = vmul.f32 %v890, %v892
    %v894 = vadd.f32 %v890, %v893
    %vm895 = vweird.f32 %v844
    %vm896 = vweird.f32 %v890
    %vm897 = vmor %vm895, %vm896
    %v898 = vsel %vm897, %v890, %v894
    %v899 = vand.u32 2147483647, %v844
    %vm900 = vcmp.eq.f32.partialorder %v899, 8.507059e+37
    %v901 = vand.u32 %v844, 2147483648
    %v902 = vor.u32 1.1754944e-38, %v901
    %v903 = vsel %vm900, %v902, %v898
    %v904 = vmul.f32 1.0, %v903
    %v905 = vmul.f32 %v779, %v736
    %v906 = vmul.f32 %v794, %v738
    %v907 = vmul.f32 %v809, %v741
    %v908 = vmul.f32 %v824, %v743
    %v909 = vadd.f32 %v706, %v905
    %v910 = vadd.f32 %v708, %v906
    %v911 = vadd.f32 %v711, %v907
    %v912 = vadd.f32 %v713, %v908
    %v913 = vtanh.pop %v909
    %v914 = vtanh.pop %v910
    %v915 = vtanh.pop %v911
    %v916 = vtanh.pop %v912
    %v917 = vsub.f32 1.0, %v859
    %v918 = vsub.f32 1.0, %v874
    %v919 = vsub.f32 1.0, %v889
    %v920 = vsub.f32 1.0, %v904
    %v921 = vmul.f32 %v917, %v913
    %v922 = vmul.f32 %v918, %v914
    %v923 = vmul.f32 %v919, %v915
    %v924 = vmul.f32 %v920, %v916
    %v925 = vmul.f32 %v859, 0.0
    %v926 = vmul.f32 %v874, 0.0
    %v927 = vmul.f32 %v889, 0.0
    %v928 = vmul.f32 %v904, 0.0
    %v929 = vadd.f32 %v921, %v925
    %v930 = vadd.f32 %v922, %v926
    %v931 = vadd.f32 %v923, %v927
    %v932 = vadd.f32 %v924, %v928
    %933 = vmatpush.bf16.msra.mxu0 0
    %934 = vmatpush.bf16.msra.mxu0 0
    %935 = vmatpush.bf16.msra.mxu0 0
    %936 = vmatpush.bf16.msra.mxu0 0
    %937 = vmatpush.bf16.msra.mxu0 0
    %938 = vmatpush.bf16.msra.mxu0 0
    %939 = vmatpush.bf16.msra.mxu0 %v577
    %940 = vmatpush.bf16.msra.mxu0 %v576
    %941 = vmatmul.bf16.gmra.mxu0 %v320
    %v942 = vpop.f32.mrf.mxu0
    %v943 = vadd.f32 %v87, %v942
    %v944 = vpop.f32.mrf.mxu0
    %v945 = vadd.f32 %v92, %v944
    %946 = vmatmul.bf16.gmra.mxu0 %v323
    %v947 = vpop.f32.mrf.mxu0
    %v948 = vadd.f32 %v97, %v947
    %v949 = vpop.f32.mrf.mxu0
    %v950 = vadd.f32 %v102, %v949
    %951 = vmatmul.bf16.gmra.mxu0 %v326
    %v952 = vpop.f32.mrf.mxu0
    %v953 = vadd.f32 %v107, %v952
    %v954 = vpop.f32.mrf.mxu0
    %v955 = vadd.f32 %v112, %v954
    %956 = vmatmul.bf16.gmra.mxu0 %v329
    %v957 = vpop.f32.mrf.mxu0
    %v958 = vadd.f32 %v117, %v957
    %v959 = vpop.f32.mrf.mxu0
    %v960 = vadd.f32 %v122, %v959
    %961 = vmatmul.bf16.gmra.mxu0 %v332
    %v962 = vpop.f32.mrf.mxu0
    %v963 = vadd.f32 %v127, %v962
    %v964 = vpop.f32.mrf.mxu0
    %v965 = vadd.f32 %v132, %v964
    %966 = vmatmul.bf16.gmra.mxu0 %v335
    %v967 = vpop.f32.mrf.mxu0
    %v968 = vadd.f32 %v137, %v967
    %v969 = vpop.f32.mrf.mxu0
    %v970 = vadd.f32 %v142, %v969
    %971 = vdwg.mxu0
    %s972 = scalar_lea.vmem %s0, 96
    %v973 = vld [vmem:[%s972] sm:$0xff]
    %v974 = vld [vmem:[%s972 + $0x8] sm:$0xff]
    %v975 = vld [vmem:[%s972 + $0x10] sm:$0xff]
    %v976 = vld [vmem:[%s972 + $0x18] sm:$0xff]
    %v977 = vld [vmem:[%s972 + $0x20] sm:$0xff]
    %v978 = vld [vmem:[%s972 + $0x28] sm:$0xff]
    %v979 = vld [vmem:[%s972 + $0x30] sm:$0xff]
    %v980 = vld [vmem:[%s972 + $0x38] sm:$0xff]
    %v981 = vld [vmem:[%s972 + $0x40] sm:$0xff]
    %v982 = vld [vmem:[%s972 + $0x48] sm:$0xff]
    %v983 = vld [vmem:[%s972 + $0x50] sm:$0xff]
    %v984 = vld [vmem:[%s972 + $0x58] sm:$0xff]
    %v985 = vadd.f32 %v973, %v943
    %v986 = vadd.f32 %v974, %v945
    %v987 = vadd.f32 %v975, %v948
    %v988 = vadd.f32 %v976, %v950
    %v989 = vxor.u32 %v985, 2147483648
    %v990 = vxor.u32 %v986, 2147483648
    %v991 = vxor.u32 %v987, 2147483648
    %v992 = vxor.u32 %v988, 2147483648
    %v993 = vmul.f32 %v989, 1.442695
    %v994 = vpow.pop %v993
    %v995 = vmul.f32 %v990, 1.442695
    %v996 = vpow.pop %v995
    %v997 = vmul.f32 %v991, 1.442695
    %v998 = vpow.pop %v997
    %v999 = vmul.f32 %v992, 1.442695
    %v1000 = vpow.pop %v999
    %v1001 = vadd.f32 %v994, 1.0
    %v1002 = vadd.f32 %v996, 1.0
    %v1003 = vadd.f32 %v998, 1.0
    %v1004 = vadd.f32 %v1000, 1.0
    %v1005 = vrcp.pop %v1001
    %v1006 = vmul.f32 %v1001, %v1005
    %v1007 = vsub.f32 1.0, %v1006
    %v1008 = vmul.f32 %v1005, %v1007
    %v1009 = vadd.f32 %v1005, %v1008
    %vm1010 = vweird.f32 %v1001
    %vm1011 = vweird.f32 %v1005
    %vm1012 = vmor %vm1010, %vm1011
    %v1013 = vsel %vm1012, %v1005, %v1009
    %v1014 = vand.u32 2147483647, %v1001
    %vm1015 = vcmp.eq.f32.partialorder %v1014, 8.507059e+37
    %v1016 = vand.u32 %v1001, 2147483648
    %v1017 = vor.u32 1.1754944e-38, %v1016
    %v1018 = vsel %vm1015, %v1017, %v1013
    %v1019 = vmul.f32 1.0, %v1018
    %v1020 = vrcp.pop %v1002
    %v1021 = vmul.f32 %v1002, %v1020
    %v1022 = vsub.f32 1.0, %v1021
    %v1023 = vmul.f32 %v1020, %v1022
    %v1024 = vadd.f32 %v1020, %v1023
    %vm1025 = vweird.f32 %v1002
    %vm1026 = vweird.f32 %v1020
    %vm1027 = vmor %vm1025, %vm1026
    %v1028 = vsel %vm1027, %v1020, %v1024
    %v1029 = vand.u32 2147483647, %v1002
    %vm1030 = vcmp.eq.f32.partialorder %v1029, 8.507059e+37
    %v1031 = vand.u32 %v1002, 2147483648
    %v1032 = vor.u32 1.1754944e-38, %v1031
    %v1033 = vsel %vm1030, %v1032, %v1028
    %v1034 = vmul.f32 1.0, %v1033
    %v1035 = vrcp.pop %v1003
    %v1036 = vmul.f32 %v1003, %v1035
    %v1037 = vsub.f32 1.0, %v1036
    %v1038 = vmul.f32 %v1035, %v1037
    %v1039 = vadd.f32 %v1035, %v1038
    %vm1040 = vweird.f32 %v1003
    %vm1041 = vweird.f32 %v1035
    %vm1042 = vmor %vm1040, %vm1041
    %v1043 = vsel %vm1042, %v1035, %v1039
    %v1044 = vand.u32 2147483647, %v1003
    %vm1045 = vcmp.eq.f32.partialorder %v1044, 8.507059e+37
    %v1046 = vand.u32 %v1003, 2147483648
    %v1047 = vor.u32 1.1754944e-38, %v1046
    %v1048 = vsel %vm1045, %v1047, %v1043
    %v1049 = vmul.f32 1.0, %v1048
    %v1050 = vrcp.pop %v1004
    %v1051 = vmul.f32 %v1004, %v1050
    %v1052 = vsub.f32 1.0, %v1051
    %v1053 = vmul.f32 %v1050, %v1052
    %v1054 = vadd.f32 %v1050, %v1053
    %vm1055 = vweird.f32 %v1004
    %vm1056 = vweird.f32 %v1050
    %vm1057 = vmor %vm1055, %vm1056
    %v1058 = vsel %vm1057, %v1050, %v1054
    %v1059 = vand.u32 2147483647, %v1004
    %vm1060 = vcmp.eq.f32.partialorder %v1059, 8.507059e+37
    %v1061 = vand.u32 %v1004, 2147483648
    %v1062 = vor.u32 1.1754944e-38, %v1061
    %v1063 = vsel %vm1060, %v1062, %v1058
    %v1064 = vmul.f32 1.0, %v1063
    %v1065 = vadd.f32 %v977, %v953
    %v1066 = vadd.f32 %v978, %v955
    %v1067 = vadd.f32 %v979, %v958
    %v1068 = vadd.f32 %v980, %v960
    %v1069 = vxor.u32 %v1065, 2147483648
    %v1070 = vxor.u32 %v1066, 2147483648
    %v1071 = vxor.u32 %v1067, 2147483648
    %v1072 = vxor.u32 %v1068, 2147483648
    %v1073 = vmul.f32 %v1069, 1.442695
    %v1074 = vpow.pop %v1073
    %v1075 = vmul.f32 %v1070, 1.442695
    %v1076 = vpow.pop %v1075
    %v1077 = vmul.f32 %v1071, 1.442695
    %v1078 = vpow.pop %v1077
    %v1079 = vmul.f32 %v1072, 1.442695
    %v1080 = vpow.pop %v1079
    %v1081 = vadd.f32 %v1074, 1.0
    %v1082 = vadd.f32 %v1076, 1.0
    %v1083 = vadd.f32 %v1078, 1.0
    %v1084 = vadd.f32 %v1080, 1.0
    %v1085 = vrcp.pop %v1081
    %v1086 = vmul.f32 %v1081, %v1085
    %v1087 = vsub.f32 1.0, %v1086
    %v1088 = vmul.f32 %v1085, %v1087
    %v1089 = vadd.f32 %v1085, %v1088
    %vm1090 = vweird.f32 %v1081
    %vm1091 = vweird.f32 %v1085
    %vm1092 = vmor %vm1090, %vm1091
    %v1093 = vsel %vm1092, %v1085, %v1089
    %v1094 = vand.u32 2147483647, %v1081
    %vm1095 = vcmp.eq.f32.partialorder %v1094, 8.507059e+37
    %v1096 = vand.u32 %v1081, 2147483648
    %v1097 = vor.u32 1.1754944e-38, %v1096
    %v1098 = vsel %vm1095, %v1097, %v1093
    %v1099 = vmul.f32 1.0, %v1098
    %v1100 = vrcp.pop %v1082
    %v1101 = vmul.f32 %v1082, %v1100
    %v1102 = vsub.f32 1.0, %v1101
    %v1103 = vmul.f32 %v1100, %v1102
    %v1104 = vadd.f32 %v1100, %v1103
    %vm1105 = vweird.f32 %v1082
    %vm1106 = vweird.f32 %v1100
    %vm1107 = vmor %vm1105, %vm1106
    %v1108 = vsel %vm1107, %v1100, %v1104
    %v1109 = vand.u32 2147483647, %v1082
    %vm1110 = vcmp.eq.f32.partialorder %v1109, 8.507059e+37
    %v1111 = vand.u32 %v1082, 2147483648
    %v1112 = vor.u32 1.1754944e-38, %v1111
    %v1113 = vsel %vm1110, %v1112, %v1108
    %v1114 = vmul.f32 1.0, %v1113
    %v1115 = vrcp.pop %v1083
    %v1116 = vmul.f32 %v1083, %v1115
    %v1117 = vsub.f32 1.0, %v1116
    %v1118 = vmul.f32 %v1115, %v1117
    %v1119 = vadd.f32 %v1115, %v1118
    %vm1120 = vweird.f32 %v1083
    %vm1121 = vweird.f32 %v1115
    %vm1122 = vmor %vm1120, %vm1121
    %v1123 = vsel %vm1122, %v1115, %v1119
    %v1124 = vand.u32 2147483647, %v1083
    %vm1125 = vcmp.eq.f32.partialorder %v1124, 8.507059e+37
    %v1126 = vand.u32 %v1083, 2147483648
    %v1127 = vor.u32 1.1754944e-38, %v1126
    %v1128 = vsel %vm1125, %v1127, %v1123
    %v1129 = vmul.f32 1.0, %v1128
    %v1130 = vrcp.pop %v1084
    %v1131 = vmul.f32 %v1084, %v1130
    %v1132 = vsub.f32 1.0, %v1131
    %v1133 = vmul.f32 %v1130, %v1132
    %v1134 = vadd.f32 %v1130, %v1133
    %vm1135 = vweird.f32 %v1084
    %vm1136 = vweird.f32 %v1130
    %vm1137 = vmor %vm1135, %vm1136
    %v1138 = vsel %vm1137, %v1130, %v1134
    %v1139 = vand.u32 2147483647, %v1084
    %vm1140 = vcmp.eq.f32.partialorder %v1139, 8.507059e+37
    %v1141 = vand.u32 %v1084, 2147483648
    %v1142 = vor.u32 1.1754944e-38, %v1141
    %v1143 = vsel %vm1140, %v1142, %v1138
    %v1144 = vmul.f32 1.0, %v1143
    %v1145 = vmul.f32 %v1019, %v963
    %v1146 = vmul.f32 %v1034, %v965
    %v1147 = vmul.f32 %v1049, %v968
    %v1148 = vmul.f32 %v1064, %v970
    %v1149 = vadd.f32 %v981, %v1145
    %v1150 = vadd.f32 %v982, %v1146
    %v1151 = vadd.f32 %v983, %v1147
    %v1152 = vadd.f32 %v984, %v1148
    %v1153 = vtanh.pop %v1149
    %v1154 = vtanh.pop %v1150
    %v1155 = vtanh.pop %v1151
    %v1156 = vtanh.pop %v1152
    %v1157 = vsub.f32 1.0, %v1099
    %v1158 = vsub.f32 1.0, %v1114
    %v1159 = vsub.f32 1.0, %v1129
    %v1160 = vsub.f32 1.0, %v1144
    %v1161 = vmul.f32 %v1157, %v1153
    %v1162 = vmul.f32 %v1158, %v1154
    %v1163 = vmul.f32 %v1159, %v1155
    %v1164 = vmul.f32 %v1160, %v1156
    %v1165 = vmul.f32 %v1099, %v572
    %v1166 = vmul.f32 %v1114, %v573
    %v1167 = vmul.f32 %v1129, %v574
    %v1168 = vmul.f32 %v1144, %v575
    %v1169 = vadd.f32 %v1161, %v1165
    %v1170 = vadd.f32 %v1162, %v1166
    %v1171 = vadd.f32 %v1163, %v1167
    %v1172 = vadd.f32 %v1164, %v1168
    %v1173 = vpack.c.bf16 %v1170, %v1169
    %v1174 = vpack.c.bf16 %v1172, %v1171
    %v1175 = vpack.c.bf16 %v930, %v929
    %v1176 = vpack.c.bf16 %v932, %v931
    %1177 = vmatpush.bf16.msra.mxu0 0
    %1178 = vmatpush.bf16.msra.mxu0 0
    %1179 = vmatpush.bf16.msra.mxu0 0
    %1180 = vmatpush.bf16.msra.mxu0 0
    %1181 = vmatpush.bf16.msra.mxu0 %v1176
    %1182 = vmatpush.bf16.msra.mxu0 %v1175
    %1183 = vmatpush.bf16.msra.mxu0 %v1174
    %1184 = vmatpush.bf16.msra.mxu0 %v1173
    %1185 = vmatmul.bf16.gmra.mxu0 %v641
    %v1186 = vpop.f32.mrf.mxu0
    %v1187 = vadd.f32 %v171, %v1186
    %v1188 = vpop.f32.mrf.mxu0
    %v1189 = vadd.f32 %v176, %v1188
    %1190 = vmatmul.bf16.gmra.mxu0 %v644
    %v1191 = vpop.f32.mrf.mxu0
    %v1192 = vadd.f32 %v181, %v1191
    %v1193 = vpop.f32.mrf.mxu0
    %v1194 = vadd.f32 %v186, %v1193
    %1195 = vmatmul.bf16.gmra.mxu0 %v647
    %v1196 = vpop.f32.mrf.mxu0
    %v1197 = vadd.f32 %v191, %v1196
    %v1198 = vpop.f32.mrf.mxu0
    %v1199 = vadd.f32 %v196, %v1198
    %1200 = vmatmul.bf16.gmra.mxu0 %v650
    %v1201 = vpop.f32.mrf.mxu0
    %v1202 = vadd.f32 %v201, %v1201
    %v1203 = vpop.f32.mrf.mxu0
    %v1204 = vadd.f32 %v206, %v1203
    %1205 = vmatmul.bf16.gmra.mxu0 %v653
    %v1206 = vpop.f32.mrf.mxu0
    %v1207 = vadd.f32 %v211, %v1206
    %v1208 = vpop.f32.mrf.mxu0
    %v1209 = vadd.f32 %v216, %v1208
    %1210 = vmatmul.bf16.gmra.mxu0 %v656
    %v1211 = vpop.f32.mrf.mxu0
    %v1212 = vadd.f32 %v221, %v1211
    %v1213 = vpop.f32.mrf.mxu0
    %v1214 = vadd.f32 %v226, %v1213
    %1215 = vmatmul.bf16.gmra.mxu0 %v659
    %v1216 = vpop.f32.mrf.mxu0
    %v1217 = vadd.f32 %v231, %v1216
    %v1218 = vpop.f32.mrf.mxu0
    %v1219 = vadd.f32 %v236, %v1218
    %1220 = vmatmul.bf16.gmra.mxu0 %v662
    %v1221 = vpop.f32.mrf.mxu0
    %v1222 = vadd.f32 %v241, %v1221
    %v1223 = vpop.f32.mrf.mxu0
    %v1224 = vadd.f32 %v246, %v1223
    %1225 = vmatmul.bf16.gmra.mxu0 %v665
    %v1226 = vpop.f32.mrf.mxu0
    %v1227 = vadd.f32 %v251, %v1226
    %v1228 = vpop.f32.mrf.mxu0
    %v1229 = vadd.f32 %v256, %v1228
    %1230 = vmatmul.bf16.gmra.mxu0 %v668
    %v1231 = vpop.f32.mrf.mxu0
    %v1232 = vadd.f32 %v261, %v1231
    %v1233 = vpop.f32.mrf.mxu0
    %v1234 = vadd.f32 %v266, %v1233
    %1235 = vmatmul.bf16.gmra.mxu0 %v671
    %v1236 = vpop.f32.mrf.mxu0
    %v1237 = vadd.f32 %v271, %v1236
    %v1238 = vpop.f32.mrf.mxu0
    %v1239 = vadd.f32 %v276, %v1238
    %1240 = vmatmul.bf16.gmra.mxu0 %v674
    %v1241 = vpop.f32.mrf.mxu0
    %v1242 = vadd.f32 %v281, %v1241
    %v1243 = vpop.f32.mrf.mxu0
    %v1244 = vadd.f32 %v286, %v1243
    %1245 = vdwg.mxu0
    %v1246 = vadd.f32 %v1187, %v1217
    %v1247 = vadd.f32 %v1189, %v1219
    %v1248 = vadd.f32 %v1192, %v1222
    %v1249 = vadd.f32 %v1194, %v1224
    %v1250 = vxor.u32 %v1246, 2147483648
    %v1251 = vxor.u32 %v1247, 2147483648
    %v1252 = vxor.u32 %v1248, 2147483648
    %v1253 = vxor.u32 %v1249, 2147483648
    %v1254 = vmul.f32 %v1250, 1.442695
    %v1255 = vpow.pop %v1254
    %v1256 = vmul.f32 %v1251, 1.442695
    %v1257 = vpow.pop %v1256
    %v1258 = vmul.f32 %v1252, 1.442695
    %v1259 = vpow.pop %v1258
    %v1260 = vmul.f32 %v1253, 1.442695
    %v1261 = vpow.pop %v1260
    %v1262 = vadd.f32 %v1255, 1.0
    %v1263 = vadd.f32 %v1257, 1.0
    %v1264 = vadd.f32 %v1259, 1.0
    %v1265 = vadd.f32 %v1261, 1.0
    %v1266 = vrcp.pop %v1262
    %v1267 = vmul.f32 %v1262, %v1266
    %v1268 = vsub.f32 1.0, %v1267
    %v1269 = vmul.f32 %v1266, %v1268
    %v1270 = vadd.f32 %v1266, %v1269
    %vm1271 = vweird.f32 %v1262
    %vm1272 = vweird.f32 %v1266
    %vm1273 = vmor %vm1271, %vm1272
    %v1274 = vsel %vm1273, %v1266, %v1270
    %v1275 = vand.u32 2147483647, %v1262
    %vm1276 = vcmp.eq.f32.partialorder %v1275, 8.507059e+37
    %v1277 = vand.u32 %v1262, 2147483648
    %v1278 = vor.u32 1.1754944e-38, %v1277
    %v1279 = vsel %vm1276, %v1278, %v1274
    %v1280 = vmul.f32 1.0, %v1279
    %v1281 = vrcp.pop %v1263
    %v1282 = vmul.f32 %v1263, %v1281
    %v1283 = vsub.f32 1.0, %v1282
    %v1284 = vmul.f32 %v1281, %v1283
    %v1285 = vadd.f32 %v1281, %v1284
    %vm1286 = vweird.f32 %v1263
    %vm1287 = vweird.f32 %v1281
    %vm1288 = vmor %vm1286, %vm1287
    %v1289 = vsel %vm1288, %v1281, %v1285
    %v1290 = vand.u32 2147483647, %v1263
    %vm1291 = vcmp.eq.f32.partialorder %v1290, 8.507059e+37
    %v1292 = vand.u32 %v1263, 2147483648
    %v1293 = vor.u32 1.1754944e-38, %v1292
    %v1294 = vsel %vm1291, %v1293, %v1289
    %v1295 = vmul.f32 1.0, %v1294
    %v1296 = vrcp.pop %v1264
    %v1297 = vmul.f32 %v1264, %v1296
    %v1298 = vsub.f32 1.0, %v1297
    %v1299 = vmul.f32 %v1296, %v1298
    %v1300 = vadd.f32 %v1296, %v1299
    %vm1301 = vweird.f32 %v1264
    %vm1302 = vweird.f32 %v1296
    %vm1303 = vmor %vm1301, %vm1302
    %v1304 = vsel %vm1303, %v1296, %v1300
    %v1305 = vand.u32 2147483647, %v1264
    %vm1306 = vcmp.eq.f32.partialorder %v1305, 8.507059e+37
    %v1307 = vand.u32 %v1264, 2147483648
    %v1308 = vor.u32 1.1754944e-38, %v1307
    %v1309 = vsel %vm1306, %v1308, %v1304
    %v1310 = vmul.f32 1.0, %v1309
    %v1311 = vrcp.pop %v1265
    %v1312 = vmul.f32 %v1265, %v1311
    %v1313 = vsub.f32 1.0, %v1312
    %v1314 = vmul.f32 %v1311, %v1313
    %v1315 = vadd.f32 %v1311, %v1314
    %vm1316 = vweird.f32 %v1265
    %vm1317 = vweird.f32 %v1311
    %vm1318 = vmor %vm1316, %vm1317
    %v1319 = vsel %vm1318, %v1311, %v1315
    %v1320 = vand.u32 2147483647, %v1265
    %vm1321 = vcmp.eq.f32.partialorder %v1320, 8.507059e+37
    %v1322 = vand.u32 %v1265, 2147483648
    %v1323 = vor.u32 1.1754944e-38, %v1322
    %v1324 = vsel %vm1321, %v1323, %v1319
    %v1325 = vmul.f32 1.0, %v1324
    %v1326 = vadd.f32 %v1197, %v1227
    %v1327 = vadd.f32 %v1199, %v1229
    %v1328 = vadd.f32 %v1202, %v1232
    %v1329 = vadd.f32 %v1204, %v1234
    %v1330 = vxor.u32 %v1326, 2147483648
    %v1331 = vxor.u32 %v1327, 2147483648
    %v1332 = vxor.u32 %v1328, 2147483648
    %v1333 = vxor.u32 %v1329, 2147483648
    %v1334 = vmul.f32 %v1330, 1.442695
    %v1335 = vpow.pop %v1334
    %v1336 = vmul.f32 %v1331, 1.442695
    %v1337 = vpow.pop %v1336
    %v1338 = vmul.f32 %v1332, 1.442695
    %v1339 = vpow.pop %v1338
    %v1340 = vmul.f32 %v1333, 1.442695
    %v1341 = vpow.pop %v1340
    %v1342 = vadd.f32 %v1335, 1.0
    %v1343 = vadd.f32 %v1337, 1.0
    %v1344 = vadd.f32 %v1339, 1.0
    %v1345 = vadd.f32 %v1341, 1.0
    %v1346 = vrcp.pop %v1342
    %v1347 = vmul.f32 %v1342, %v1346
    %v1348 = vsub.f32 1.0, %v1347
    %v1349 = vmul.f32 %v1346, %v1348
    %v1350 = vadd.f32 %v1346, %v1349
    %vm1351 = vweird.f32 %v1342
    %vm1352 = vweird.f32 %v1346
    %vm1353 = vmor %vm1351, %vm1352
    %v1354 = vsel %vm1353, %v1346, %v1350
    %v1355 = vand.u32 2147483647, %v1342
    %vm1356 = vcmp.eq.f32.partialorder %v1355, 8.507059e+37
    %v1357 = vand.u32 %v1342, 2147483648
    %v1358 = vor.u32 1.1754944e-38, %v1357
    %v1359 = vsel %vm1356, %v1358, %v1354
    %v1360 = vmul.f32 1.0, %v1359
    %v1361 = vrcp.pop %v1343
    %v1362 = vmul.f32 %v1343, %v1361
    %v1363 = vsub.f32 1.0, %v1362
    %v1364 = vmul.f32 %v1361, %v1363
    %v1365 = vadd.f32 %v1361, %v1364
    %vm1366 = vweird.f32 %v1343
    %vm1367 = vweird.f32 %v1361
    %vm1368 = vmor %vm1366, %vm1367
    %v1369 = vsel %vm1368, %v1361, %v1365
    %v1370 = vand.u32 2147483647, %v1343
    %vm1371 = vcmp.eq.f32.partialorder %v1370, 8.507059e+37
    %v1372 = vand.u32 %v1343, 2147483648
    %v1373 = vor.u32 1.1754944e-38, %v1372
    %v1374 = vsel %vm1371, %v1373, %v1369
    %v1375 = vmul.f32 1.0, %v1374
    %v1376 = vrcp.pop %v1344
    %v1377 = vmul.f32 %v1344, %v1376
    %v1378 = vsub.f32 1.0, %v1377
    %v1379 = vmul.f32 %v1376, %v1378
    %v1380 = vadd.f32 %v1376, %v1379
    %vm1381 = vweird.f32 %v1344
    %vm1382 = vweird.f32 %v1376
    %vm1383 = vmor %vm1381, %vm1382
    %v1384 = vsel %vm1383, %v1376, %v1380
    %v1385 = vand.u32 2147483647, %v1344
    %vm1386 = vcmp.eq.f32.partialorder %v1385, 8.507059e+37
    %v1387 = vand.u32 %v1344, 2147483648
    %v1388 = vor.u32 1.1754944e-38, %v1387
    %v1389 = vsel %vm1386, %v1388, %v1384
    %v1390 = vmul.f32 1.0, %v1389
    %v1391 = vrcp.pop %v1345
    %v1392 = vmul.f32 %v1345, %v1391
    %v1393 = vsub.f32 1.0, %v1392
    %v1394 = vmul.f32 %v1391, %v1393
    %v1395 = vadd.f32 %v1391, %v1394
    %vm1396 = vweird.f32 %v1345
    %vm1397 = vweird.f32 %v1391
    %vm1398 = vmor %vm1396, %vm1397
    %v1399 = vsel %vm1398, %v1391, %v1395
    %v1400 = vand.u32 2147483647, %v1345
    %vm1401 = vcmp.eq.f32.partialorder %v1400, 8.507059e+37
    %v1402 = vand.u32 %v1345, 2147483648
    %v1403 = vor.u32 1.1754944e-38, %v1402
    %v1404 = vsel %vm1401, %v1403, %v1399
    %v1405 = vmul.f32 1.0, %v1404
    %v1406 = vmul.f32 %v1280, %v1237
    %v1407 = vmul.f32 %v1295, %v1239
    %v1408 = vmul.f32 %v1310, %v1242
    %v1409 = vmul.f32 %v1325, %v1244
    %v1410 = vadd.f32 %v1207, %v1406
    %v1411 = vadd.f32 %v1209, %v1407
    %v1412 = vadd.f32 %v1212, %v1408
    %v1413 = vadd.f32 %v1214, %v1409
    %v1414 = vtanh.pop %v1410
    %v1415 = vtanh.pop %v1411
    %v1416 = vtanh.pop %v1412
    %v1417 = vtanh.pop %v1413
    %v1418 = vsub.f32 1.0, %v1360
    %v1419 = vsub.f32 1.0, %v1375
    %v1420 = vsub.f32 1.0, %v1390
    %v1421 = vsub.f32 1.0, %v1405
    %v1422 = vmul.f32 %v1418, %v1414
    %v1423 = vmul.f32 %v1419, %v1415
    %v1424 = vmul.f32 %v1420, %v1416
    %v1425 = vmul.f32 %v1421, %v1417
    %v1426 = vmul.f32 %v1360, %v929
    %v1427 = vmul.f32 %v1375, %v930
    %v1428 = vmul.f32 %v1390, %v931
    %v1429 = vmul.f32 %v1405, %v932
    %v1430 = vadd.f32 %v1422, %v1426
    %v1431 = vadd.f32 %v1423, %v1427
    %v1432 = vadd.f32 %v1424, %v1428
    %v1433 = vadd.f32 %v1425, %v1429
    %1434 = vmatpush.bf16.msra.mxu0 0
    %1435 = vmatpush.bf16.msra.mxu0 0
    %1436 = vmatpush.bf16.msra.mxu0 0
    %1437 = vmatpush.bf16.msra.mxu0 0
    %1438 = vmatpush.bf16.msra.mxu0 0
    %1439 = vmatpush.bf16.msra.mxu0 0
    %1440 = vmatpush.bf16.msra.mxu0 %v1174
    %1441 = vmatpush.bf16.msra.mxu0 %v1173
    %1442 = vmatmul.bf16.gmra.mxu0 %v320
    %v1443 = vpop.f32.mrf.mxu0
    %v1444 = vadd.f32 %v87, %v1443
    %v1445 = vpop.f32.mrf.mxu0
    %v1446 = vadd.f32 %v92, %v1445
    %1447 = vmatmul.bf16.gmra.mxu0 %v323
    %v1448 = vpop.f32.mrf.mxu0
    %v1449 = vadd.f32 %v97, %v1448
    %v1450 = vpop.f32.mrf.mxu0
    %v1451 = vadd.f32 %v102, %v1450
    %1452 = vmatmul.bf16.gmra.mxu0 %v326
    %v1453 = vpop.f32.mrf.mxu0
    %v1454 = vadd.f32 %v107, %v1453
    %v1455 = vpop.f32.mrf.mxu0
    %v1456 = vadd.f32 %v112, %v1455
    %1457 = vmatmul.bf16.gmra.mxu0 %v329
    %v1458 = vpop.f32.mrf.mxu0
    %v1459 = vadd.f32 %v117, %v1458
    %v1460 = vpop.f32.mrf.mxu0
    %v1461 = vadd.f32 %v122, %v1460
    %1462 = vmatmul.bf16.gmra.mxu0 %v332
    %v1463 = vpop.f32.mrf.mxu0
    %v1464 = vadd.f32 %v127, %v1463
    %v1465 = vpop.f32.mrf.mxu0
    %v1466 = vadd.f32 %v132, %v1465
    %1467 = vmatmul.bf16.gmra.mxu0 %v335
    %v1468 = vpop.f32.mrf.mxu0
    %v1469 = vadd.f32 %v137, %v1468
    %v1470 = vpop.f32.mrf.mxu0
    %v1471 = vadd.f32 %v142, %v1470
    %1472 = vdwg.mxu0
    %s1473 = scalar_lea.vmem %s0, 192
    %v1474 = vld [vmem:[%s1473] sm:$0xff]
    %v1475 = vld [vmem:[%s1473 + $0x8] sm:$0xff]
    %v1476 = vld [vmem:[%s1473 + $0x10] sm:$0xff]
    %v1477 = vld [vmem:[%s1473 + $0x18] sm:$0xff]
    %v1478 = vld [vmem:[%s1473 + $0x20] sm:$0xff]
    %v1479 = vld [vmem:[%s1473 + $0x28] sm:$0xff]
    %v1480 = vld [vmem:[%s1473 + $0x30] sm:$0xff]
    %v1481 = vld [vmem:[%s1473 + $0x38] sm:$0xff]
    %v1482 = vld [vmem:[%s1473 + $0x40] sm:$0xff]
    %v1483 = vld [vmem:[%s1473 + $0x48] sm:$0xff]
    %v1484 = vld [vmem:[%s1473 + $0x50] sm:$0xff]
    %v1485 = vld [vmem:[%s1473 + $0x58] sm:$0xff]
    %v1486 = vadd.f32 %v1474, %v1444
    %v1487 = vadd.f32 %v1475, %v1446
    %v1488 = vadd.f32 %v1476, %v1449
    %v1489 = vadd.f32 %v1477, %v1451
    %v1490 = vxor.u32 %v1486, 2147483648
    %v1491 = vxor.u32 %v1487, 2147483648
    %v1492 = vxor.u32 %v1488, 2147483648
    %v1493 = vxor.u32 %v1489, 2147483648
    %v1494 = vmul.f32 %v1490, 1.442695
    %v1495 = vpow.pop %v1494
    %v1496 = vmul.f32 %v1491, 1.442695
    %v1497 = vpow.pop %v1496
    %v1498 = vmul.f32 %v1492, 1.442695
    %v1499 = vpow.pop %v1498
    %v1500 = vmul.f32 %v1493, 1.442695
    %v1501 = vpow.pop %v1500
    %v1502 = vadd.f32 %v1495, 1.0
    %v1503 = vadd.f32 %v1497, 1.0
    %v1504 = vadd.f32 %v1499, 1.0
    %v1505 = vadd.f32 %v1501, 1.0
    %v1506 = vrcp.pop %v1502
    %v1507 = vmul.f32 %v1502, %v1506
    %v1508 = vsub.f32 1.0, %v1507
    %v1509 = vmul.f32 %v1506, %v1508
    %v1510 = vadd.f32 %v1506, %v1509
    %vm1511 = vweird.f32 %v1502
    %vm1512 = vweird.f32 %v1506
    %vm1513 = vmor %vm1511, %vm1512
    %v1514 = vsel %vm1513, %v1506, %v1510
    %v1515 = vand.u32 2147483647, %v1502
    %vm1516 = vcmp.eq.f32.partialorder %v1515, 8.507059e+37
    %v1517 = vand.u32 %v1502, 2147483648
    %v1518 = vor.u32 1.1754944e-38, %v1517
    %v1519 = vsel %vm1516, %v1518, %v1514
    %v1520 = vmul.f32 1.0, %v1519
    %v1521 = vrcp.pop %v1503
    %v1522 = vmul.f32 %v1503, %v1521
    %v1523 = vsub.f32 1.0, %v1522
    %v1524 = vmul.f32 %v1521, %v1523
    %v1525 = vadd.f32 %v1521, %v1524
    %vm1526 = vweird.f32 %v1503
    %vm1527 = vweird.f32 %v1521
    %vm1528 = vmor %vm1526, %vm1527
    %v1529 = vsel %vm1528, %v1521, %v1525
    %v1530 = vand.u32 2147483647, %v1503
    %vm1531 = vcmp.eq.f32.partialorder %v1530, 8.507059e+37
    %v1532 = vand.u32 %v1503, 2147483648
    %v1533 = vor.u32 1.1754944e-38, %v1532
    %v1534 = vsel %vm1531, %v1533, %v1529
    %v1535 = vmul.f32 1.0, %v1534
    %v1536 = vrcp.pop %v1504
    %v1537 = vmul.f32 %v1504, %v1536
    %v1538 = vsub.f32 1.0, %v1537
    %v1539 = vmul.f32 %v1536, %v1538
    %v1540 = vadd.f32 %v1536, %v1539
    %vm1541 = vweird.f32 %v1504
    %vm1542 = vweird.f32 %v1536
    %vm1543 = vmor %vm1541, %vm1542
    %v1544 = vsel %vm1543, %v1536, %v1540
    %v1545 = vand.u32 2147483647, %v1504
    %vm1546 = vcmp.eq.f32.partialorder %v1545, 8.507059e+37
    %v1547 = vand.u32 %v1504, 2147483648
    %v1548 = vor.u32 1.1754944e-38, %v1547
    %v1549 = vsel %vm1546, %v1548, %v1544
    %v1550 = vmul.f32 1.0, %v1549
    %v1551 = vrcp.pop %v1505
    %v1552 = vmul.f32 %v1505, %v1551
    %v1553 = vsub.f32 1.0, %v1552
    %v1554 = vmul.f32 %v1551, %v1553
    %v1555 = vadd.f32 %v1551, %v1554
    %vm1556 = vweird.f32 %v1505
    %vm1557 = vweird.f32 %v1551
    %vm1558 = vmor %vm1556, %vm1557
    %v1559 = vsel %vm1558, %v1551, %v1555
    %v1560 = vand.u32 2147483647, %v1505
    %vm1561 = vcmp.eq.f32.partialorder %v1560, 8.507059e+37
    %v1562 = vand.u32 %v1505, 2147483648
    %v1563 = vor.u32 1.1754944e-38, %v1562
    %v1564 = vsel %vm1561, %v1563, %v1559
    %v1565 = vmul.f32 1.0, %v1564
    %v1566 = vadd.f32 %v1478, %v1454
    %v1567 = vadd.f32 %v1479, %v1456
    %v1568 = vadd.f32 %v1480, %v1459
    %v1569 = vadd.f32 %v1481, %v1461
    %v1570 = vxor.u32 %v1566, 2147483648
    %v1571 = vxor.u32 %v1567, 2147483648
    %v1572 = vxor.u32 %v1568, 2147483648
    %v1573 = vxor.u32 %v1569, 2147483648
    %v1574 = vmul.f32 %v1570, 1.442695
    %v1575 = vpow.pop %v1574
    %v1576 = vmul.f32 %v1571, 1.442695
    %v1577 = vpow.pop %v1576
    %v1578 = vmul.f32 %v1572, 1.442695
    %v1579 = vpow.pop %v1578
    %v1580 = vmul.f32 %v1573, 1.442695
    %v1581 = vpow.pop %v1580
    %v1582 = vadd.f32 %v1575, 1.0
    %v1583 = vadd.f32 %v1577, 1.0
    %v1584 = vadd.f32 %v1579, 1.0
    %v1585 = vadd.f32 %v1581, 1.0
    %v1586 = vrcp.pop %v1582
    %v1587 = vmul.f32 %v1582, %v1586
    %v1588 = vsub.f32 1.0, %v1587
    %v1589 = vmul.f32 %v1586, %v1588
    %v1590 = vadd.f32 %v1586, %v1589
    %vm1591 = vweird.f32 %v1582
    %vm1592 = vweird.f32 %v1586
    %vm1593 = vmor %vm1591, %vm1592
    %v1594 = vsel %vm1593, %v1586, %v1590
    %v1595 = vand.u32 2147483647, %v1582
    %vm1596 = vcmp.eq.f32.partialorder %v1595, 8.507059e+37
    %v1597 = vand.u32 %v1582, 2147483648
    %v1598 = vor.u32 1.1754944e-38, %v1597
    %v1599 = vsel %vm1596, %v1598, %v1594
    %v1600 = vmul.f32 1.0, %v1599
    %v1601 = vrcp.pop %v1583
    %v1602 = vmul.f32 %v1583, %v1601
    %v1603 = vsub.f32 1.0, %v1602
    %v1604 = vmul.f32 %v1601, %v1603
    %v1605 = vadd.f32 %v1601, %v1604
    %vm1606 = vweird.f32 %v1583
    %vm1607 = vweird.f32 %v1601
    %vm1608 = vmor %vm1606, %vm1607
    %v1609 = vsel %vm1608, %v1601, %v1605
    %v1610 = vand.u32 2147483647, %v1583
    %vm1611 = vcmp.eq.f32.partialorder %v1610, 8.507059e+37
    %v1612 = vand.u32 %v1583, 2147483648
    %v1613 = vor.u32 1.1754944e-38, %v1612
    %v1614 = vsel %vm1611, %v1613, %v1609
    %v1615 = vmul.f32 1.0, %v1614
    %v1616 = vrcp.pop %v1584
    %v1617 = vmul.f32 %v1584, %v1616
    %v1618 = vsub.f32 1.0, %v1617
    %v1619 = vmul.f32 %v1616, %v1618
    %v1620 = vadd.f32 %v1616, %v1619
    %vm1621 = vweird.f32 %v1584
    %vm1622 = vweird.f32 %v1616
    %vm1623 = vmor %vm1621, %vm1622
    %v1624 = vsel %vm1623, %v1616, %v1620
    %v1625 = vand.u32 2147483647, %v1584
    %vm1626 = vcmp.eq.f32.partialorder %v1625, 8.507059e+37
    %v1627 = vand.u32 %v1584, 2147483648
    %v1628 = vor.u32 1.1754944e-38, %v1627
    %v1629 = vsel %vm1626, %v1628, %v1624
    %v1630 = vmul.f32 1.0, %v1629
    %v1631 = vrcp.pop %v1585
    %v1632 = vmul.f32 %v1585, %v1631
    %v1633 = vsub.f32 1.0, %v1632
    %v1634 = vmul.f32 %v1631, %v1633
    %v1635 = vadd.f32 %v1631, %v1634
    %vm1636 = vweird.f32 %v1585
    %vm1637 = vweird.f32 %v1631
    %vm1638 = vmor %vm1636, %vm1637
    %v1639 = vsel %vm1638, %v1631, %v1635
    %v1640 = vand.u32 2147483647, %v1585
    %vm1641 = vcmp.eq.f32.partialorder %v1640, 8.507059e+37
    %v1642 = vand.u32 %v1585, 2147483648
    %v1643 = vor.u32 1.1754944e-38, %v1642
    %v1644 = vsel %vm1641, %v1643, %v1639
    %v1645 = vmul.f32 1.0, %v1644
    %v1646 = vmul.f32 %v1520, %v1464
    %v1647 = vmul.f32 %v1535, %v1466
    %v1648 = vmul.f32 %v1550, %v1469
    %v1649 = vmul.f32 %v1565, %v1471
    %v1650 = vadd.f32 %v1482, %v1646
    %v1651 = vadd.f32 %v1483, %v1647
    %v1652 = vadd.f32 %v1484, %v1648
    %v1653 = vadd.f32 %v1485, %v1649
    %v1654 = vtanh.pop %v1650
    %v1655 = vtanh.pop %v1651
    %v1656 = vtanh.pop %v1652
    %v1657 = vtanh.pop %v1653
    %v1658 = vsub.f32 1.0, %v1600
    %v1659 = vsub.f32 1.0, %v1615
    %v1660 = vsub.f32 1.0, %v1630
    %v1661 = vsub.f32 1.0, %v1645
    %v1662 = vmul.f32 %v1658, %v1654
    %v1663 = vmul.f32 %v1659, %v1655
    %v1664 = vmul.f32 %v1660, %v1656
    %v1665 = vmul.f32 %v1661, %v1657
    %v1666 = vmul.f32 %v1600, %v1169
    %v1667 = vmul.f32 %v1615, %v1170
    %v1668 = vmul.f32 %v1630, %v1171
    %v1669 = vmul.f32 %v1645, %v1172
    %v1670 = vadd.f32 %v1662, %v1666
    %v1671 = vadd.f32 %v1663, %v1667
    %v1672 = vadd.f32 %v1664, %v1668
    %v1673 = vadd.f32 %v1665, %v1669
    %v1674 = vpack.c.bf16 %v1671, %v1670
    %v1675 = vpack.c.bf16 %v1673, %v1672
    %v1676 = vpack.c.bf16 %v1431, %v1430
    %v1677 = vpack.c.bf16 %v1433, %v1432
    %1678 = vmatpush.bf16.msra.mxu0 0
    %1679 = vmatpush.bf16.msra.mxu0 0
    %1680 = vmatpush.bf16.msra.mxu0 0
    %1681 = vmatpush.bf16.msra.mxu0 0
    %1682 = vmatpush.bf16.msra.mxu0 %v1677
    %1683 = vmatpush.bf16.msra.mxu0 %v1676
    %1684 = vmatpush.bf16.msra.mxu0 %v1675
    %1685 = vmatpush.bf16.msra.mxu0 %v1674
    %1686 = vmatmul.bf16.gmra.mxu0 %v641
    %v1687 = vpop.f32.mrf.mxu0
    %v1688 = vadd.f32 %v171, %v1687
    %v1689 = vpop.f32.mrf.mxu0
    %v1690 = vadd.f32 %v176, %v1689
    %1691 = vmatmul.bf16.gmra.mxu0 %v644
    %v1692 = vpop.f32.mrf.mxu0
    %v1693 = vadd.f32 %v181, %v1692
    %v1694 = vpop.f32.mrf.mxu0
    %v1695 = vadd.f32 %v186, %v1694
    %1696 = vmatmul.bf16.gmra.mxu0 %v647
    %v1697 = vpop.f32.mrf.mxu0
    %v1698 = vadd.f32 %v191, %v1697
    %v1699 = vpop.f32.mrf.mxu0
    %v1700 = vadd.f32 %v196, %v1699
    %1701 = vmatmul.bf16.gmra.mxu0 %v650
    %v1702 = vpop.f32.mrf.mxu0
    %v1703 = vadd.f32 %v201, %v1702
    %v1704 = vpop.f32.mrf.mxu0
    %v1705 = vadd.f32 %v206, %v1704
    %1706 = vmatmul.bf16.gmra.mxu0 %v653
    %v1707 = vpop.f32.mrf.mxu0
    %v1708 = vadd.f32 %v211, %v1707
    %v1709 = vpop.f32.mrf.mxu0
    %v1710 = vadd.f32 %v216, %v1709
    %1711 = vmatmul.bf16.gmra.mxu0 %v656
    %v1712 = vpop.f32.mrf.mxu0
    %v1713 = vadd.f32 %v221, %v1712
    %v1714 = vpop.f32.mrf.mxu0
    %v1715 = vadd.f32 %v226, %v1714
    %1716 = vmatmul.bf16.gmra.mxu0 %v659
    %v1717 = vpop.f32.mrf.mxu0
    %v1718 = vadd.f32 %v231, %v1717
    %v1719 = vpop.f32.mrf.mxu0
    %v1720 = vadd.f32 %v236, %v1719
    %1721 = vmatmul.bf16.gmra.mxu0 %v662
    %v1722 = vpop.f32.mrf.mxu0
    %v1723 = vadd.f32 %v241, %v1722
    %v1724 = vpop.f32.mrf.mxu0
    %v1725 = vadd.f32 %v246, %v1724
    %1726 = vmatmul.bf16.gmra.mxu0 %v665
    %v1727 = vpop.f32.mrf.mxu0
    %v1728 = vadd.f32 %v251, %v1727
    %v1729 = vpop.f32.mrf.mxu0
    %v1730 = vadd.f32 %v256, %v1729
    %1731 = vmatmul.bf16.gmra.mxu0 %v668
    %v1732 = vpop.f32.mrf.mxu0
    %v1733 = vadd.f32 %v261, %v1732
    %v1734 = vpop.f32.mrf.mxu0
    %v1735 = vadd.f32 %v266, %v1734
    %1736 = vmatmul.bf16.gmra.mxu0 %v671
    %v1737 = vpop.f32.mrf.mxu0
    %v1738 = vadd.f32 %v271, %v1737
    %v1739 = vpop.f32.mrf.mxu0
    %v1740 = vadd.f32 %v276, %v1739
    %1741 = vmatmul.bf16.gmra.mxu0 %v674
    %v1742 = vpop.f32.mrf.mxu0
    %v1743 = vadd.f32 %v281, %v1742
    %v1744 = vpop.f32.mrf.mxu0
    %v1745 = vadd.f32 %v286, %v1744
    %1746 = vdwg.mxu0
    %v1747 = vadd.f32 %v1688, %v1718
    %v1748 = vadd.f32 %v1690, %v1720
    %v1749 = vadd.f32 %v1693, %v1723
    %v1750 = vadd.f32 %v1695, %v1725
    %v1751 = vxor.u32 %v1747, 2147483648
    %v1752 = vxor.u32 %v1748, 2147483648
    %v1753 = vxor.u32 %v1749, 2147483648
    %v1754 = vxor.u32 %v1750, 2147483648
    %v1755 = vmul.f32 %v1751, 1.442695
    %v1756 = vpow.pop %v1755
    %v1757 = vmul.f32 %v1752, 1.442695
    %v1758 = vpow.pop %v1757
    %v1759 = vmul.f32 %v1753, 1.442695
    %v1760 = vpow.pop %v1759
    %v1761 = vmul.f32 %v1754, 1.442695
    %v1762 = vpow.pop %v1761
    %v1763 = vadd.f32 %v1756, 1.0
    %v1764 = vadd.f32 %v1758, 1.0
    %v1765 = vadd.f32 %v1760, 1.0
    %v1766 = vadd.f32 %v1762, 1.0
    %v1767 = vrcp.pop %v1763
    %v1768 = vmul.f32 %v1763, %v1767
    %v1769 = vsub.f32 1.0, %v1768
    %v1770 = vmul.f32 %v1767, %v1769
    %v1771 = vadd.f32 %v1767, %v1770
    %vm1772 = vweird.f32 %v1763
    %vm1773 = vweird.f32 %v1767
    %vm1774 = vmor %vm1772, %vm1773
    %v1775 = vsel %vm1774, %v1767, %v1771
    %v1776 = vand.u32 2147483647, %v1763
    %vm1777 = vcmp.eq.f32.partialorder %v1776, 8.507059e+37
    %v1778 = vand.u32 %v1763, 2147483648
    %v1779 = vor.u32 1.1754944e-38, %v1778
    %v1780 = vsel %vm1777, %v1779, %v1775
    %v1781 = vmul.f32 1.0, %v1780
    %v1782 = vrcp.pop %v1764
    %v1783 = vmul.f32 %v1764, %v1782
    %v1784 = vsub.f32 1.0, %v1783
    %v1785 = vmul.f32 %v1782, %v1784
    %v1786 = vadd.f32 %v1782, %v1785
    %vm1787 = vweird.f32 %v1764
    %vm1788 = vweird.f32 %v1782
    %vm1789 = vmor %vm1787, %vm1788
    %v1790 = vsel %vm1789, %v1782, %v1786
    %v1791 = vand.u32 2147483647, %v1764
    %vm1792 = vcmp.eq.f32.partialorder %v1791, 8.507059e+37
    %v1793 = vand.u32 %v1764, 2147483648
    %v1794 = vor.u32 1.1754944e-38, %v1793
    %v1795 = vsel %vm1792, %v1794, %v1790
    %v1796 = vmul.f32 1.0, %v1795
    %v1797 = vrcp.pop %v1765
    %v1798 = vmul.f32 %v1765, %v1797
    %v1799 = vsub.f32 1.0, %v1798
    %v1800 = vmul.f32 %v1797, %v1799
    %v1801 = vadd.f32 %v1797, %v1800
    %vm1802 = vweird.f32 %v1765
    %vm1803 = vweird.f32 %v1797
    %vm1804 = vmor %vm1802, %vm1803
    %v1805 = vsel %vm1804, %v1797, %v1801
    %v1806 = vand.u32 2147483647, %v1765
    %vm1807 = vcmp.eq.f32.partialorder %v1806, 8.507059e+37
    %v1808 = vand.u32 %v1765, 2147483648
    %v1809 = vor.u32 1.1754944e-38, %v1808
    %v1810 = vsel %vm1807, %v1809, %v1805
    %v1811 = vmul.f32 1.0, %v1810
    %v1812 = vrcp.pop %v1766
    %v1813 = vmul.f32 %v1766, %v1812
    %v1814 = vsub.f32 1.0, %v1813
    %v1815 = vmul.f32 %v1812, %v1814
    %v1816 = vadd.f32 %v1812, %v1815
    %vm1817 = vweird.f32 %v1766
    %vm1818 = vweird.f32 %v1812
    %vm1819 = vmor %vm1817, %vm1818
    %v1820 = vsel %vm1819, %v1812, %v1816
    %v1821 = vand.u32 2147483647, %v1766
    %vm1822 = vcmp.eq.f32.partialorder %v1821, 8.507059e+37
    %v1823 = vand.u32 %v1766, 2147483648
    %v1824 = vor.u32 1.1754944e-38, %v1823
    %v1825 = vsel %vm1822, %v1824, %v1820
    %v1826 = vmul.f32 1.0, %v1825
    %v1827 = vadd.f32 %v1698, %v1728
    %v1828 = vadd.f32 %v1700, %v1730
    %v1829 = vadd.f32 %v1703, %v1733
    %v1830 = vadd.f32 %v1705, %v1735
    %v1831 = vxor.u32 %v1827, 2147483648
    %v1832 = vxor.u32 %v1828, 2147483648
    %v1833 = vxor.u32 %v1829, 2147483648
    %v1834 = vxor.u32 %v1830, 2147483648
    %v1835 = vmul.f32 %v1831, 1.442695
    %v1836 = vpow.pop %v1835
    %v1837 = vmul.f32 %v1832, 1.442695
    %v1838 = vpow.pop %v1837
    %v1839 = vmul.f32 %v1833, 1.442695
    %v1840 = vpow.pop %v1839
    %v1841 = vmul.f32 %v1834, 1.442695
    %v1842 = vpow.pop %v1841
    %v1843 = vadd.f32 %v1836, 1.0
    %v1844 = vadd.f32 %v1838, 1.0
    %v1845 = vadd.f32 %v1840, 1.0
    %v1846 = vadd.f32 %v1842, 1.0
    %v1847 = vrcp.pop %v1843
    %v1848 = vmul.f32 %v1843, %v1847
    %v1849 = vsub.f32 1.0, %v1848
    %v1850 = vmul.f32 %v1847, %v1849
    %v1851 = vadd.f32 %v1847, %v1850
    %vm1852 = vweird.f32 %v1843
    %vm1853 = vweird.f32 %v1847
    %vm1854 = vmor %vm1852, %vm1853
    %v1855 = vsel %vm1854, %v1847, %v1851
    %v1856 = vand.u32 2147483647, %v1843
    %vm1857 = vcmp.eq.f32.partialorder %v1856, 8.507059e+37
    %v1858 = vand.u32 %v1843, 2147483648
    %v1859 = vor.u32 1.1754944e-38, %v1858
    %v1860 = vsel %vm1857, %v1859, %v1855
    %v1861 = vmul.f32 1.0, %v1860
    %v1862 = vrcp.pop %v1844
    %v1863 = vmul.f32 %v1844, %v1862
    %v1864 = vsub.f32 1.0, %v1863
    %v1865 = vmul.f32 %v1862, %v1864
    %v1866 = vadd.f32 %v1862, %v1865
    %vm1867 = vweird.f32 %v1844
    %vm1868 = vweird.f32 %v1862
    %vm1869 = vmor %vm1867, %vm1868
    %v1870 = vsel %vm1869, %v1862, %v1866
    %v1871 = vand.u32 2147483647, %v1844
    %vm1872 = vcmp.eq.f32.partialorder %v1871, 8.507059e+37
    %v1873 = vand.u32 %v1844, 2147483648
    %v1874 = vor.u32 1.1754944e-38, %v1873
    %v1875 = vsel %vm1872, %v1874, %v1870
    %v1876 = vmul.f32 1.0, %v1875
    %v1877 = vrcp.pop %v1845
    %v1878 = vmul.f32 %v1845, %v1877
    %v1879 = vsub.f32 1.0, %v1878
    %v1880 = vmul.f32 %v1877, %v1879
    %v1881 = vadd.f32 %v1877, %v1880
    %vm1882 = vweird.f32 %v1845
    %vm1883 = vweird.f32 %v1877
    %vm1884 = vmor %vm1882, %vm1883
    %v1885 = vsel %vm1884, %v1877, %v1881
    %v1886 = vand.u32 2147483647, %v1845
    %vm1887 = vcmp.eq.f32.partialorder %v1886, 8.507059e+37
    %v1888 = vand.u32 %v1845, 2147483648
    %v1889 = vor.u32 1.1754944e-38, %v1888
    %v1890 = vsel %vm1887, %v1889, %v1885
    %v1891 = vmul.f32 1.0, %v1890
    %v1892 = vrcp.pop %v1846
    %v1893 = vmul.f32 %v1846, %v1892
    %v1894 = vsub.f32 1.0, %v1893
    %v1895 = vmul.f32 %v1892, %v1894
    %v1896 = vadd.f32 %v1892, %v1895
    %vm1897 = vweird.f32 %v1846
    %vm1898 = vweird.f32 %v1892
    %vm1899 = vmor %vm1897, %vm1898
    %v1900 = vsel %vm1899, %v1892, %v1896
    %v1901 = vand.u32 2147483647, %v1846
    %vm1902 = vcmp.eq.f32.partialorder %v1901, 8.507059e+37
    %v1903 = vand.u32 %v1846, 2147483648
    %v1904 = vor.u32 1.1754944e-38, %v1903
    %v1905 = vsel %vm1902, %v1904, %v1900
    %v1906 = vmul.f32 1.0, %v1905
    %v1907 = vmul.f32 %v1781, %v1738
    %v1908 = vmul.f32 %v1796, %v1740
    %v1909 = vmul.f32 %v1811, %v1743
    %v1910 = vmul.f32 %v1826, %v1745
    %v1911 = vadd.f32 %v1708, %v1907
    %v1912 = vadd.f32 %v1710, %v1908
    %v1913 = vadd.f32 %v1713, %v1909
    %v1914 = vadd.f32 %v1715, %v1910
    %v1915 = vtanh.pop %v1911
    %v1916 = vtanh.pop %v1912
    %v1917 = vtanh.pop %v1913
    %v1918 = vtanh.pop %v1914
    %v1919 = vsub.f32 1.0, %v1861
    %v1920 = vsub.f32 1.0, %v1876
    %v1921 = vsub.f32 1.0, %v1891
    %v1922 = vsub.f32 1.0, %v1906
    %v1923 = vmul.f32 %v1919, %v1915
    %v1924 = vmul.f32 %v1920, %v1916
    %v1925 = vmul.f32 %v1921, %v1917
    %v1926 = vmul.f32 %v1922, %v1918
    %v1927 = vmul.f32 %v1861, %v1430
    %v1928 = vmul.f32 %v1876, %v1431
    %v1929 = vmul.f32 %v1891, %v1432
    %v1930 = vmul.f32 %v1906, %v1433
    %v1931 = vadd.f32 %v1923, %v1927
    %v1932 = vadd.f32 %v1924, %v1928
    %v1933 = vadd.f32 %v1925, %v1929
    %v1934 = vadd.f32 %v1926, %v1930
    %1935 = vmatpush.bf16.msra.mxu0 0
    %1936 = vmatpush.bf16.msra.mxu0 0
    %1937 = vmatpush.bf16.msra.mxu0 0
    %1938 = vmatpush.bf16.msra.mxu0 0
    %1939 = vmatpush.bf16.msra.mxu0 0
    %1940 = vmatpush.bf16.msra.mxu0 0
    %1941 = vmatpush.bf16.msra.mxu0 %v1675
    %1942 = vmatpush.bf16.msra.mxu0 %v1674
    %1943 = vmatmul.bf16.gmra.mxu0 %v320
    %v1944 = vpop.f32.mrf.mxu0
    %v1945 = vadd.f32 %v87, %v1944
    %v1946 = vpop.f32.mrf.mxu0
    %v1947 = vadd.f32 %v92, %v1946
    %1948 = vmatmul.bf16.gmra.mxu0 %v323
    %v1949 = vpop.f32.mrf.mxu0
    %v1950 = vadd.f32 %v97, %v1949
    %v1951 = vpop.f32.mrf.mxu0
    %v1952 = vadd.f32 %v102, %v1951
    %1953 = vmatmul.bf16.gmra.mxu0 %v326
    %v1954 = vpop.f32.mrf.mxu0
    %v1955 = vadd.f32 %v107, %v1954
    %v1956 = vpop.f32.mrf.mxu0
    %v1957 = vadd.f32 %v112, %v1956
    %1958 = vmatmul.bf16.gmra.mxu0 %v329
    %v1959 = vpop.f32.mrf.mxu0
    %v1960 = vadd.f32 %v117, %v1959
    %v1961 = vpop.f32.mrf.mxu0
    %v1962 = vadd.f32 %v122, %v1961
    %1963 = vmatmul.bf16.gmra.mxu0 %v332
    %v1964 = vpop.f32.mrf.mxu0
    %v1965 = vadd.f32 %v127, %v1964
    %v1966 = vpop.f32.mrf.mxu0
    %v1967 = vadd.f32 %v132, %v1966
    %1968 = vmatmul.bf16.gmra.mxu0 %v335
    %v1969 = vpop.f32.mrf.mxu0
    %v1970 = vadd.f32 %v137, %v1969
    %v1971 = vpop.f32.mrf.mxu0
    %v1972 = vadd.f32 %v142, %v1971
    %1973 = vdwg.mxu0
    %s1974 = scalar_lea.vmem %s0, 288
    %v1975 = vld [vmem:[%s1974] sm:$0xff]
    %v1976 = vld [vmem:[%s1974 + $0x8] sm:$0xff]
    %v1977 = vld [vmem:[%s1974 + $0x10] sm:$0xff]
    %v1978 = vld [vmem:[%s1974 + $0x18] sm:$0xff]
    %v1979 = vld [vmem:[%s1974 + $0x20] sm:$0xff]
    %v1980 = vld [vmem:[%s1974 + $0x28] sm:$0xff]
    %v1981 = vld [vmem:[%s1974 + $0x30] sm:$0xff]
    %v1982 = vld [vmem:[%s1974 + $0x38] sm:$0xff]
    %v1983 = vld [vmem:[%s1974 + $0x40] sm:$0xff]
    %v1984 = vld [vmem:[%s1974 + $0x48] sm:$0xff]
    %v1985 = vld [vmem:[%s1974 + $0x50] sm:$0xff]
    %v1986 = vld [vmem:[%s1974 + $0x58] sm:$0xff]
    %v1987 = vadd.f32 %v1975, %v1945
    %v1988 = vadd.f32 %v1976, %v1947
    %v1989 = vadd.f32 %v1977, %v1950
    %v1990 = vadd.f32 %v1978, %v1952
    %v1991 = vxor.u32 %v1987, 2147483648
    %v1992 = vxor.u32 %v1988, 2147483648
    %v1993 = vxor.u32 %v1989, 2147483648
    %v1994 = vxor.u32 %v1990, 2147483648
    %v1995 = vmul.f32 %v1991, 1.442695
    %v1996 = vpow.pop %v1995
    %v1997 = vmul.f32 %v1992, 1.442695
    %v1998 = vpow.pop %v1997
    %v1999 = vmul.f32 %v1993, 1.442695
    %v2000 = vpow.pop %v1999
    %v2001 = vmul.f32 %v1994, 1.442695
    %v2002 = vpow.pop %v2001
    %v2003 = vadd.f32 %v1996, 1.0
    %v2004 = vadd.f32 %v1998, 1.0
    %v2005 = vadd.f32 %v2000, 1.0
    %v2006 = vadd.f32 %v2002, 1.0
    %v2007 = vrcp.pop %v2003
    %v2008 = vmul.f32 %v2003, %v2007
    %v2009 = vsub.f32 1.0, %v2008
    %v2010 = vmul.f32 %v2007, %v2009
    %v2011 = vadd.f32 %v2007, %v2010
    %vm2012 = vweird.f32 %v2003
    %vm2013 = vweird.f32 %v2007
    %vm2014 = vmor %vm2012, %vm2013
    %v2015 = vsel %vm2014, %v2007, %v2011
    %v2016 = vand.u32 2147483647, %v2003
    %vm2017 = vcmp.eq.f32.partialorder %v2016, 8.507059e+37
    %v2018 = vand.u32 %v2003, 2147483648
    %v2019 = vor.u32 1.1754944e-38, %v2018
    %v2020 = vsel %vm2017, %v2019, %v2015
    %v2021 = vmul.f32 1.0, %v2020
    %v2022 = vrcp.pop %v2004
    %v2023 = vmul.f32 %v2004, %v2022
    %v2024 = vsub.f32 1.0, %v2023
    %v2025 = vmul.f32 %v2022, %v2024
    %v2026 = vadd.f32 %v2022, %v2025
    %vm2027 = vweird.f32 %v2004
    %vm2028 = vweird.f32 %v2022
    %vm2029 = vmor %vm2027, %vm2028
    %v2030 = vsel %vm2029, %v2022, %v2026
    %v2031 = vand.u32 2147483647, %v2004
    %vm2032 = vcmp.eq.f32.partialorder %v2031, 8.507059e+37
    %v2033 = vand.u32 %v2004, 2147483648
    %v2034 = vor.u32 1.1754944e-38, %v2033
    %v2035 = vsel %vm2032, %v2034, %v2030
    %v2036 = vmul.f32 1.0, %v2035
    %v2037 = vrcp.pop %v2005
    %v2038 = vmul.f32 %v2005, %v2037
    %v2039 = vsub.f32 1.0, %v2038
    %v2040 = vmul.f32 %v2037, %v2039
    %v2041 = vadd.f32 %v2037, %v2040
    %vm2042 = vweird.f32 %v2005
    %vm2043 = vweird.f32 %v2037
    %vm2044 = vmor %vm2042, %vm2043
    %v2045 = vsel %vm2044, %v2037, %v2041
    %v2046 = vand.u32 2147483647, %v2005
    %vm2047 = vcmp.eq.f32.partialorder %v2046, 8.507059e+37
    %v2048 = vand.u32 %v2005, 2147483648
    %v2049 = vor.u32 1.1754944e-38, %v2048
    %v2050 = vsel %vm2047, %v2049, %v2045
    %v2051 = vmul.f32 1.0, %v2050
    %v2052 = vrcp.pop %v2006
    %v2053 = vmul.f32 %v2006, %v2052
    %v2054 = vsub.f32 1.0, %v2053
    %v2055 = vmul.f32 %v2052, %v2054
    %v2056 = vadd.f32 %v2052, %v2055
    %vm2057 = vweird.f32 %v2006
    %vm2058 = vweird.f32 %v2052
    %vm2059 = vmor %vm2057, %vm2058
    %v2060 = vsel %vm2059, %v2052, %v2056
    %v2061 = vand.u32 2147483647, %v2006
    %vm2062 = vcmp.eq.f32.partialorder %v2061, 8.507059e+37
    %v2063 = vand.u32 %v2006, 2147483648
    %v2064 = vor.u32 1.1754944e-38, %v2063
    %v2065 = vsel %vm2062, %v2064, %v2060
    %v2066 = vmul.f32 1.0, %v2065
    %v2067 = vadd.f32 %v1979, %v1955
    %v2068 = vadd.f32 %v1980, %v1957
    %v2069 = vadd.f32 %v1981, %v1960
    %v2070 = vadd.f32 %v1982, %v1962
    %v2071 = vxor.u32 %v2067, 2147483648
    %v2072 = vxor.u32 %v2068, 2147483648
    %v2073 = vxor.u32 %v2069, 2147483648
    %v2074 = vxor.u32 %v2070, 2147483648
    %v2075 = vmul.f32 %v2071, 1.442695
    %v2076 = vpow.pop %v2075
    %v2077 = vmul.f32 %v2072, 1.442695
    %v2078 = vpow.pop %v2077
    %v2079 = vmul.f32 %v2073, 1.442695
    %v2080 = vpow.pop %v2079
    %v2081 = vmul.f32 %v2074, 1.442695
    %v2082 = vpow.pop %v2081
    %v2083 = vadd.f32 %v2076, 1.0
    %v2084 = vadd.f32 %v2078, 1.0
    %v2085 = vadd.f32 %v2080, 1.0
    %v2086 = vadd.f32 %v2082, 1.0
    %v2087 = vrcp.pop %v2083
    %v2088 = vmul.f32 %v2083, %v2087
    %v2089 = vsub.f32 1.0, %v2088
    %v2090 = vmul.f32 %v2087, %v2089
    %v2091 = vadd.f32 %v2087, %v2090
    %vm2092 = vweird.f32 %v2083
    %vm2093 = vweird.f32 %v2087
    %vm2094 = vmor %vm2092, %vm2093
    %v2095 = vsel %vm2094, %v2087, %v2091
    %v2096 = vand.u32 2147483647, %v2083
    %vm2097 = vcmp.eq.f32.partialorder %v2096, 8.507059e+37
    %v2098 = vand.u32 %v2083, 2147483648
    %v2099 = vor.u32 1.1754944e-38, %v2098
    %v2100 = vsel %vm2097, %v2099, %v2095
    %v2101 = vmul.f32 1.0, %v2100
    %v2102 = vrcp.pop %v2084
    %v2103 = vmul.f32 %v2084, %v2102
    %v2104 = vsub.f32 1.0, %v2103
    %v2105 = vmul.f32 %v2102, %v2104
    %v2106 = vadd.f32 %v2102, %v2105
    %vm2107 = vweird.f32 %v2084
    %vm2108 = vweird.f32 %v2102
    %vm2109 = vmor %vm2107, %vm2108
    %v2110 = vsel %vm2109, %v2102, %v2106
    %v2111 = vand.u32 2147483647, %v2084
    %vm2112 = vcmp.eq.f32.partialorder %v2111, 8.507059e+37
    %v2113 = vand.u32 %v2084, 2147483648
    %v2114 = vor.u32 1.1754944e-38, %v2113
    %v2115 = vsel %vm2112, %v2114, %v2110
    %v2116 = vmul.f32 1.0, %v2115
    %v2117 = vrcp.pop %v2085
    %v2118 = vmul.f32 %v2085, %v2117
    %v2119 = vsub.f32 1.0, %v2118
    %v2120 = vmul.f32 %v2117, %v2119
    %v2121 = vadd.f32 %v2117, %v2120
    %vm2122 = vweird.f32 %v2085
    %vm2123 = vweird.f32 %v2117
    %vm2124 = vmor %vm2122, %vm2123
    %v2125 = vsel %vm2124, %v2117, %v2121
    %v2126 = vand.u32 2147483647, %v2085
    %vm2127 = vcmp.eq.f32.partialorder %v2126, 8.507059e+37
    %v2128 = vand.u32 %v2085, 2147483648
    %v2129 = vor.u32 1.1754944e-38, %v2128
    %v2130 = vsel %vm2127, %v2129, %v2125
    %v2131 = vmul.f32 1.0, %v2130
    %v2132 = vrcp.pop %v2086
    %v2133 = vmul.f32 %v2086, %v2132
    %v2134 = vsub.f32 1.0, %v2133
    %v2135 = vmul.f32 %v2132, %v2134
    %v2136 = vadd.f32 %v2132, %v2135
    %vm2137 = vweird.f32 %v2086
    %vm2138 = vweird.f32 %v2132
    %vm2139 = vmor %vm2137, %vm2138
    %v2140 = vsel %vm2139, %v2132, %v2136
    %v2141 = vand.u32 2147483647, %v2086
    %vm2142 = vcmp.eq.f32.partialorder %v2141, 8.507059e+37
    %v2143 = vand.u32 %v2086, 2147483648
    %v2144 = vor.u32 1.1754944e-38, %v2143
    %v2145 = vsel %vm2142, %v2144, %v2140
    %v2146 = vmul.f32 1.0, %v2145
    %v2147 = vmul.f32 %v2021, %v1965
    %v2148 = vmul.f32 %v2036, %v1967
    %v2149 = vmul.f32 %v2051, %v1970
    %v2150 = vmul.f32 %v2066, %v1972
    %v2151 = vadd.f32 %v1983, %v2147
    %v2152 = vadd.f32 %v1984, %v2148
    %v2153 = vadd.f32 %v1985, %v2149
    %v2154 = vadd.f32 %v1986, %v2150
    %v2155 = vtanh.pop %v2151
    %v2156 = vtanh.pop %v2152
    %v2157 = vtanh.pop %v2153
    %v2158 = vtanh.pop %v2154
    %v2159 = vsub.f32 1.0, %v2101
    %v2160 = vsub.f32 1.0, %v2116
    %v2161 = vsub.f32 1.0, %v2131
    %v2162 = vsub.f32 1.0, %v2146
    %v2163 = vmul.f32 %v2159, %v2155
    %v2164 = vmul.f32 %v2160, %v2156
    %v2165 = vmul.f32 %v2161, %v2157
    %v2166 = vmul.f32 %v2162, %v2158
    %v2167 = vmul.f32 %v2101, %v1670
    %v2168 = vmul.f32 %v2116, %v1671
    %v2169 = vmul.f32 %v2131, %v1672
    %v2170 = vmul.f32 %v2146, %v1673
    %v2171 = vadd.f32 %v2163, %v2167
    %v2172 = vadd.f32 %v2164, %v2168
    %v2173 = vadd.f32 %v2165, %v2169
    %v2174 = vadd.f32 %v2166, %v2170
    %v2175 = vpack.c.bf16 %v2172, %v2171
    %v2176 = vpack.c.bf16 %v2174, %v2173
    %v2177 = vpack.c.bf16 %v1932, %v1931
    %v2178 = vpack.c.bf16 %v1934, %v1933
    %2179 = vmatpush.bf16.msra.mxu0 0
    %2180 = vmatpush.bf16.msra.mxu0 0
    %2181 = vmatpush.bf16.msra.mxu0 0
    %2182 = vmatpush.bf16.msra.mxu0 0
    %2183 = vmatpush.bf16.msra.mxu0 %v2178
    %2184 = vmatpush.bf16.msra.mxu0 %v2177
    %2185 = vmatpush.bf16.msra.mxu0 %v2176
    %2186 = vmatpush.bf16.msra.mxu0 %v2175
    %2187 = vmatmul.bf16.gmra.mxu0 %v641
    %v2188 = vpop.f32.mrf.mxu0
    %v2189 = vadd.f32 %v171, %v2188
    %v2190 = vpop.f32.mrf.mxu0
    %v2191 = vadd.f32 %v176, %v2190
    %2192 = vmatmul.bf16.gmra.mxu0 %v644
    %v2193 = vpop.f32.mrf.mxu0
    %v2194 = vadd.f32 %v181, %v2193
    %v2195 = vpop.f32.mrf.mxu0
    %v2196 = vadd.f32 %v186, %v2195
    %2197 = vmatmul.bf16.gmra.mxu0 %v647
    %v2198 = vpop.f32.mrf.mxu0
    %v2199 = vadd.f32 %v191, %v2198
    %v2200 = vpop.f32.mrf.mxu0
    %v2201 = vadd.f32 %v196, %v2200
    %2202 = vmatmul.bf16.gmra.mxu0 %v650
    %v2203 = vpop.f32.mrf.mxu0
    %v2204 = vadd.f32 %v201, %v2203
    %v2205 = vpop.f32.mrf.mxu0
    %v2206 = vadd.f32 %v206, %v2205
    %2207 = vmatmul.bf16.gmra.mxu0 %v653
    %v2208 = vpop.f32.mrf.mxu0
    %v2209 = vadd.f32 %v211, %v2208
    %v2210 = vpop.f32.mrf.mxu0
    %v2211 = vadd.f32 %v216, %v2210
    %2212 = vmatmul.bf16.gmra.mxu0 %v656
    %v2213 = vpop.f32.mrf.mxu0
    %v2214 = vadd.f32 %v221, %v2213
    %v2215 = vpop.f32.mrf.mxu0
    %v2216 = vadd.f32 %v226, %v2215
    %2217 = vmatmul.bf16.gmra.mxu0 %v659
    %v2218 = vpop.f32.mrf.mxu0
    %v2219 = vadd.f32 %v231, %v2218
    %v2220 = vpop.f32.mrf.mxu0
    %v2221 = vadd.f32 %v236, %v2220
    %2222 = vmatmul.bf16.gmra.mxu0 %v662
    %v2223 = vpop.f32.mrf.mxu0
    %v2224 = vadd.f32 %v241, %v2223
    %v2225 = vpop.f32.mrf.mxu0
    %v2226 = vadd.f32 %v246, %v2225
    %2227 = vmatmul.bf16.gmra.mxu0 %v665
    %v2228 = vpop.f32.mrf.mxu0
    %v2229 = vadd.f32 %v251, %v2228
    %v2230 = vpop.f32.mrf.mxu0
    %v2231 = vadd.f32 %v256, %v2230
    %2232 = vmatmul.bf16.gmra.mxu0 %v668
    %v2233 = vpop.f32.mrf.mxu0
    %v2234 = vadd.f32 %v261, %v2233
    %v2235 = vpop.f32.mrf.mxu0
    %v2236 = vadd.f32 %v266, %v2235
    %2237 = vmatmul.bf16.gmra.mxu0 %v671
    %v2238 = vpop.f32.mrf.mxu0
    %v2239 = vadd.f32 %v271, %v2238
    %v2240 = vpop.f32.mrf.mxu0
    %v2241 = vadd.f32 %v276, %v2240
    %2242 = vmatmul.bf16.gmra.mxu0 %v674
    %v2243 = vpop.f32.mrf.mxu0
    %v2244 = vadd.f32 %v281, %v2243
    %v2245 = vpop.f32.mrf.mxu0
    %v2246 = vadd.f32 %v286, %v2245
    %2247 = vdwg.mxu0
    %v2248 = vadd.f32 %v2189, %v2219
    %v2249 = vadd.f32 %v2191, %v2221
    %v2250 = vadd.f32 %v2194, %v2224
    %v2251 = vadd.f32 %v2196, %v2226
    %v2252 = vxor.u32 %v2248, 2147483648
    %v2253 = vxor.u32 %v2249, 2147483648
    %v2254 = vxor.u32 %v2250, 2147483648
    %v2255 = vxor.u32 %v2251, 2147483648
    %v2256 = vmul.f32 %v2252, 1.442695
    %v2257 = vpow.pop %v2256
    %v2258 = vmul.f32 %v2253, 1.442695
    %v2259 = vpow.pop %v2258
    %v2260 = vmul.f32 %v2254, 1.442695
    %v2261 = vpow.pop %v2260
    %v2262 = vmul.f32 %v2255, 1.442695
    %v2263 = vpow.pop %v2262
    %v2264 = vadd.f32 %v2257, 1.0
    %v2265 = vadd.f32 %v2259, 1.0
    %v2266 = vadd.f32 %v2261, 1.0
    %v2267 = vadd.f32 %v2263, 1.0
    %v2268 = vrcp.pop %v2264
    %v2269 = vmul.f32 %v2264, %v2268
    %v2270 = vsub.f32 1.0, %v2269
    %v2271 = vmul.f32 %v2268, %v2270
    %v2272 = vadd.f32 %v2268, %v2271
    %vm2273 = vweird.f32 %v2264
    %vm2274 = vweird.f32 %v2268
    %vm2275 = vmor %vm2273, %vm2274
    %v2276 = vsel %vm2275, %v2268, %v2272
    %v2277 = vand.u32 2147483647, %v2264
    %vm2278 = vcmp.eq.f32.partialorder %v2277, 8.507059e+37
    %v2279 = vand.u32 %v2264, 2147483648
    %v2280 = vor.u32 1.1754944e-38, %v2279
    %v2281 = vsel %vm2278, %v2280, %v2276
    %v2282 = vmul.f32 1.0, %v2281
    %v2283 = vrcp.pop %v2265
    %v2284 = vmul.f32 %v2265, %v2283
    %v2285 = vsub.f32 1.0, %v2284
    %v2286 = vmul.f32 %v2283, %v2285
    %v2287 = vadd.f32 %v2283, %v2286
    %vm2288 = vweird.f32 %v2265
    %vm2289 = vweird.f32 %v2283
    %vm2290 = vmor %vm2288, %vm2289
    %v2291 = vsel %vm2290, %v2283, %v2287
    %v2292 = vand.u32 2147483647, %v2265
    %vm2293 = vcmp.eq.f32.partialorder %v2292, 8.507059e+37
    %v2294 = vand.u32 %v2265, 2147483648
    %v2295 = vor.u32 1.1754944e-38, %v2294
    %v2296 = vsel %vm2293, %v2295, %v2291
    %v2297 = vmul.f32 1.0, %v2296
    %v2298 = vrcp.pop %v2266
    %v2299 = vmul.f32 %v2266, %v2298
    %v2300 = vsub.f32 1.0, %v2299
    %v2301 = vmul.f32 %v2298, %v2300
    %v2302 = vadd.f32 %v2298, %v2301
    %vm2303 = vweird.f32 %v2266
    %vm2304 = vweird.f32 %v2298
    %vm2305 = vmor %vm2303, %vm2304
    %v2306 = vsel %vm2305, %v2298, %v2302
    %v2307 = vand.u32 2147483647, %v2266
    %vm2308 = vcmp.eq.f32.partialorder %v2307, 8.507059e+37
    %v2309 = vand.u32 %v2266, 2147483648
    %v2310 = vor.u32 1.1754944e-38, %v2309
    %v2311 = vsel %vm2308, %v2310, %v2306
    %v2312 = vmul.f32 1.0, %v2311
    %v2313 = vrcp.pop %v2267
    %v2314 = vmul.f32 %v2267, %v2313
    %v2315 = vsub.f32 1.0, %v2314
    %v2316 = vmul.f32 %v2313, %v2315
    %v2317 = vadd.f32 %v2313, %v2316
    %vm2318 = vweird.f32 %v2267
    %vm2319 = vweird.f32 %v2313
    %vm2320 = vmor %vm2318, %vm2319
    %v2321 = vsel %vm2320, %v2313, %v2317
    %v2322 = vand.u32 2147483647, %v2267
    %vm2323 = vcmp.eq.f32.partialorder %v2322, 8.507059e+37
    %v2324 = vand.u32 %v2267, 2147483648
    %v2325 = vor.u32 1.1754944e-38, %v2324
    %v2326 = vsel %vm2323, %v2325, %v2321
    %v2327 = vmul.f32 1.0, %v2326
    %v2328 = vadd.f32 %v2199, %v2229
    %v2329 = vadd.f32 %v2201, %v2231
    %v2330 = vadd.f32 %v2204, %v2234
    %v2331 = vadd.f32 %v2206, %v2236
    %v2332 = vxor.u32 %v2328, 2147483648
    %v2333 = vxor.u32 %v2329, 2147483648
    %v2334 = vxor.u32 %v2330, 2147483648
    %v2335 = vxor.u32 %v2331, 2147483648
    %v2336 = vmul.f32 %v2332, 1.442695
    %v2337 = vpow.pop %v2336
    %v2338 = vmul.f32 %v2333, 1.442695
    %v2339 = vpow.pop %v2338
    %v2340 = vmul.f32 %v2334, 1.442695
    %v2341 = vpow.pop %v2340
    %v2342 = vmul.f32 %v2335, 1.442695
    %v2343 = vpow.pop %v2342
    %v2344 = vadd.f32 %v2337, 1.0
    %v2345 = vadd.f32 %v2339, 1.0
    %v2346 = vadd.f32 %v2341, 1.0
    %v2347 = vadd.f32 %v2343, 1.0
    %v2348 = vrcp.pop %v2344
    %v2349 = vmul.f32 %v2344, %v2348
    %v2350 = vsub.f32 1.0, %v2349
    %v2351 = vmul.f32 %v2348, %v2350
    %v2352 = vadd.f32 %v2348, %v2351
    %vm2353 = vweird.f32 %v2344
    %vm2354 = vweird.f32 %v2348
    %vm2355 = vmor %vm2353, %vm2354
    %v2356 = vsel %vm2355, %v2348, %v2352
    %v2357 = vand.u32 2147483647, %v2344
    %vm2358 = vcmp.eq.f32.partialorder %v2357, 8.507059e+37
    %v2359 = vand.u32 %v2344, 2147483648
    %v2360 = vor.u32 1.1754944e-38, %v2359
    %v2361 = vsel %vm2358, %v2360, %v2356
    %v2362 = vmul.f32 1.0, %v2361
    %v2363 = vrcp.pop %v2345
    %v2364 = vmul.f32 %v2345, %v2363
    %v2365 = vsub.f32 1.0, %v2364
    %v2366 = vmul.f32 %v2363, %v2365
    %v2367 = vadd.f32 %v2363, %v2366
    %vm2368 = vweird.f32 %v2345
    %vm2369 = vweird.f32 %v2363
    %vm2370 = vmor %vm2368, %vm2369
    %v2371 = vsel %vm2370, %v2363, %v2367
    %v2372 = vand.u32 2147483647, %v2345
    %vm2373 = vcmp.eq.f32.partialorder %v2372, 8.507059e+37
    %v2374 = vand.u32 %v2345, 2147483648
    %v2375 = vor.u32 1.1754944e-38, %v2374
    %v2376 = vsel %vm2373, %v2375, %v2371
    %v2377 = vmul.f32 1.0, %v2376
    %v2378 = vrcp.pop %v2346
    %v2379 = vmul.f32 %v2346, %v2378
    %v2380 = vsub.f32 1.0, %v2379
    %v2381 = vmul.f32 %v2378, %v2380
    %v2382 = vadd.f32 %v2378, %v2381
    %vm2383 = vweird.f32 %v2346
    %vm2384 = vweird.f32 %v2378
    %vm2385 = vmor %vm2383, %vm2384
    %v2386 = vsel %vm2385, %v2378, %v2382
    %v2387 = vand.u32 2147483647, %v2346
    %vm2388 = vcmp.eq.f32.partialorder %v2387, 8.507059e+37
    %v2389 = vand.u32 %v2346, 2147483648
    %v2390 = vor.u32 1.1754944e-38, %v2389
    %v2391 = vsel %vm2388, %v2390, %v2386
    %v2392 = vmul.f32 1.0, %v2391
    %v2393 = vrcp.pop %v2347
    %v2394 = vmul.f32 %v2347, %v2393
    %v2395 = vsub.f32 1.0, %v2394
    %v2396 = vmul.f32 %v2393, %v2395
    %v2397 = vadd.f32 %v2393, %v2396
    %vm2398 = vweird.f32 %v2347
    %vm2399 = vweird.f32 %v2393
    %vm2400 = vmor %vm2398, %vm2399
    %v2401 = vsel %vm2400, %v2393, %v2397
    %v2402 = vand.u32 2147483647, %v2347
    %vm2403 = vcmp.eq.f32.partialorder %v2402, 8.507059e+37
    %v2404 = vand.u32 %v2347, 2147483648
    %v2405 = vor.u32 1.1754944e-38, %v2404
    %v2406 = vsel %vm2403, %v2405, %v2401
    %v2407 = vmul.f32 1.0, %v2406
    %v2408 = vmul.f32 %v2282, %v2239
    %v2409 = vmul.f32 %v2297, %v2241
    %v2410 = vmul.f32 %v2312, %v2244
    %v2411 = vmul.f32 %v2327, %v2246
    %v2412 = vadd.f32 %v2209, %v2408
    %v2413 = vadd.f32 %v2211, %v2409
    %v2414 = vadd.f32 %v2214, %v2410
    %v2415 = vadd.f32 %v2216, %v2411
    %v2416 = vtanh.pop %v2412
    %v2417 = vtanh.pop %v2413
    %v2418 = vtanh.pop %v2414
    %v2419 = vtanh.pop %v2415
    %v2420 = vsub.f32 1.0, %v2362
    %v2421 = vsub.f32 1.0, %v2377
    %v2422 = vsub.f32 1.0, %v2392
    %v2423 = vsub.f32 1.0, %v2407
    %v2424 = vmul.f32 %v2420, %v2416
    %v2425 = vmul.f32 %v2421, %v2417
    %v2426 = vmul.f32 %v2422, %v2418
    %v2427 = vmul.f32 %v2423, %v2419
    %v2428 = vmul.f32 %v2362, %v1931
    %v2429 = vmul.f32 %v2377, %v1932
    %v2430 = vmul.f32 %v2392, %v1933
    %v2431 = vmul.f32 %v2407, %v1934
    %v2432 = vadd.f32 %v2424, %v2428
    %v2433 = vadd.f32 %v2425, %v2429
    %v2434 = vadd.f32 %v2426, %v2430
    %v2435 = vadd.f32 %v2427, %v2431
    %2436 = vmatpush.bf16.msra.mxu0 0
    %2437 = vmatpush.bf16.msra.mxu0 0
    %2438 = vmatpush.bf16.msra.mxu0 0
    %2439 = vmatpush.bf16.msra.mxu0 0
    %2440 = vmatpush.bf16.msra.mxu0 0
    %2441 = vmatpush.bf16.msra.mxu0 0
    %2442 = vmatpush.bf16.msra.mxu0 %v2176
    %2443 = vmatpush.bf16.msra.mxu0 %v2175
    %2444 = vmatmul.bf16.gmra.mxu0 %v320
    %v2445 = vpop.f32.mrf.mxu0
    %v2446 = vadd.f32 %v87, %v2445
    %v2447 = vpop.f32.mrf.mxu0
    %v2448 = vadd.f32 %v92, %v2447
    %2449 = vmatmul.bf16.gmra.mxu0 %v323
    %v2450 = vpop.f32.mrf.mxu0
    %v2451 = vadd.f32 %v97, %v2450
    %v2452 = vpop.f32.mrf.mxu0
    %v2453 = vadd.f32 %v102, %v2452
    %2454 = vmatmul.bf16.gmra.mxu0 %v326
    %v2455 = vpop.f32.mrf.mxu0
    %v2456 = vadd.f32 %v107, %v2455
    %v2457 = vpop.f32.mrf.mxu0
    %v2458 = vadd.f32 %v112, %v2457
    %2459 = vmatmul.bf16.gmra.mxu0 %v329
    %v2460 = vpop.f32.mrf.mxu0
    %v2461 = vadd.f32 %v117, %v2460
    %v2462 = vpop.f32.mrf.mxu0
    %v2463 = vadd.f32 %v122, %v2462
    %2464 = vmatmul.bf16.gmra.mxu0 %v332
    %v2465 = vpop.f32.mrf.mxu0
    %v2466 = vadd.f32 %v127, %v2465
    %v2467 = vpop.f32.mrf.mxu0
    %v2468 = vadd.f32 %v132, %v2467
    %2469 = vmatmul.bf16.gmra.mxu0 %v335
    %v2470 = vpop.f32.mrf.mxu0
    %v2471 = vadd.f32 %v137, %v2470
    %v2472 = vpop.f32.mrf.mxu0
    %v2473 = vadd.f32 %v142, %v2472
    %2474 = vdwg.mxu0
    %s2475 = scalar_lea.vmem %s0, 384
    %v2476 = vld [vmem:[%s2475] sm:$0xff]
    %v2477 = vld [vmem:[%s2475 + $0x8] sm:$0xff]
    %v2478 = vld [vmem:[%s2475 + $0x10] sm:$0xff]
    %v2479 = vld [vmem:[%s2475 + $0x18] sm:$0xff]
    %v2480 = vld [vmem:[%s2475 + $0x20] sm:$0xff]
    %v2481 = vld [vmem:[%s2475 + $0x28] sm:$0xff]
    %v2482 = vld [vmem:[%s2475 + $0x30] sm:$0xff]
    %v2483 = vld [vmem:[%s2475 + $0x38] sm:$0xff]
    %v2484 = vld [vmem:[%s2475 + $0x40] sm:$0xff]
    %v2485 = vld [vmem:[%s2475 + $0x48] sm:$0xff]
    %v2486 = vld [vmem:[%s2475 + $0x50] sm:$0xff]
    %v2487 = vld [vmem:[%s2475 + $0x58] sm:$0xff]
    %v2488 = vadd.f32 %v2476, %v2446
    %v2489 = vadd.f32 %v2477, %v2448
    %v2490 = vadd.f32 %v2478, %v2451
    %v2491 = vadd.f32 %v2479, %v2453
    %v2492 = vxor.u32 %v2488, 2147483648
    %v2493 = vxor.u32 %v2489, 2147483648
    %v2494 = vxor.u32 %v2490, 2147483648
    %v2495 = vxor.u32 %v2491, 2147483648
    %v2496 = vmul.f32 %v2492, 1.442695
    %v2497 = vpow.pop %v2496
    %v2498 = vmul.f32 %v2493, 1.442695
    %v2499 = vpow.pop %v2498
    %v2500 = vmul.f32 %v2494, 1.442695
    %v2501 = vpow.pop %v2500
    %v2502 = vmul.f32 %v2495, 1.442695
    %v2503 = vpow.pop %v2502
    %v2504 = vadd.f32 %v2497, 1.0
    %v2505 = vadd.f32 %v2499, 1.0
    %v2506 = vadd.f32 %v2501, 1.0
    %v2507 = vadd.f32 %v2503, 1.0
    %v2508 = vrcp.pop %v2504
    %v2509 = vmul.f32 %v2504, %v2508
    %v2510 = vsub.f32 1.0, %v2509
    %v2511 = vmul.f32 %v2508, %v2510
    %v2512 = vadd.f32 %v2508, %v2511
    %vm2513 = vweird.f32 %v2504
    %vm2514 = vweird.f32 %v2508
    %vm2515 = vmor %vm2513, %vm2514
    %v2516 = vsel %vm2515, %v2508, %v2512
    %v2517 = vand.u32 2147483647, %v2504
    %vm2518 = vcmp.eq.f32.partialorder %v2517, 8.507059e+37
    %v2519 = vand.u32 %v2504, 2147483648
    %v2520 = vor.u32 1.1754944e-38, %v2519
    %v2521 = vsel %vm2518, %v2520, %v2516
    %v2522 = vmul.f32 1.0, %v2521
    %v2523 = vrcp.pop %v2505
    %v2524 = vmul.f32 %v2505, %v2523
    %v2525 = vsub.f32 1.0, %v2524
    %v2526 = vmul.f32 %v2523, %v2525
    %v2527 = vadd.f32 %v2523, %v2526
    %vm2528 = vweird.f32 %v2505
    %vm2529 = vweird.f32 %v2523
    %vm2530 = vmor %vm2528, %vm2529
    %v2531 = vsel %vm2530, %v2523, %v2527
    %v2532 = vand.u32 2147483647, %v2505
    %vm2533 = vcmp.eq.f32.partialorder %v2532, 8.507059e+37
    %v2534 = vand.u32 %v2505, 2147483648
    %v2535 = vor.u32 1.1754944e-38, %v2534
    %v2536 = vsel %vm2533, %v2535, %v2531
    %v2537 = vmul.f32 1.0, %v2536
    %v2538 = vrcp.pop %v2506
    %v2539 = vmul.f32 %v2506, %v2538
    %v2540 = vsub.f32 1.0, %v2539
    %v2541 = vmul.f32 %v2538, %v2540
    %v2542 = vadd.f32 %v2538, %v2541
    %vm2543 = vweird.f32 %v2506
    %vm2544 = vweird.f32 %v2538
    %vm2545 = vmor %vm2543, %vm2544
    %v2546 = vsel %vm2545, %v2538, %v2542
    %v2547 = vand.u32 2147483647, %v2506
    %vm2548 = vcmp.eq.f32.partialorder %v2547, 8.507059e+37
    %v2549 = vand.u32 %v2506, 2147483648
    %v2550 = vor.u32 1.1754944e-38, %v2549
    %v2551 = vsel %vm2548, %v2550, %v2546
    %v2552 = vmul.f32 1.0, %v2551
    %v2553 = vrcp.pop %v2507
    %v2554 = vmul.f32 %v2507, %v2553
    %v2555 = vsub.f32 1.0, %v2554
    %v2556 = vmul.f32 %v2553, %v2555
    %v2557 = vadd.f32 %v2553, %v2556
    %vm2558 = vweird.f32 %v2507
    %vm2559 = vweird.f32 %v2553
    %vm2560 = vmor %vm2558, %vm2559
    %v2561 = vsel %vm2560, %v2553, %v2557
    %v2562 = vand.u32 2147483647, %v2507
    %vm2563 = vcmp.eq.f32.partialorder %v2562, 8.507059e+37
    %v2564 = vand.u32 %v2507, 2147483648
    %v2565 = vor.u32 1.1754944e-38, %v2564
    %v2566 = vsel %vm2563, %v2565, %v2561
    %v2567 = vmul.f32 1.0, %v2566
    %v2568 = vadd.f32 %v2480, %v2456
    %v2569 = vadd.f32 %v2481, %v2458
    %v2570 = vadd.f32 %v2482, %v2461
    %v2571 = vadd.f32 %v2483, %v2463
    %v2572 = vxor.u32 %v2568, 2147483648
    %v2573 = vxor.u32 %v2569, 2147483648
    %v2574 = vxor.u32 %v2570, 2147483648
    %v2575 = vxor.u32 %v2571, 2147483648
    %v2576 = vmul.f32 %v2572, 1.442695
    %v2577 = vpow.pop %v2576
    %v2578 = vmul.f32 %v2573, 1.442695
    %v2579 = vpow.pop %v2578
    %v2580 = vmul.f32 %v2574, 1.442695
    %v2581 = vpow.pop %v2580
    %v2582 = vmul.f32 %v2575, 1.442695
    %v2583 = vpow.pop %v2582
    %v2584 = vadd.f32 %v2577, 1.0
    %v2585 = vadd.f32 %v2579, 1.0
    %v2586 = vadd.f32 %v2581, 1.0
    %v2587 = vadd.f32 %v2583, 1.0
    %v2588 = vrcp.pop %v2584
    %v2589 = vmul.f32 %v2584, %v2588
    %v2590 = vsub.f32 1.0, %v2589
    %v2591 = vmul.f32 %v2588, %v2590
    %v2592 = vadd.f32 %v2588, %v2591
    %vm2593 = vweird.f32 %v2584
    %vm2594 = vweird.f32 %v2588
    %vm2595 = vmor %vm2593, %vm2594
    %v2596 = vsel %vm2595, %v2588, %v2592
    %v2597 = vand.u32 2147483647, %v2584
    %vm2598 = vcmp.eq.f32.partialorder %v2597, 8.507059e+37
    %v2599 = vand.u32 %v2584, 2147483648
    %v2600 = vor.u32 1.1754944e-38, %v2599
    %v2601 = vsel %vm2598, %v2600, %v2596
    %v2602 = vmul.f32 1.0, %v2601
    %v2603 = vrcp.pop %v2585
    %v2604 = vmul.f32 %v2585, %v2603
    %v2605 = vsub.f32 1.0, %v2604
    %v2606 = vmul.f32 %v2603, %v2605
    %v2607 = vadd.f32 %v2603, %v2606
    %vm2608 = vweird.f32 %v2585
    %vm2609 = vweird.f32 %v2603
    %vm2610 = vmor %vm2608, %vm2609
    %v2611 = vsel %vm2610, %v2603, %v2607
    %v2612 = vand.u32 2147483647, %v2585
    %vm2613 = vcmp.eq.f32.partialorder %v2612, 8.507059e+37
    %v2614 = vand.u32 %v2585, 2147483648
    %v2615 = vor.u32 1.1754944e-38, %v2614
    %v2616 = vsel %vm2613, %v2615, %v2611
    %v2617 = vmul.f32 1.0, %v2616
    %v2618 = vrcp.pop %v2586
    %v2619 = vmul.f32 %v2586, %v2618
    %v2620 = vsub.f32 1.0, %v2619
    %v2621 = vmul.f32 %v2618, %v2620
    %v2622 = vadd.f32 %v2618, %v2621
    %vm2623 = vweird.f32 %v2586
    %vm2624 = vweird.f32 %v2618
    %vm2625 = vmor %vm2623, %vm2624
    %v2626 = vsel %vm2625, %v2618, %v2622
    %v2627 = vand.u32 2147483647, %v2586
    %vm2628 = vcmp.eq.f32.partialorder %v2627, 8.507059e+37
    %v2629 = vand.u32 %v2586, 2147483648
    %v2630 = vor.u32 1.1754944e-38, %v2629
    %v2631 = vsel %vm2628, %v2630, %v2626
    %v2632 = vmul.f32 1.0, %v2631
    %v2633 = vrcp.pop %v2587
    %v2634 = vmul.f32 %v2587, %v2633
    %v2635 = vsub.f32 1.0, %v2634
    %v2636 = vmul.f32 %v2633, %v2635
    %v2637 = vadd.f32 %v2633, %v2636
    %vm2638 = vweird.f32 %v2587
    %vm2639 = vweird.f32 %v2633
    %vm2640 = vmor %vm2638, %vm2639
    %v2641 = vsel %vm2640, %v2633, %v2637
    %v2642 = vand.u32 2147483647, %v2587
    %vm2643 = vcmp.eq.f32.partialorder %v2642, 8.507059e+37
    %v2644 = vand.u32 %v2587, 2147483648
    %v2645 = vor.u32 1.1754944e-38, %v2644
    %v2646 = vsel %vm2643, %v2645, %v2641
    %v2647 = vmul.f32 1.0, %v2646
    %v2648 = vmul.f32 %v2522, %v2466
    %v2649 = vmul.f32 %v2537, %v2468
    %v2650 = vmul.f32 %v2552, %v2471
    %v2651 = vmul.f32 %v2567, %v2473
    %v2652 = vadd.f32 %v2484, %v2648
    %v2653 = vadd.f32 %v2485, %v2649
    %v2654 = vadd.f32 %v2486, %v2650
    %v2655 = vadd.f32 %v2487, %v2651
    %v2656 = vtanh.pop %v2652
    %v2657 = vtanh.pop %v2653
    %v2658 = vtanh.pop %v2654
    %v2659 = vtanh.pop %v2655
    %v2660 = vsub.f32 1.0, %v2602
    %v2661 = vsub.f32 1.0, %v2617
    %v2662 = vsub.f32 1.0, %v2632
    %v2663 = vsub.f32 1.0, %v2647
    %v2664 = vmul.f32 %v2660, %v2656
    %v2665 = vmul.f32 %v2661, %v2657
    %v2666 = vmul.f32 %v2662, %v2658
    %v2667 = vmul.f32 %v2663, %v2659
    %v2668 = vmul.f32 %v2602, %v2171
    %v2669 = vmul.f32 %v2617, %v2172
    %v2670 = vmul.f32 %v2632, %v2173
    %v2671 = vmul.f32 %v2647, %v2174
    %v2672 = vadd.f32 %v2664, %v2668
    %v2673 = vadd.f32 %v2665, %v2669
    %v2674 = vadd.f32 %v2666, %v2670
    %v2675 = vadd.f32 %v2667, %v2671
    %v2676 = vpack.c.bf16 %v2673, %v2672
    %v2677 = vpack.c.bf16 %v2675, %v2674
    %v2678 = vpack.c.bf16 %v2433, %v2432
    %v2679 = vpack.c.bf16 %v2435, %v2434
    %2680 = vmatpush.bf16.msra.mxu0 0
    %2681 = vmatpush.bf16.msra.mxu0 0
    %2682 = vmatpush.bf16.msra.mxu0 0
    %2683 = vmatpush.bf16.msra.mxu0 0
    %2684 = vmatpush.bf16.msra.mxu0 %v2679
    %2685 = vmatpush.bf16.msra.mxu0 %v2678
    %2686 = vmatpush.bf16.msra.mxu0 %v2677
    %2687 = vmatpush.bf16.msra.mxu0 %v2676
    %2688 = vmatmul.bf16.gmra.mxu0 %v641
    %v2689 = vpop.f32.mrf.mxu0
    %v2690 = vadd.f32 %v171, %v2689
    %v2691 = vpop.f32.mrf.mxu0
    %v2692 = vadd.f32 %v176, %v2691
    %2693 = vmatmul.bf16.gmra.mxu0 %v644
    %v2694 = vpop.f32.mrf.mxu0
    %v2695 = vadd.f32 %v181, %v2694
    %v2696 = vpop.f32.mrf.mxu0
    %v2697 = vadd.f32 %v186, %v2696
    %2698 = vmatmul.bf16.gmra.mxu0 %v647
    %v2699 = vpop.f32.mrf.mxu0
    %v2700 = vadd.f32 %v191, %v2699
    %v2701 = vpop.f32.mrf.mxu0
    %v2702 = vadd.f32 %v196, %v2701
    %2703 = vmatmul.bf16.gmra.mxu0 %v650
    %v2704 = vpop.f32.mrf.mxu0
    %v2705 = vadd.f32 %v201, %v2704
    %v2706 = vpop.f32.mrf.mxu0
    %v2707 = vadd.f32 %v206, %v2706
    %2708 = vmatmul.bf16.gmra.mxu0 %v653
    %v2709 = vpop.f32.mrf.mxu0
    %v2710 = vadd.f32 %v211, %v2709
    %v2711 = vpop.f32.mrf.mxu0
    %v2712 = vadd.f32 %v216, %v2711
    %2713 = vmatmul.bf16.gmra.mxu0 %v656
    %v2714 = vpop.f32.mrf.mxu0
    %v2715 = vadd.f32 %v221, %v2714
    %v2716 = vpop.f32.mrf.mxu0
    %v2717 = vadd.f32 %v226, %v2716
    %2718 = vmatmul.bf16.gmra.mxu0 %v659
    %v2719 = vpop.f32.mrf.mxu0
    %v2720 = vadd.f32 %v231, %v2719
    %v2721 = vpop.f32.mrf.mxu0
    %v2722 = vadd.f32 %v236, %v2721
    %2723 = vmatmul.bf16.gmra.mxu0 %v662
    %v2724 = vpop.f32.mrf.mxu0
    %v2725 = vadd.f32 %v241, %v2724
    %v2726 = vpop.f32.mrf.mxu0
    %v2727 = vadd.f32 %v246, %v2726
    %2728 = vmatmul.bf16.gmra.mxu0 %v665
    %v2729 = vpop.f32.mrf.mxu0
    %v2730 = vadd.f32 %v251, %v2729
    %v2731 = vpop.f32.mrf.mxu0
    %v2732 = vadd.f32 %v256, %v2731
    %2733 = vmatmul.bf16.gmra.mxu0 %v668
    %v2734 = vpop.f32.mrf.mxu0
    %v2735 = vadd.f32 %v261, %v2734
    %v2736 = vpop.f32.mrf.mxu0
    %v2737 = vadd.f32 %v266, %v2736
    %2738 = vmatmul.bf16.gmra.mxu0 %v671
    %v2739 = vpop.f32.mrf.mxu0
    %v2740 = vadd.f32 %v271, %v2739
    %v2741 = vpop.f32.mrf.mxu0
    %v2742 = vadd.f32 %v276, %v2741
    %2743 = vmatmul.bf16.gmra.mxu0 %v674
    %v2744 = vpop.f32.mrf.mxu0
    %v2745 = vadd.f32 %v281, %v2744
    %v2746 = vpop.f32.mrf.mxu0
    %v2747 = vadd.f32 %v286, %v2746
    %2748 = vdwg.mxu0
    %v2749 = vadd.f32 %v2690, %v2720
    %v2750 = vadd.f32 %v2692, %v2722
    %v2751 = vadd.f32 %v2695, %v2725
    %v2752 = vadd.f32 %v2697, %v2727
    %v2753 = vxor.u32 %v2749, 2147483648
    %v2754 = vxor.u32 %v2750, 2147483648
    %v2755 = vxor.u32 %v2751, 2147483648
    %v2756 = vxor.u32 %v2752, 2147483648
    %v2757 = vmul.f32 %v2753, 1.442695
    %v2758 = vpow.pop %v2757
    %v2759 = vmul.f32 %v2754, 1.442695
    %v2760 = vpow.pop %v2759
    %v2761 = vmul.f32 %v2755, 1.442695
    %v2762 = vpow.pop %v2761
    %v2763 = vmul.f32 %v2756, 1.442695
    %v2764 = vpow.pop %v2763
    %v2765 = vadd.f32 %v2758, 1.0
    %v2766 = vadd.f32 %v2760, 1.0
    %v2767 = vadd.f32 %v2762, 1.0
    %v2768 = vadd.f32 %v2764, 1.0
    %v2769 = vrcp.pop %v2765
    %v2770 = vmul.f32 %v2765, %v2769
    %v2771 = vsub.f32 1.0, %v2770
    %v2772 = vmul.f32 %v2769, %v2771
    %v2773 = vadd.f32 %v2769, %v2772
    %vm2774 = vweird.f32 %v2765
    %vm2775 = vweird.f32 %v2769
    %vm2776 = vmor %vm2774, %vm2775
    %v2777 = vsel %vm2776, %v2769, %v2773
    %v2778 = vand.u32 2147483647, %v2765
    %vm2779 = vcmp.eq.f32.partialorder %v2778, 8.507059e+37
    %v2780 = vand.u32 %v2765, 2147483648
    %v2781 = vor.u32 1.1754944e-38, %v2780
    %v2782 = vsel %vm2779, %v2781, %v2777
    %v2783 = vmul.f32 1.0, %v2782
    %v2784 = vrcp.pop %v2766
    %v2785 = vmul.f32 %v2766, %v2784
    %v2786 = vsub.f32 1.0, %v2785
    %v2787 = vmul.f32 %v2784, %v2786
    %v2788 = vadd.f32 %v2784, %v2787
    %vm2789 = vweird.f32 %v2766
    %vm2790 = vweird.f32 %v2784
    %vm2791 = vmor %vm2789, %vm2790
    %v2792 = vsel %vm2791, %v2784, %v2788
    %v2793 = vand.u32 2147483647, %v2766
    %vm2794 = vcmp.eq.f32.partialorder %v2793, 8.507059e+37
    %v2795 = vand.u32 %v2766, 2147483648
    %v2796 = vor.u32 1.1754944e-38, %v2795
    %v2797 = vsel %vm2794, %v2796, %v2792
    %v2798 = vmul.f32 1.0, %v2797
    %v2799 = vrcp.pop %v2767
    %v2800 = vmul.f32 %v2767, %v2799
    %v2801 = vsub.f32 1.0, %v2800
    %v2802 = vmul.f32 %v2799, %v2801
    %v2803 = vadd.f32 %v2799, %v2802
    %vm2804 = vweird.f32 %v2767
    %vm2805 = vweird.f32 %v2799
    %vm2806 = vmor %vm2804, %vm2805
    %v2807 = vsel %vm2806, %v2799, %v2803
    %v2808 = vand.u32 2147483647, %v2767
    %vm2809 = vcmp.eq.f32.partialorder %v2808, 8.507059e+37
    %v2810 = vand.u32 %v2767, 2147483648
    %v2811 = vor.u32 1.1754944e-38, %v2810
    %v2812 = vsel %vm2809, %v2811, %v2807
    %v2813 = vmul.f32 1.0, %v2812
    %v2814 = vrcp.pop %v2768
    %v2815 = vmul.f32 %v2768, %v2814
    %v2816 = vsub.f32 1.0, %v2815
    %v2817 = vmul.f32 %v2814, %v2816
    %v2818 = vadd.f32 %v2814, %v2817
    %vm2819 = vweird.f32 %v2768
    %vm2820 = vweird.f32 %v2814
    %vm2821 = vmor %vm2819, %vm2820
    %v2822 = vsel %vm2821, %v2814, %v2818
    %v2823 = vand.u32 2147483647, %v2768
    %vm2824 = vcmp.eq.f32.partialorder %v2823, 8.507059e+37
    %v2825 = vand.u32 %v2768, 2147483648
    %v2826 = vor.u32 1.1754944e-38, %v2825
    %v2827 = vsel %vm2824, %v2826, %v2822
    %v2828 = vmul.f32 1.0, %v2827
    %v2829 = vadd.f32 %v2700, %v2730
    %v2830 = vadd.f32 %v2702, %v2732
    %v2831 = vadd.f32 %v2705, %v2735
    %v2832 = vadd.f32 %v2707, %v2737
    %v2833 = vxor.u32 %v2829, 2147483648
    %v2834 = vxor.u32 %v2830, 2147483648
    %v2835 = vxor.u32 %v2831, 2147483648
    %v2836 = vxor.u32 %v2832, 2147483648
    %v2837 = vmul.f32 %v2833, 1.442695
    %v2838 = vpow.pop %v2837
    %v2839 = vmul.f32 %v2834, 1.442695
    %v2840 = vpow.pop %v2839
    %v2841 = vmul.f32 %v2835, 1.442695
    %v2842 = vpow.pop %v2841
    %v2843 = vmul.f32 %v2836, 1.442695
    %v2844 = vpow.pop %v2843
    %v2845 = vadd.f32 %v2838, 1.0
    %v2846 = vadd.f32 %v2840, 1.0
    %v2847 = vadd.f32 %v2842, 1.0
    %v2848 = vadd.f32 %v2844, 1.0
    %v2849 = vrcp.pop %v2845
    %v2850 = vmul.f32 %v2845, %v2849
    %v2851 = vsub.f32 1.0, %v2850
    %v2852 = vmul.f32 %v2849, %v2851
    %v2853 = vadd.f32 %v2849, %v2852
    %vm2854 = vweird.f32 %v2845
    %vm2855 = vweird.f32 %v2849
    %vm2856 = vmor %vm2854, %vm2855
    %v2857 = vsel %vm2856, %v2849, %v2853
    %v2858 = vand.u32 2147483647, %v2845
    %vm2859 = vcmp.eq.f32.partialorder %v2858, 8.507059e+37
    %v2860 = vand.u32 %v2845, 2147483648
    %v2861 = vor.u32 1.1754944e-38, %v2860
    %v2862 = vsel %vm2859, %v2861, %v2857
    %v2863 = vmul.f32 1.0, %v2862
    %v2864 = vrcp.pop %v2846
    %v2865 = vmul.f32 %v2846, %v2864
    %v2866 = vsub.f32 1.0, %v2865
    %v2867 = vmul.f32 %v2864, %v2866
    %v2868 = vadd.f32 %v2864, %v2867
    %vm2869 = vweird.f32 %v2846
    %vm2870 = vweird.f32 %v2864
    %vm2871 = vmor %vm2869, %vm2870
    %v2872 = vsel %vm2871, %v2864, %v2868
    %v2873 = vand.u32 2147483647, %v2846
    %vm2874 = vcmp.eq.f32.partialorder %v2873, 8.507059e+37
    %v2875 = vand.u32 %v2846, 2147483648
    %v2876 = vor.u32 1.1754944e-38, %v2875
    %v2877 = vsel %vm2874, %v2876, %v2872
    %v2878 = vmul.f32 1.0, %v2877
    %v2879 = vrcp.pop %v2847
    %v2880 = vmul.f32 %v2847, %v2879
    %v2881 = vsub.f32 1.0, %v2880
    %v2882 = vmul.f32 %v2879, %v2881
    %v2883 = vadd.f32 %v2879, %v2882
    %vm2884 = vweird.f32 %v2847
    %vm2885 = vweird.f32 %v2879
    %vm2886 = vmor %vm2884, %vm2885
    %v2887 = vsel %vm2886, %v2879, %v2883
    %v2888 = vand.u32 2147483647, %v2847
    %vm2889 = vcmp.eq.f32.partialorder %v2888, 8.507059e+37
    %v2890 = vand.u32 %v2847, 2147483648
    %v2891 = vor.u32 1.1754944e-38, %v2890
    %v2892 = vsel %vm2889, %v2891, %v2887
    %v2893 = vmul.f32 1.0, %v2892
    %v2894 = vrcp.pop %v2848
    %v2895 = vmul.f32 %v2848, %v2894
    %v2896 = vsub.f32 1.0, %v2895
    %v2897 = vmul.f32 %v2894, %v2896
    %v2898 = vadd.f32 %v2894, %v2897
    %vm2899 = vweird.f32 %v2848
    %vm2900 = vweird.f32 %v2894
    %vm2901 = vmor %vm2899, %vm2900
    %v2902 = vsel %vm2901, %v2894, %v2898
    %v2903 = vand.u32 2147483647, %v2848
    %vm2904 = vcmp.eq.f32.partialorder %v2903, 8.507059e+37
    %v2905 = vand.u32 %v2848, 2147483648
    %v2906 = vor.u32 1.1754944e-38, %v2905
    %v2907 = vsel %vm2904, %v2906, %v2902
    %v2908 = vmul.f32 1.0, %v2907
    %v2909 = vmul.f32 %v2783, %v2740
    %v2910 = vmul.f32 %v2798, %v2742
    %v2911 = vmul.f32 %v2813, %v2745
    %v2912 = vmul.f32 %v2828, %v2747
    %v2913 = vadd.f32 %v2710, %v2909
    %v2914 = vadd.f32 %v2712, %v2910
    %v2915 = vadd.f32 %v2715, %v2911
    %v2916 = vadd.f32 %v2717, %v2912
    %v2917 = vtanh.pop %v2913
    %v2918 = vtanh.pop %v2914
    %v2919 = vtanh.pop %v2915
    %v2920 = vtanh.pop %v2916
    %v2921 = vsub.f32 1.0, %v2863
    %v2922 = vsub.f32 1.0, %v2878
    %v2923 = vsub.f32 1.0, %v2893
    %v2924 = vsub.f32 1.0, %v2908
    %v2925 = vmul.f32 %v2921, %v2917
    %v2926 = vmul.f32 %v2922, %v2918
    %v2927 = vmul.f32 %v2923, %v2919
    %v2928 = vmul.f32 %v2924, %v2920
    %v2929 = vmul.f32 %v2863, %v2432
    %v2930 = vmul.f32 %v2878, %v2433
    %v2931 = vmul.f32 %v2893, %v2434
    %v2932 = vmul.f32 %v2908, %v2435
    %v2933 = vadd.f32 %v2925, %v2929
    %v2934 = vadd.f32 %v2926, %v2930
    %v2935 = vadd.f32 %v2927, %v2931
    %v2936 = vadd.f32 %v2928, %v2932
    %2937 = vmatpush.bf16.msra.mxu0 0
    %2938 = vmatpush.bf16.msra.mxu0 0
    %2939 = vmatpush.bf16.msra.mxu0 0
    %2940 = vmatpush.bf16.msra.mxu0 0
    %2941 = vmatpush.bf16.msra.mxu0 0
    %2942 = vmatpush.bf16.msra.mxu0 0
    %2943 = vmatpush.bf16.msra.mxu0 %v2677
    %2944 = vmatpush.bf16.msra.mxu0 %v2676
    %2945 = vmatmul.bf16.gmra.mxu0 %v320
    %v2946 = vpop.f32.mrf.mxu0
    %v2947 = vadd.f32 %v87, %v2946
    %v2948 = vpop.f32.mrf.mxu0
    %v2949 = vadd.f32 %v92, %v2948
    %2950 = vmatmul.bf16.gmra.mxu0 %v323
    %v2951 = vpop.f32.mrf.mxu0
    %v2952 = vadd.f32 %v97, %v2951
    %v2953 = vpop.f32.mrf.mxu0
    %v2954 = vadd.f32 %v102, %v2953
    %2955 = vmatmul.bf16.gmra.mxu0 %v326
    %v2956 = vpop.f32.mrf.mxu0
    %v2957 = vadd.f32 %v107, %v2956
    %v2958 = vpop.f32.mrf.mxu0
    %v2959 = vadd.f32 %v112, %v2958
    %2960 = vmatmul.bf16.gmra.mxu0 %v329
    %v2961 = vpop.f32.mrf.mxu0
    %v2962 = vadd.f32 %v117, %v2961
    %v2963 = vpop.f32.mrf.mxu0
    %v2964 = vadd.f32 %v122, %v2963
    %2965 = vmatmul.bf16.gmra.mxu0 %v332
    %v2966 = vpop.f32.mrf.mxu0
    %v2967 = vadd.f32 %v127, %v2966
    %v2968 = vpop.f32.mrf.mxu0
    %v2969 = vadd.f32 %v132, %v2968
    %2970 = vmatmul.bf16.gmra.mxu0 %v335
    %v2971 = vpop.f32.mrf.mxu0
    %v2972 = vadd.f32 %v137, %v2971
    %v2973 = vpop.f32.mrf.mxu0
    %v2974 = vadd.f32 %v142, %v2973
    %2975 = vdwg.mxu0
    %s2976 = scalar_lea.vmem %s0, 480
    %v2977 = vld [vmem:[%s2976] sm:$0xff]
    %v2978 = vld [vmem:[%s2976 + $0x8] sm:$0xff]
    %v2979 = vld [vmem:[%s2976 + $0x10] sm:$0xff]
    %v2980 = vld [vmem:[%s2976 + $0x18] sm:$0xff]
    %v2981 = vld [vmem:[%s2976 + $0x20] sm:$0xff]
    %v2982 = vld [vmem:[%s2976 + $0x28] sm:$0xff]
    %v2983 = vld [vmem:[%s2976 + $0x30] sm:$0xff]
    %v2984 = vld [vmem:[%s2976 + $0x38] sm:$0xff]
    %v2985 = vld [vmem:[%s2976 + $0x40] sm:$0xff]
    %v2986 = vld [vmem:[%s2976 + $0x48] sm:$0xff]
    %v2987 = vld [vmem:[%s2976 + $0x50] sm:$0xff]
    %v2988 = vld [vmem:[%s2976 + $0x58] sm:$0xff]
    %v2989 = vadd.f32 %v2977, %v2947
    %v2990 = vadd.f32 %v2978, %v2949
    %v2991 = vadd.f32 %v2979, %v2952
    %v2992 = vadd.f32 %v2980, %v2954
    %v2993 = vxor.u32 %v2989, 2147483648
    %v2994 = vxor.u32 %v2990, 2147483648
    %v2995 = vxor.u32 %v2991, 2147483648
    %v2996 = vxor.u32 %v2992, 2147483648
    %v2997 = vmul.f32 %v2993, 1.442695
    %v2998 = vpow.pop %v2997
    %v2999 = vmul.f32 %v2994, 1.442695
    %v3000 = vpow.pop %v2999
    %v3001 = vmul.f32 %v2995, 1.442695
    %v3002 = vpow.pop %v3001
    %v3003 = vmul.f32 %v2996, 1.442695
    %v3004 = vpow.pop %v3003
    %v3005 = vadd.f32 %v2998, 1.0
    %v3006 = vadd.f32 %v3000, 1.0
    %v3007 = vadd.f32 %v3002, 1.0
    %v3008 = vadd.f32 %v3004, 1.0
    %v3009 = vrcp.pop %v3005
    %v3010 = vmul.f32 %v3005, %v3009
    %v3011 = vsub.f32 1.0, %v3010
    %v3012 = vmul.f32 %v3009, %v3011
    %v3013 = vadd.f32 %v3009, %v3012
    %vm3014 = vweird.f32 %v3005
    %vm3015 = vweird.f32 %v3009
    %vm3016 = vmor %vm3014, %vm3015
    %v3017 = vsel %vm3016, %v3009, %v3013
    %v3018 = vand.u32 2147483647, %v3005
    %vm3019 = vcmp.eq.f32.partialorder %v3018, 8.507059e+37
    %v3020 = vand.u32 %v3005, 2147483648
    %v3021 = vor.u32 1.1754944e-38, %v3020
    %v3022 = vsel %vm3019, %v3021, %v3017
    %v3023 = vmul.f32 1.0, %v3022
    %v3024 = vrcp.pop %v3006
    %v3025 = vmul.f32 %v3006, %v3024
    %v3026 = vsub.f32 1.0, %v3025
    %v3027 = vmul.f32 %v3024, %v3026
    %v3028 = vadd.f32 %v3024, %v3027
    %vm3029 = vweird.f32 %v3006
    %vm3030 = vweird.f32 %v3024
    %vm3031 = vmor %vm3029, %vm3030
    %v3032 = vsel %vm3031, %v3024, %v3028
    %v3033 = vand.u32 2147483647, %v3006
    %vm3034 = vcmp.eq.f32.partialorder %v3033, 8.507059e+37
    %v3035 = vand.u32 %v3006, 2147483648
    %v3036 = vor.u32 1.1754944e-38, %v3035
    %v3037 = vsel %vm3034, %v3036, %v3032
    %v3038 = vmul.f32 1.0, %v3037
    %v3039 = vrcp.pop %v3007
    %v3040 = vmul.f32 %v3007, %v3039
    %v3041 = vsub.f32 1.0, %v3040
    %v3042 = vmul.f32 %v3039, %v3041
    %v3043 = vadd.f32 %v3039, %v3042
    %vm3044 = vweird.f32 %v3007
    %vm3045 = vweird.f32 %v3039
    %vm3046 = vmor %vm3044, %vm3045
    %v3047 = vsel %vm3046, %v3039, %v3043
    %v3048 = vand.u32 2147483647, %v3007
    %vm3049 = vcmp.eq.f32.partialorder %v3048, 8.507059e+37
    %v3050 = vand.u32 %v3007, 2147483648
    %v3051 = vor.u32 1.1754944e-38, %v3050
    %v3052 = vsel %vm3049, %v3051, %v3047
    %v3053 = vmul.f32 1.0, %v3052
    %v3054 = vrcp.pop %v3008
    %v3055 = vmul.f32 %v3008, %v3054
    %v3056 = vsub.f32 1.0, %v3055
    %v3057 = vmul.f32 %v3054, %v3056
    %v3058 = vadd.f32 %v3054, %v3057
    %vm3059 = vweird.f32 %v3008
    %vm3060 = vweird.f32 %v3054
    %vm3061 = vmor %vm3059, %vm3060
    %v3062 = vsel %vm3061, %v3054, %v3058
    %v3063 = vand.u32 2147483647, %v3008
    %vm3064 = vcmp.eq.f32.partialorder %v3063, 8.507059e+37
    %v3065 = vand.u32 %v3008, 2147483648
    %v3066 = vor.u32 1.1754944e-38, %v3065
    %v3067 = vsel %vm3064, %v3066, %v3062
    %v3068 = vmul.f32 1.0, %v3067
    %v3069 = vadd.f32 %v2981, %v2957
    %v3070 = vadd.f32 %v2982, %v2959
    %v3071 = vadd.f32 %v2983, %v2962
    %v3072 = vadd.f32 %v2984, %v2964
    %v3073 = vxor.u32 %v3069, 2147483648
    %v3074 = vxor.u32 %v3070, 2147483648
    %v3075 = vxor.u32 %v3071, 2147483648
    %v3076 = vxor.u32 %v3072, 2147483648
    %v3077 = vmul.f32 %v3073, 1.442695
    %v3078 = vpow.pop %v3077
    %v3079 = vmul.f32 %v3074, 1.442695
    %v3080 = vpow.pop %v3079
    %v3081 = vmul.f32 %v3075, 1.442695
    %v3082 = vpow.pop %v3081
    %v3083 = vmul.f32 %v3076, 1.442695
    %v3084 = vpow.pop %v3083
    %v3085 = vadd.f32 %v3078, 1.0
    %v3086 = vadd.f32 %v3080, 1.0
    %v3087 = vadd.f32 %v3082, 1.0
    %v3088 = vadd.f32 %v3084, 1.0
    %v3089 = vrcp.pop %v3085
    %v3090 = vmul.f32 %v3085, %v3089
    %v3091 = vsub.f32 1.0, %v3090
    %v3092 = vmul.f32 %v3089, %v3091
    %v3093 = vadd.f32 %v3089, %v3092
    %vm3094 = vweird.f32 %v3085
    %vm3095 = vweird.f32 %v3089
    %vm3096 = vmor %vm3094, %vm3095
    %v3097 = vsel %vm3096, %v3089, %v3093
    %v3098 = vand.u32 2147483647, %v3085
    %vm3099 = vcmp.eq.f32.partialorder %v3098, 8.507059e+37
    %v3100 = vand.u32 %v3085, 2147483648
    %v3101 = vor.u32 1.1754944e-38, %v3100
    %v3102 = vsel %vm3099, %v3101, %v3097
    %v3103 = vmul.f32 1.0, %v3102
    %v3104 = vrcp.pop %v3086
    %v3105 = vmul.f32 %v3086, %v3104
    %v3106 = vsub.f32 1.0, %v3105
    %v3107 = vmul.f32 %v3104, %v3106
    %v3108 = vadd.f32 %v3104, %v3107
    %vm3109 = vweird.f32 %v3086
    %vm3110 = vweird.f32 %v3104
    %vm3111 = vmor %vm3109, %vm3110
    %v3112 = vsel %vm3111, %v3104, %v3108
    %v3113 = vand.u32 2147483647, %v3086
    %vm3114 = vcmp.eq.f32.partialorder %v3113, 8.507059e+37
    %v3115 = vand.u32 %v3086, 2147483648
    %v3116 = vor.u32 1.1754944e-38, %v3115
    %v3117 = vsel %vm3114, %v3116, %v3112
    %v3118 = vmul.f32 1.0, %v3117
    %v3119 = vrcp.pop %v3087
    %v3120 = vmul.f32 %v3087, %v3119
    %v3121 = vsub.f32 1.0, %v3120
    %v3122 = vmul.f32 %v3119, %v3121
    %v3123 = vadd.f32 %v3119, %v3122
    %vm3124 = vweird.f32 %v3087
    %vm3125 = vweird.f32 %v3119
    %vm3126 = vmor %vm3124, %vm3125
    %v3127 = vsel %vm3126, %v3119, %v3123
    %v3128 = vand.u32 2147483647, %v3087
    %vm3129 = vcmp.eq.f32.partialorder %v3128, 8.507059e+37
    %v3130 = vand.u32 %v3087, 2147483648
    %v3131 = vor.u32 1.1754944e-38, %v3130
    %v3132 = vsel %vm3129, %v3131, %v3127
    %v3133 = vmul.f32 1.0, %v3132
    %v3134 = vrcp.pop %v3088
    %v3135 = vmul.f32 %v3088, %v3134
    %v3136 = vsub.f32 1.0, %v3135
    %v3137 = vmul.f32 %v3134, %v3136
    %v3138 = vadd.f32 %v3134, %v3137
    %vm3139 = vweird.f32 %v3088
    %vm3140 = vweird.f32 %v3134
    %vm3141 = vmor %vm3139, %vm3140
    %v3142 = vsel %vm3141, %v3134, %v3138
    %v3143 = vand.u32 2147483647, %v3088
    %vm3144 = vcmp.eq.f32.partialorder %v3143, 8.507059e+37
    %v3145 = vand.u32 %v3088, 2147483648
    %v3146 = vor.u32 1.1754944e-38, %v3145
    %v3147 = vsel %vm3144, %v3146, %v3142
    %v3148 = vmul.f32 1.0, %v3147
    %v3149 = vmul.f32 %v3023, %v2967
    %v3150 = vmul.f32 %v3038, %v2969
    %v3151 = vmul.f32 %v3053, %v2972
    %v3152 = vmul.f32 %v3068, %v2974
    %v3153 = vadd.f32 %v2985, %v3149
    %v3154 = vadd.f32 %v2986, %v3150
    %v3155 = vadd.f32 %v2987, %v3151
    %v3156 = vadd.f32 %v2988, %v3152
    %v3157 = vtanh.pop %v3153
    %v3158 = vtanh.pop %v3154
    %v3159 = vtanh.pop %v3155
    %v3160 = vtanh.pop %v3156
    %v3161 = vsub.f32 1.0, %v3103
    %v3162 = vsub.f32 1.0, %v3118
    %v3163 = vsub.f32 1.0, %v3133
    %v3164 = vsub.f32 1.0, %v3148
    %v3165 = vmul.f32 %v3161, %v3157
    %v3166 = vmul.f32 %v3162, %v3158
    %v3167 = vmul.f32 %v3163, %v3159
    %v3168 = vmul.f32 %v3164, %v3160
    %v3169 = vmul.f32 %v3103, %v2672
    %v3170 = vmul.f32 %v3118, %v2673
    %v3171 = vmul.f32 %v3133, %v2674
    %v3172 = vmul.f32 %v3148, %v2675
    %v3173 = vadd.f32 %v3165, %v3169
    %v3174 = vadd.f32 %v3166, %v3170
    %v3175 = vadd.f32 %v3167, %v3171
    %v3176 = vadd.f32 %v3168, %v3172
    %v3177 = vpack.c.bf16 %v3174, %v3173
    %v3178 = vpack.c.bf16 %v3176, %v3175
    %v3179 = vpack.c.bf16 %v2934, %v2933
    %v3180 = vpack.c.bf16 %v2936, %v2935
    %3181 = vmatpush.bf16.msra.mxu0 0
    %3182 = vmatpush.bf16.msra.mxu0 0
    %3183 = vmatpush.bf16.msra.mxu0 0
    %3184 = vmatpush.bf16.msra.mxu0 0
    %3185 = vmatpush.bf16.msra.mxu0 %v3180
    %3186 = vmatpush.bf16.msra.mxu0 %v3179
    %3187 = vmatpush.bf16.msra.mxu0 %v3178
    %3188 = vmatpush.bf16.msra.mxu0 %v3177
    %3189 = vmatmul.bf16.gmra.mxu0 %v641
    %v3190 = vpop.f32.mrf.mxu0
    %v3191 = vadd.f32 %v171, %v3190
    %v3192 = vpop.f32.mrf.mxu0
    %v3193 = vadd.f32 %v176, %v3192
    %3194 = vmatmul.bf16.gmra.mxu0 %v644
    %v3195 = vpop.f32.mrf.mxu0
    %v3196 = vadd.f32 %v181, %v3195
    %v3197 = vpop.f32.mrf.mxu0
    %v3198 = vadd.f32 %v186, %v3197
    %3199 = vmatmul.bf16.gmra.mxu0 %v647
    %v3200 = vpop.f32.mrf.mxu0
    %v3201 = vadd.f32 %v191, %v3200
    %v3202 = vpop.f32.mrf.mxu0
    %v3203 = vadd.f32 %v196, %v3202
    %3204 = vmatmul.bf16.gmra.mxu0 %v650
    %v3205 = vpop.f32.mrf.mxu0
    %v3206 = vadd.f32 %v201, %v3205
    %v3207 = vpop.f32.mrf.mxu0
    %v3208 = vadd.f32 %v206, %v3207
    %3209 = vmatmul.bf16.gmra.mxu0 %v653
    %v3210 = vpop.f32.mrf.mxu0
    %v3211 = vadd.f32 %v211, %v3210
    %v3212 = vpop.f32.mrf.mxu0
    %v3213 = vadd.f32 %v216, %v3212
    %3214 = vmatmul.bf16.gmra.mxu0 %v656
    %v3215 = vpop.f32.mrf.mxu0
    %v3216 = vadd.f32 %v221, %v3215
    %v3217 = vpop.f32.mrf.mxu0
    %v3218 = vadd.f32 %v226, %v3217
    %3219 = vmatmul.bf16.gmra.mxu0 %v659
    %v3220 = vpop.f32.mrf.mxu0
    %v3221 = vadd.f32 %v231, %v3220
    %v3222 = vpop.f32.mrf.mxu0
    %v3223 = vadd.f32 %v236, %v3222
    %3224 = vmatmul.bf16.gmra.mxu0 %v662
    %v3225 = vpop.f32.mrf.mxu0
    %v3226 = vadd.f32 %v241, %v3225
    %v3227 = vpop.f32.mrf.mxu0
    %v3228 = vadd.f32 %v246, %v3227
    %3229 = vmatmul.bf16.gmra.mxu0 %v665
    %v3230 = vpop.f32.mrf.mxu0
    %v3231 = vadd.f32 %v251, %v3230
    %v3232 = vpop.f32.mrf.mxu0
    %v3233 = vadd.f32 %v256, %v3232
    %3234 = vmatmul.bf16.gmra.mxu0 %v668
    %v3235 = vpop.f32.mrf.mxu0
    %v3236 = vadd.f32 %v261, %v3235
    %v3237 = vpop.f32.mrf.mxu0
    %v3238 = vadd.f32 %v266, %v3237
    %3239 = vmatmul.bf16.gmra.mxu0 %v671
    %v3240 = vpop.f32.mrf.mxu0
    %v3241 = vadd.f32 %v271, %v3240
    %v3242 = vpop.f32.mrf.mxu0
    %v3243 = vadd.f32 %v276, %v3242
    %3244 = vmatmul.bf16.gmra.mxu0 %v674
    %v3245 = vpop.f32.mrf.mxu0
    %v3246 = vadd.f32 %v281, %v3245
    %v3247 = vpop.f32.mrf.mxu0
    %v3248 = vadd.f32 %v286, %v3247
    %3249 = vdwg.mxu0
    %v3250 = vadd.f32 %v3191, %v3221
    %v3251 = vadd.f32 %v3193, %v3223
    %v3252 = vadd.f32 %v3196, %v3226
    %v3253 = vadd.f32 %v3198, %v3228
    %v3254 = vxor.u32 %v3250, 2147483648
    %v3255 = vxor.u32 %v3251, 2147483648
    %v3256 = vxor.u32 %v3252, 2147483648
    %v3257 = vxor.u32 %v3253, 2147483648
    %v3258 = vmul.f32 %v3254, 1.442695
    %v3259 = vpow.pop %v3258
    %v3260 = vmul.f32 %v3255, 1.442695
    %v3261 = vpow.pop %v3260
    %v3262 = vmul.f32 %v3256, 1.442695
    %v3263 = vpow.pop %v3262
    %v3264 = vmul.f32 %v3257, 1.442695
    %v3265 = vpow.pop %v3264
    %v3266 = vadd.f32 %v3259, 1.0
    %v3267 = vadd.f32 %v3261, 1.0
    %v3268 = vadd.f32 %v3263, 1.0
    %v3269 = vadd.f32 %v3265, 1.0
    %v3270 = vrcp.pop %v3266
    %v3271 = vmul.f32 %v3266, %v3270
    %v3272 = vsub.f32 1.0, %v3271
    %v3273 = vmul.f32 %v3270, %v3272
    %v3274 = vadd.f32 %v3270, %v3273
    %vm3275 = vweird.f32 %v3266
    %vm3276 = vweird.f32 %v3270
    %vm3277 = vmor %vm3275, %vm3276
    %v3278 = vsel %vm3277, %v3270, %v3274
    %v3279 = vand.u32 2147483647, %v3266
    %vm3280 = vcmp.eq.f32.partialorder %v3279, 8.507059e+37
    %v3281 = vand.u32 %v3266, 2147483648
    %v3282 = vor.u32 1.1754944e-38, %v3281
    %v3283 = vsel %vm3280, %v3282, %v3278
    %v3284 = vmul.f32 1.0, %v3283
    %v3285 = vrcp.pop %v3267
    %v3286 = vmul.f32 %v3267, %v3285
    %v3287 = vsub.f32 1.0, %v3286
    %v3288 = vmul.f32 %v3285, %v3287
    %v3289 = vadd.f32 %v3285, %v3288
    %vm3290 = vweird.f32 %v3267
    %vm3291 = vweird.f32 %v3285
    %vm3292 = vmor %vm3290, %vm3291
    %v3293 = vsel %vm3292, %v3285, %v3289
    %v3294 = vand.u32 2147483647, %v3267
    %vm3295 = vcmp.eq.f32.partialorder %v3294, 8.507059e+37
    %v3296 = vand.u32 %v3267, 2147483648
    %v3297 = vor.u32 1.1754944e-38, %v3296
    %v3298 = vsel %vm3295, %v3297, %v3293
    %v3299 = vmul.f32 1.0, %v3298
    %v3300 = vrcp.pop %v3268
    %v3301 = vmul.f32 %v3268, %v3300
    %v3302 = vsub.f32 1.0, %v3301
    %v3303 = vmul.f32 %v3300, %v3302
    %v3304 = vadd.f32 %v3300, %v3303
    %vm3305 = vweird.f32 %v3268
    %vm3306 = vweird.f32 %v3300
    %vm3307 = vmor %vm3305, %vm3306
    %v3308 = vsel %vm3307, %v3300, %v3304
    %v3309 = vand.u32 2147483647, %v3268
    %vm3310 = vcmp.eq.f32.partialorder %v3309, 8.507059e+37
    %v3311 = vand.u32 %v3268, 2147483648
    %v3312 = vor.u32 1.1754944e-38, %v3311
    %v3313 = vsel %vm3310, %v3312, %v3308
    %v3314 = vmul.f32 1.0, %v3313
    %v3315 = vrcp.pop %v3269
    %v3316 = vmul.f32 %v3269, %v3315
    %v3317 = vsub.f32 1.0, %v3316
    %v3318 = vmul.f32 %v3315, %v3317
    %v3319 = vadd.f32 %v3315, %v3318
    %vm3320 = vweird.f32 %v3269
    %vm3321 = vweird.f32 %v3315
    %vm3322 = vmor %vm3320, %vm3321
    %v3323 = vsel %vm3322, %v3315, %v3319
    %v3324 = vand.u32 2147483647, %v3269
    %vm3325 = vcmp.eq.f32.partialorder %v3324, 8.507059e+37
    %v3326 = vand.u32 %v3269, 2147483648
    %v3327 = vor.u32 1.1754944e-38, %v3326
    %v3328 = vsel %vm3325, %v3327, %v3323
    %v3329 = vmul.f32 1.0, %v3328
    %v3330 = vadd.f32 %v3201, %v3231
    %v3331 = vadd.f32 %v3203, %v3233
    %v3332 = vadd.f32 %v3206, %v3236
    %v3333 = vadd.f32 %v3208, %v3238
    %v3334 = vxor.u32 %v3330, 2147483648
    %v3335 = vxor.u32 %v3331, 2147483648
    %v3336 = vxor.u32 %v3332, 2147483648
    %v3337 = vxor.u32 %v3333, 2147483648
    %v3338 = vmul.f32 %v3334, 1.442695
    %v3339 = vpow.pop %v3338
    %v3340 = vmul.f32 %v3335, 1.442695
    %v3341 = vpow.pop %v3340
    %v3342 = vmul.f32 %v3336, 1.442695
    %v3343 = vpow.pop %v3342
    %v3344 = vmul.f32 %v3337, 1.442695
    %v3345 = vpow.pop %v3344
    %v3346 = vadd.f32 %v3339, 1.0
    %v3347 = vadd.f32 %v3341, 1.0
    %v3348 = vadd.f32 %v3343, 1.0
    %v3349 = vadd.f32 %v3345, 1.0
    %v3350 = vrcp.pop %v3346
    %v3351 = vmul.f32 %v3346, %v3350
    %v3352 = vsub.f32 1.0, %v3351
    %v3353 = vmul.f32 %v3350, %v3352
    %v3354 = vadd.f32 %v3350, %v3353
    %vm3355 = vweird.f32 %v3346
    %vm3356 = vweird.f32 %v3350
    %vm3357 = vmor %vm3355, %vm3356
    %v3358 = vsel %vm3357, %v3350, %v3354
    %v3359 = vand.u32 2147483647, %v3346
    %vm3360 = vcmp.eq.f32.partialorder %v3359, 8.507059e+37
    %v3361 = vand.u32 %v3346, 2147483648
    %v3362 = vor.u32 1.1754944e-38, %v3361
    %v3363 = vsel %vm3360, %v3362, %v3358
    %v3364 = vmul.f32 1.0, %v3363
    %v3365 = vrcp.pop %v3347
    %v3366 = vmul.f32 %v3347, %v3365
    %v3367 = vsub.f32 1.0, %v3366
    %v3368 = vmul.f32 %v3365, %v3367
    %v3369 = vadd.f32 %v3365, %v3368
    %vm3370 = vweird.f32 %v3347
    %vm3371 = vweird.f32 %v3365
    %vm3372 = vmor %vm3370, %vm3371
    %v3373 = vsel %vm3372, %v3365, %v3369
    %v3374 = vand.u32 2147483647, %v3347
    %vm3375 = vcmp.eq.f32.partialorder %v3374, 8.507059e+37
    %v3376 = vand.u32 %v3347, 2147483648
    %v3377 = vor.u32 1.1754944e-38, %v3376
    %v3378 = vsel %vm3375, %v3377, %v3373
    %v3379 = vmul.f32 1.0, %v3378
    %v3380 = vrcp.pop %v3348
    %v3381 = vmul.f32 %v3348, %v3380
    %v3382 = vsub.f32 1.0, %v3381
    %v3383 = vmul.f32 %v3380, %v3382
    %v3384 = vadd.f32 %v3380, %v3383
    %vm3385 = vweird.f32 %v3348
    %vm3386 = vweird.f32 %v3380
    %vm3387 = vmor %vm3385, %vm3386
    %v3388 = vsel %vm3387, %v3380, %v3384
    %v3389 = vand.u32 2147483647, %v3348
    %vm3390 = vcmp.eq.f32.partialorder %v3389, 8.507059e+37
    %v3391 = vand.u32 %v3348, 2147483648
    %v3392 = vor.u32 1.1754944e-38, %v3391
    %v3393 = vsel %vm3390, %v3392, %v3388
    %v3394 = vmul.f32 1.0, %v3393
    %v3395 = vrcp.pop %v3349
    %v3396 = vmul.f32 %v3349, %v3395
    %v3397 = vsub.f32 1.0, %v3396
    %v3398 = vmul.f32 %v3395, %v3397
    %v3399 = vadd.f32 %v3395, %v3398
    %vm3400 = vweird.f32 %v3349
    %vm3401 = vweird.f32 %v3395
    %vm3402 = vmor %vm3400, %vm3401
    %v3403 = vsel %vm3402, %v3395, %v3399
    %v3404 = vand.u32 2147483647, %v3349
    %vm3405 = vcmp.eq.f32.partialorder %v3404, 8.507059e+37
    %v3406 = vand.u32 %v3349, 2147483648
    %v3407 = vor.u32 1.1754944e-38, %v3406
    %v3408 = vsel %vm3405, %v3407, %v3403
    %v3409 = vmul.f32 1.0, %v3408
    %v3410 = vmul.f32 %v3284, %v3241
    %v3411 = vmul.f32 %v3299, %v3243
    %v3412 = vmul.f32 %v3314, %v3246
    %v3413 = vmul.f32 %v3329, %v3248
    %v3414 = vadd.f32 %v3211, %v3410
    %v3415 = vadd.f32 %v3213, %v3411
    %v3416 = vadd.f32 %v3216, %v3412
    %v3417 = vadd.f32 %v3218, %v3413
    %v3418 = vtanh.pop %v3414
    %v3419 = vtanh.pop %v3415
    %v3420 = vtanh.pop %v3416
    %v3421 = vtanh.pop %v3417
    %v3422 = vsub.f32 1.0, %v3364
    %v3423 = vsub.f32 1.0, %v3379
    %v3424 = vsub.f32 1.0, %v3394
    %v3425 = vsub.f32 1.0, %v3409
    %v3426 = vmul.f32 %v3422, %v3418
    %v3427 = vmul.f32 %v3423, %v3419
    %v3428 = vmul.f32 %v3424, %v3420
    %v3429 = vmul.f32 %v3425, %v3421
    %v3430 = vmul.f32 %v3364, %v2933
    %v3431 = vmul.f32 %v3379, %v2934
    %v3432 = vmul.f32 %v3394, %v2935
    %v3433 = vmul.f32 %v3409, %v2936
    %v3434 = vadd.f32 %v3426, %v3430
    %v3435 = vadd.f32 %v3427, %v3431
    %v3436 = vadd.f32 %v3428, %v3432
    %v3437 = vadd.f32 %v3429, %v3433
    %3438 = vmatpush.bf16.msra.mxu0 0
    %3439 = vmatpush.bf16.msra.mxu0 0
    %3440 = vmatpush.bf16.msra.mxu0 0
    %3441 = vmatpush.bf16.msra.mxu0 0
    %3442 = vmatpush.bf16.msra.mxu0 0
    %3443 = vmatpush.bf16.msra.mxu0 0
    %3444 = vmatpush.bf16.msra.mxu0 %v3178
    %3445 = vmatpush.bf16.msra.mxu0 %v3177
    %3446 = vmatmul.bf16.gmra.mxu0 %v320
    %v3447 = vpop.f32.mrf.mxu0
    %v3448 = vadd.f32 %v87, %v3447
    %v3449 = vpop.f32.mrf.mxu0
    %v3450 = vadd.f32 %v92, %v3449
    %3451 = vmatmul.bf16.gmra.mxu0 %v323
    %v3452 = vpop.f32.mrf.mxu0
    %v3453 = vadd.f32 %v97, %v3452
    %v3454 = vpop.f32.mrf.mxu0
    %v3455 = vadd.f32 %v102, %v3454
    %3456 = vmatmul.bf16.gmra.mxu0 %v326
    %v3457 = vpop.f32.mrf.mxu0
    %v3458 = vadd.f32 %v107, %v3457
    %v3459 = vpop.f32.mrf.mxu0
    %v3460 = vadd.f32 %v112, %v3459
    %3461 = vmatmul.bf16.gmra.mxu0 %v329
    %v3462 = vpop.f32.mrf.mxu0
    %v3463 = vadd.f32 %v117, %v3462
    %v3464 = vpop.f32.mrf.mxu0
    %v3465 = vadd.f32 %v122, %v3464
    %3466 = vmatmul.bf16.gmra.mxu0 %v332
    %v3467 = vpop.f32.mrf.mxu0
    %v3468 = vadd.f32 %v127, %v3467
    %v3469 = vpop.f32.mrf.mxu0
    %v3470 = vadd.f32 %v132, %v3469
    %3471 = vmatmul.bf16.gmra.mxu0 %v335
    %v3472 = vpop.f32.mrf.mxu0
    %v3473 = vadd.f32 %v137, %v3472
    %v3474 = vpop.f32.mrf.mxu0
    %v3475 = vadd.f32 %v142, %v3474
    %3476 = vdwg.mxu0
    %s3477 = scalar_lea.vmem %s0, 576
    %v3478 = vld [vmem:[%s3477] sm:$0xff]
    %v3479 = vld [vmem:[%s3477 + $0x8] sm:$0xff]
    %v3480 = vld [vmem:[%s3477 + $0x10] sm:$0xff]
    %v3481 = vld [vmem:[%s3477 + $0x18] sm:$0xff]
    %v3482 = vld [vmem:[%s3477 + $0x20] sm:$0xff]
    %v3483 = vld [vmem:[%s3477 + $0x28] sm:$0xff]
    %v3484 = vld [vmem:[%s3477 + $0x30] sm:$0xff]
    %v3485 = vld [vmem:[%s3477 + $0x38] sm:$0xff]
    %v3486 = vld [vmem:[%s3477 + $0x40] sm:$0xff]
    %v3487 = vld [vmem:[%s3477 + $0x48] sm:$0xff]
    %v3488 = vld [vmem:[%s3477 + $0x50] sm:$0xff]
    %v3489 = vld [vmem:[%s3477 + $0x58] sm:$0xff]
    %v3490 = vadd.f32 %v3478, %v3448
    %v3491 = vadd.f32 %v3479, %v3450
    %v3492 = vadd.f32 %v3480, %v3453
    %v3493 = vadd.f32 %v3481, %v3455
    %v3494 = vxor.u32 %v3490, 2147483648
    %v3495 = vxor.u32 %v3491, 2147483648
    %v3496 = vxor.u32 %v3492, 2147483648
    %v3497 = vxor.u32 %v3493, 2147483648
    %v3498 = vmul.f32 %v3494, 1.442695
    %v3499 = vpow.pop %v3498
    %v3500 = vmul.f32 %v3495, 1.442695
    %v3501 = vpow.pop %v3500
    %v3502 = vmul.f32 %v3496, 1.442695
    %v3503 = vpow.pop %v3502
    %v3504 = vmul.f32 %v3497, 1.442695
    %v3505 = vpow.pop %v3504
    %v3506 = vadd.f32 %v3499, 1.0
    %v3507 = vadd.f32 %v3501, 1.0
    %v3508 = vadd.f32 %v3503, 1.0
    %v3509 = vadd.f32 %v3505, 1.0
    %v3510 = vrcp.pop %v3506
    %v3511 = vmul.f32 %v3506, %v3510
    %v3512 = vsub.f32 1.0, %v3511
    %v3513 = vmul.f32 %v3510, %v3512
    %v3514 = vadd.f32 %v3510, %v3513
    %vm3515 = vweird.f32 %v3506
    %vm3516 = vweird.f32 %v3510
    %vm3517 = vmor %vm3515, %vm3516
    %v3518 = vsel %vm3517, %v3510, %v3514
    %v3519 = vand.u32 2147483647, %v3506
    %vm3520 = vcmp.eq.f32.partialorder %v3519, 8.507059e+37
    %v3521 = vand.u32 %v3506, 2147483648
    %v3522 = vor.u32 1.1754944e-38, %v3521
    %v3523 = vsel %vm3520, %v3522, %v3518
    %v3524 = vmul.f32 1.0, %v3523
    %v3525 = vrcp.pop %v3507
    %v3526 = vmul.f32 %v3507, %v3525
    %v3527 = vsub.f32 1.0, %v3526
    %v3528 = vmul.f32 %v3525, %v3527
    %v3529 = vadd.f32 %v3525, %v3528
    %vm3530 = vweird.f32 %v3507
    %vm3531 = vweird.f32 %v3525
    %vm3532 = vmor %vm3530, %vm3531
    %v3533 = vsel %vm3532, %v3525, %v3529
    %v3534 = vand.u32 2147483647, %v3507
    %vm3535 = vcmp.eq.f32.partialorder %v3534, 8.507059e+37
    %v3536 = vand.u32 %v3507, 2147483648
    %v3537 = vor.u32 1.1754944e-38, %v3536
    %v3538 = vsel %vm3535, %v3537, %v3533
    %v3539 = vmul.f32 1.0, %v3538
    %v3540 = vrcp.pop %v3508
    %v3541 = vmul.f32 %v3508, %v3540
    %v3542 = vsub.f32 1.0, %v3541
    %v3543 = vmul.f32 %v3540, %v3542
    %v3544 = vadd.f32 %v3540, %v3543
    %vm3545 = vweird.f32 %v3508
    %vm3546 = vweird.f32 %v3540
    %vm3547 = vmor %vm3545, %vm3546
    %v3548 = vsel %vm3547, %v3540, %v3544
    %v3549 = vand.u32 2147483647, %v3508
    %vm3550 = vcmp.eq.f32.partialorder %v3549, 8.507059e+37
    %v3551 = vand.u32 %v3508, 2147483648
    %v3552 = vor.u32 1.1754944e-38, %v3551
    %v3553 = vsel %vm3550, %v3552, %v3548
    %v3554 = vmul.f32 1.0, %v3553
    %v3555 = vrcp.pop %v3509
    %v3556 = vmul.f32 %v3509, %v3555
    %v3557 = vsub.f32 1.0, %v3556
    %v3558 = vmul.f32 %v3555, %v3557
    %v3559 = vadd.f32 %v3555, %v3558
    %vm3560 = vweird.f32 %v3509
    %vm3561 = vweird.f32 %v3555
    %vm3562 = vmor %vm3560, %vm3561
    %v3563 = vsel %vm3562, %v3555, %v3559
    %v3564 = vand.u32 2147483647, %v3509
    %vm3565 = vcmp.eq.f32.partialorder %v3564, 8.507059e+37
    %v3566 = vand.u32 %v3509, 2147483648
    %v3567 = vor.u32 1.1754944e-38, %v3566
    %v3568 = vsel %vm3565, %v3567, %v3563
    %v3569 = vmul.f32 1.0, %v3568
    %v3570 = vadd.f32 %v3482, %v3458
    %v3571 = vadd.f32 %v3483, %v3460
    %v3572 = vadd.f32 %v3484, %v3463
    %v3573 = vadd.f32 %v3485, %v3465
    %v3574 = vxor.u32 %v3570, 2147483648
    %v3575 = vxor.u32 %v3571, 2147483648
    %v3576 = vxor.u32 %v3572, 2147483648
    %v3577 = vxor.u32 %v3573, 2147483648
    %v3578 = vmul.f32 %v3574, 1.442695
    %v3579 = vpow.pop %v3578
    %v3580 = vmul.f32 %v3575, 1.442695
    %v3581 = vpow.pop %v3580
    %v3582 = vmul.f32 %v3576, 1.442695
    %v3583 = vpow.pop %v3582
    %v3584 = vmul.f32 %v3577, 1.442695
    %v3585 = vpow.pop %v3584
    %v3586 = vadd.f32 %v3579, 1.0
    %v3587 = vadd.f32 %v3581, 1.0
    %v3588 = vadd.f32 %v3583, 1.0
    %v3589 = vadd.f32 %v3585, 1.0
    %v3590 = vrcp.pop %v3586
    %v3591 = vmul.f32 %v3586, %v3590
    %v3592 = vsub.f32 1.0, %v3591
    %v3593 = vmul.f32 %v3590, %v3592
    %v3594 = vadd.f32 %v3590, %v3593
    %vm3595 = vweird.f32 %v3586
    %vm3596 = vweird.f32 %v3590
    %vm3597 = vmor %vm3595, %vm3596
    %v3598 = vsel %vm3597, %v3590, %v3594
    %v3599 = vand.u32 2147483647, %v3586
    %vm3600 = vcmp.eq.f32.partialorder %v3599, 8.507059e+37
    %v3601 = vand.u32 %v3586, 2147483648
    %v3602 = vor.u32 1.1754944e-38, %v3601
    %v3603 = vsel %vm3600, %v3602, %v3598
    %v3604 = vmul.f32 1.0, %v3603
    %v3605 = vrcp.pop %v3587
    %v3606 = vmul.f32 %v3587, %v3605
    %v3607 = vsub.f32 1.0, %v3606
    %v3608 = vmul.f32 %v3605, %v3607
    %v3609 = vadd.f32 %v3605, %v3608
    %vm3610 = vweird.f32 %v3587
    %vm3611 = vweird.f32 %v3605
    %vm3612 = vmor %vm3610, %vm3611
    %v3613 = vsel %vm3612, %v3605, %v3609
    %v3614 = vand.u32 2147483647, %v3587
    %vm3615 = vcmp.eq.f32.partialorder %v3614, 8.507059e+37
    %v3616 = vand.u32 %v3587, 2147483648
    %v3617 = vor.u32 1.1754944e-38, %v3616
    %v3618 = vsel %vm3615, %v3617, %v3613
    %v3619 = vmul.f32 1.0, %v3618
    %v3620 = vrcp.pop %v3588
    %v3621 = vmul.f32 %v3588, %v3620
    %v3622 = vsub.f32 1.0, %v3621
    %v3623 = vmul.f32 %v3620, %v3622
    %v3624 = vadd.f32 %v3620, %v3623
    %vm3625 = vweird.f32 %v3588
    %vm3626 = vweird.f32 %v3620
    %vm3627 = vmor %vm3625, %vm3626
    %v3628 = vsel %vm3627, %v3620, %v3624
    %v3629 = vand.u32 2147483647, %v3588
    %vm3630 = vcmp.eq.f32.partialorder %v3629, 8.507059e+37
    %v3631 = vand.u32 %v3588, 2147483648
    %v3632 = vor.u32 1.1754944e-38, %v3631
    %v3633 = vsel %vm3630, %v3632, %v3628
    %v3634 = vmul.f32 1.0, %v3633
    %v3635 = vrcp.pop %v3589
    %v3636 = vmul.f32 %v3589, %v3635
    %v3637 = vsub.f32 1.0, %v3636
    %v3638 = vmul.f32 %v3635, %v3637
    %v3639 = vadd.f32 %v3635, %v3638
    %vm3640 = vweird.f32 %v3589
    %vm3641 = vweird.f32 %v3635
    %vm3642 = vmor %vm3640, %vm3641
    %v3643 = vsel %vm3642, %v3635, %v3639
    %v3644 = vand.u32 2147483647, %v3589
    %vm3645 = vcmp.eq.f32.partialorder %v3644, 8.507059e+37
    %v3646 = vand.u32 %v3589, 2147483648
    %v3647 = vor.u32 1.1754944e-38, %v3646
    %v3648 = vsel %vm3645, %v3647, %v3643
    %v3649 = vmul.f32 1.0, %v3648
    %v3650 = vmul.f32 %v3524, %v3468
    %v3651 = vmul.f32 %v3539, %v3470
    %v3652 = vmul.f32 %v3554, %v3473
    %v3653 = vmul.f32 %v3569, %v3475
    %v3654 = vadd.f32 %v3486, %v3650
    %v3655 = vadd.f32 %v3487, %v3651
    %v3656 = vadd.f32 %v3488, %v3652
    %v3657 = vadd.f32 %v3489, %v3653
    %v3658 = vtanh.pop %v3654
    %v3659 = vtanh.pop %v3655
    %v3660 = vtanh.pop %v3656
    %v3661 = vtanh.pop %v3657
    %v3662 = vsub.f32 1.0, %v3604
    %v3663 = vsub.f32 1.0, %v3619
    %v3664 = vsub.f32 1.0, %v3634
    %v3665 = vsub.f32 1.0, %v3649
    %v3666 = vmul.f32 %v3662, %v3658
    %v3667 = vmul.f32 %v3663, %v3659
    %v3668 = vmul.f32 %v3664, %v3660
    %v3669 = vmul.f32 %v3665, %v3661
    %v3670 = vmul.f32 %v3604, %v3173
    %v3671 = vmul.f32 %v3619, %v3174
    %v3672 = vmul.f32 %v3634, %v3175
    %v3673 = vmul.f32 %v3649, %v3176
    %v3674 = vadd.f32 %v3666, %v3670
    %v3675 = vadd.f32 %v3667, %v3671
    %v3676 = vadd.f32 %v3668, %v3672
    %v3677 = vadd.f32 %v3669, %v3673
    %v3678 = vpack.c.bf16 %v3675, %v3674
    %v3679 = vpack.c.bf16 %v3677, %v3676
    %v3680 = vpack.c.bf16 %v3435, %v3434
    %v3681 = vpack.c.bf16 %v3437, %v3436
    %3682 = vmatpush.bf16.msra.mxu0 0
    %3683 = vmatpush.bf16.msra.mxu0 0
    %3684 = vmatpush.bf16.msra.mxu0 0
    %3685 = vmatpush.bf16.msra.mxu0 0
    %3686 = vmatpush.bf16.msra.mxu0 %v3681
    %3687 = vmatpush.bf16.msra.mxu0 %v3680
    %3688 = vmatpush.bf16.msra.mxu0 %v3679
    %3689 = vmatpush.bf16.msra.mxu0 %v3678
    %3690 = vmatmul.bf16.gmra.mxu0 %v641
    %v3691 = vpop.f32.mrf.mxu0
    %v3692 = vadd.f32 %v171, %v3691
    %v3693 = vpop.f32.mrf.mxu0
    %v3694 = vadd.f32 %v176, %v3693
    %3695 = vmatmul.bf16.gmra.mxu0 %v644
    %v3696 = vpop.f32.mrf.mxu0
    %v3697 = vadd.f32 %v181, %v3696
    %v3698 = vpop.f32.mrf.mxu0
    %v3699 = vadd.f32 %v186, %v3698
    %3700 = vmatmul.bf16.gmra.mxu0 %v647
    %v3701 = vpop.f32.mrf.mxu0
    %v3702 = vadd.f32 %v191, %v3701
    %v3703 = vpop.f32.mrf.mxu0
    %v3704 = vadd.f32 %v196, %v3703
    %3705 = vmatmul.bf16.gmra.mxu0 %v650
    %v3706 = vpop.f32.mrf.mxu0
    %v3707 = vadd.f32 %v201, %v3706
    %v3708 = vpop.f32.mrf.mxu0
    %v3709 = vadd.f32 %v206, %v3708
    %3710 = vmatmul.bf16.gmra.mxu0 %v653
    %v3711 = vpop.f32.mrf.mxu0
    %v3712 = vadd.f32 %v211, %v3711
    %v3713 = vpop.f32.mrf.mxu0
    %v3714 = vadd.f32 %v216, %v3713
    %3715 = vmatmul.bf16.gmra.mxu0 %v656
    %v3716 = vpop.f32.mrf.mxu0
    %v3717 = vadd.f32 %v221, %v3716
    %v3718 = vpop.f32.mrf.mxu0
    %v3719 = vadd.f32 %v226, %v3718
    %3720 = vmatmul.bf16.gmra.mxu0 %v659
    %v3721 = vpop.f32.mrf.mxu0
    %v3722 = vadd.f32 %v231, %v3721
    %v3723 = vpop.f32.mrf.mxu0
    %v3724 = vadd.f32 %v236, %v3723
    %3725 = vmatmul.bf16.gmra.mxu0 %v662
    %v3726 = vpop.f32.mrf.mxu0
    %v3727 = vadd.f32 %v241, %v3726
    %v3728 = vpop.f32.mrf.mxu0
    %v3729 = vadd.f32 %v246, %v3728
    %3730 = vmatmul.bf16.gmra.mxu0 %v665
    %v3731 = vpop.f32.mrf.mxu0
    %v3732 = vadd.f32 %v251, %v3731
    %v3733 = vpop.f32.mrf.mxu0
    %v3734 = vadd.f32 %v256, %v3733
    %3735 = vmatmul.bf16.gmra.mxu0 %v668
    %v3736 = vpop.f32.mrf.mxu0
    %v3737 = vadd.f32 %v261, %v3736
    %v3738 = vpop.f32.mrf.mxu0
    %v3739 = vadd.f32 %v266, %v3738
    %3740 = vmatmul.bf16.gmra.mxu0 %v671
    %v3741 = vpop.f32.mrf.mxu0
    %v3742 = vadd.f32 %v271, %v3741
    %v3743 = vpop.f32.mrf.mxu0
    %v3744 = vadd.f32 %v276, %v3743
    %3745 = vmatmul.bf16.gmra.mxu0 %v674
    %v3746 = vpop.f32.mrf.mxu0
    %v3747 = vadd.f32 %v281, %v3746
    %v3748 = vpop.f32.mrf.mxu0
    %v3749 = vadd.f32 %v286, %v3748
    %3750 = vdwg.mxu0
    %v3751 = vadd.f32 %v3692, %v3722
    %v3752 = vadd.f32 %v3694, %v3724
    %v3753 = vadd.f32 %v3697, %v3727
    %v3754 = vadd.f32 %v3699, %v3729
    %v3755 = vxor.u32 %v3751, 2147483648
    %v3756 = vxor.u32 %v3752, 2147483648
    %v3757 = vxor.u32 %v3753, 2147483648
    %v3758 = vxor.u32 %v3754, 2147483648
    %v3759 = vmul.f32 %v3755, 1.442695
    %v3760 = vpow.pop %v3759
    %v3761 = vmul.f32 %v3756, 1.442695
    %v3762 = vpow.pop %v3761
    %v3763 = vmul.f32 %v3757, 1.442695
    %v3764 = vpow.pop %v3763
    %v3765 = vmul.f32 %v3758, 1.442695
    %v3766 = vpow.pop %v3765
    %v3767 = vadd.f32 %v3760, 1.0
    %v3768 = vadd.f32 %v3762, 1.0
    %v3769 = vadd.f32 %v3764, 1.0
    %v3770 = vadd.f32 %v3766, 1.0
    %v3771 = vrcp.pop %v3767
    %v3772 = vmul.f32 %v3767, %v3771
    %v3773 = vsub.f32 1.0, %v3772
    %v3774 = vmul.f32 %v3771, %v3773
    %v3775 = vadd.f32 %v3771, %v3774
    %vm3776 = vweird.f32 %v3767
    %vm3777 = vweird.f32 %v3771
    %vm3778 = vmor %vm3776, %vm3777
    %v3779 = vsel %vm3778, %v3771, %v3775
    %v3780 = vand.u32 2147483647, %v3767
    %vm3781 = vcmp.eq.f32.partialorder %v3780, 8.507059e+37
    %v3782 = vand.u32 %v3767, 2147483648
    %v3783 = vor.u32 1.1754944e-38, %v3782
    %v3784 = vsel %vm3781, %v3783, %v3779
    %v3785 = vmul.f32 1.0, %v3784
    %v3786 = vrcp.pop %v3768
    %v3787 = vmul.f32 %v3768, %v3786
    %v3788 = vsub.f32 1.0, %v3787
    %v3789 = vmul.f32 %v3786, %v3788
    %v3790 = vadd.f32 %v3786, %v3789
    %vm3791 = vweird.f32 %v3768
    %vm3792 = vweird.f32 %v3786
    %vm3793 = vmor %vm3791, %vm3792
    %v3794 = vsel %vm3793, %v3786, %v3790
    %v3795 = vand.u32 2147483647, %v3768
    %vm3796 = vcmp.eq.f32.partialorder %v3795, 8.507059e+37
    %v3797 = vand.u32 %v3768, 2147483648
    %v3798 = vor.u32 1.1754944e-38, %v3797
    %v3799 = vsel %vm3796, %v3798, %v3794
    %v3800 = vmul.f32 1.0, %v3799
    %v3801 = vrcp.pop %v3769
    %v3802 = vmul.f32 %v3769, %v3801
    %v3803 = vsub.f32 1.0, %v3802
    %v3804 = vmul.f32 %v3801, %v3803
    %v3805 = vadd.f32 %v3801, %v3804
    %vm3806 = vweird.f32 %v3769
    %vm3807 = vweird.f32 %v3801
    %vm3808 = vmor %vm3806, %vm3807
    %v3809 = vsel %vm3808, %v3801, %v3805
    %v3810 = vand.u32 2147483647, %v3769
    %vm3811 = vcmp.eq.f32.partialorder %v3810, 8.507059e+37
    %v3812 = vand.u32 %v3769, 2147483648
    %v3813 = vor.u32 1.1754944e-38, %v3812
    %v3814 = vsel %vm3811, %v3813, %v3809
    %v3815 = vmul.f32 1.0, %v3814
    %v3816 = vrcp.pop %v3770
    %v3817 = vmul.f32 %v3770, %v3816
    %v3818 = vsub.f32 1.0, %v3817
    %v3819 = vmul.f32 %v3816, %v3818
    %v3820 = vadd.f32 %v3816, %v3819
    %vm3821 = vweird.f32 %v3770
    %vm3822 = vweird.f32 %v3816
    %vm3823 = vmor %vm3821, %vm3822
    %v3824 = vsel %vm3823, %v3816, %v3820
    %v3825 = vand.u32 2147483647, %v3770
    %vm3826 = vcmp.eq.f32.partialorder %v3825, 8.507059e+37
    %v3827 = vand.u32 %v3770, 2147483648
    %v3828 = vor.u32 1.1754944e-38, %v3827
    %v3829 = vsel %vm3826, %v3828, %v3824
    %v3830 = vmul.f32 1.0, %v3829
    %v3831 = vadd.f32 %v3702, %v3732
    %v3832 = vadd.f32 %v3704, %v3734
    %v3833 = vadd.f32 %v3707, %v3737
    %v3834 = vadd.f32 %v3709, %v3739
    %v3835 = vxor.u32 %v3831, 2147483648
    %v3836 = vxor.u32 %v3832, 2147483648
    %v3837 = vxor.u32 %v3833, 2147483648
    %v3838 = vxor.u32 %v3834, 2147483648
    %v3839 = vmul.f32 %v3835, 1.442695
    %v3840 = vpow.pop %v3839
    %v3841 = vmul.f32 %v3836, 1.442695
    %v3842 = vpow.pop %v3841
    %v3843 = vmul.f32 %v3837, 1.442695
    %v3844 = vpow.pop %v3843
    %v3845 = vmul.f32 %v3838, 1.442695
    %v3846 = vpow.pop %v3845
    %v3847 = vadd.f32 %v3840, 1.0
    %v3848 = vadd.f32 %v3842, 1.0
    %v3849 = vadd.f32 %v3844, 1.0
    %v3850 = vadd.f32 %v3846, 1.0
    %v3851 = vrcp.pop %v3847
    %v3852 = vmul.f32 %v3847, %v3851
    %v3853 = vsub.f32 1.0, %v3852
    %v3854 = vmul.f32 %v3851, %v3853
    %v3855 = vadd.f32 %v3851, %v3854
    %vm3856 = vweird.f32 %v3847
    %vm3857 = vweird.f32 %v3851
    %vm3858 = vmor %vm3856, %vm3857
    %v3859 = vsel %vm3858, %v3851, %v3855
    %v3860 = vand.u32 2147483647, %v3847
    %vm3861 = vcmp.eq.f32.partialorder %v3860, 8.507059e+37
    %v3862 = vand.u32 %v3847, 2147483648
    %v3863 = vor.u32 1.1754944e-38, %v3862
    %v3864 = vsel %vm3861, %v3863, %v3859
    %v3865 = vmul.f32 1.0, %v3864
    %v3866 = vrcp.pop %v3848
    %v3867 = vmul.f32 %v3848, %v3866
    %v3868 = vsub.f32 1.0, %v3867
    %v3869 = vmul.f32 %v3866, %v3868
    %v3870 = vadd.f32 %v3866, %v3869
    %vm3871 = vweird.f32 %v3848
    %vm3872 = vweird.f32 %v3866
    %vm3873 = vmor %vm3871, %vm3872
    %v3874 = vsel %vm3873, %v3866, %v3870
    %v3875 = vand.u32 2147483647, %v3848
    %vm3876 = vcmp.eq.f32.partialorder %v3875, 8.507059e+37
    %v3877 = vand.u32 %v3848, 2147483648
    %v3878 = vor.u32 1.1754944e-38, %v3877
    %v3879 = vsel %vm3876, %v3878, %v3874
    %v3880 = vmul.f32 1.0, %v3879
    %v3881 = vrcp.pop %v3849
    %v3882 = vmul.f32 %v3849, %v3881
    %v3883 = vsub.f32 1.0, %v3882
    %v3884 = vmul.f32 %v3881, %v3883
    %v3885 = vadd.f32 %v3881, %v3884
    %vm3886 = vweird.f32 %v3849
    %vm3887 = vweird.f32 %v3881
    %vm3888 = vmor %vm3886, %vm3887
    %v3889 = vsel %vm3888, %v3881, %v3885
    %v3890 = vand.u32 2147483647, %v3849
    %vm3891 = vcmp.eq.f32.partialorder %v3890, 8.507059e+37
    %v3892 = vand.u32 %v3849, 2147483648
    %v3893 = vor.u32 1.1754944e-38, %v3892
    %v3894 = vsel %vm3891, %v3893, %v3889
    %v3895 = vmul.f32 1.0, %v3894
    %v3896 = vrcp.pop %v3850
    %v3897 = vmul.f32 %v3850, %v3896
    %v3898 = vsub.f32 1.0, %v3897
    %v3899 = vmul.f32 %v3896, %v3898
    %v3900 = vadd.f32 %v3896, %v3899
    %vm3901 = vweird.f32 %v3850
    %vm3902 = vweird.f32 %v3896
    %vm3903 = vmor %vm3901, %vm3902
    %v3904 = vsel %vm3903, %v3896, %v3900
    %v3905 = vand.u32 2147483647, %v3850
    %vm3906 = vcmp.eq.f32.partialorder %v3905, 8.507059e+37
    %v3907 = vand.u32 %v3850, 2147483648
    %v3908 = vor.u32 1.1754944e-38, %v3907
    %v3909 = vsel %vm3906, %v3908, %v3904
    %v3910 = vmul.f32 1.0, %v3909
    %v3911 = vmul.f32 %v3785, %v3742
    %v3912 = vmul.f32 %v3800, %v3744
    %v3913 = vmul.f32 %v3815, %v3747
    %v3914 = vmul.f32 %v3830, %v3749
    %v3915 = vadd.f32 %v3712, %v3911
    %v3916 = vadd.f32 %v3714, %v3912
    %v3917 = vadd.f32 %v3717, %v3913
    %v3918 = vadd.f32 %v3719, %v3914
    %v3919 = vtanh.pop %v3915
    %v3920 = vtanh.pop %v3916
    %v3921 = vtanh.pop %v3917
    %v3922 = vtanh.pop %v3918
    %v3923 = vsub.f32 1.0, %v3865
    %v3924 = vsub.f32 1.0, %v3880
    %v3925 = vsub.f32 1.0, %v3895
    %v3926 = vsub.f32 1.0, %v3910
    %v3927 = vmul.f32 %v3923, %v3919
    %v3928 = vmul.f32 %v3924, %v3920
    %v3929 = vmul.f32 %v3925, %v3921
    %v3930 = vmul.f32 %v3926, %v3922
    %v3931 = vmul.f32 %v3865, %v3434
    %v3932 = vmul.f32 %v3880, %v3435
    %v3933 = vmul.f32 %v3895, %v3436
    %v3934 = vmul.f32 %v3910, %v3437
    %v3935 = vadd.f32 %v3927, %v3931
    %v3936 = vadd.f32 %v3928, %v3932
    %v3937 = vadd.f32 %v3929, %v3933
    %v3938 = vadd.f32 %v3930, %v3934
    %3939 = vmatpush.bf16.msra.mxu0 0
    %3940 = vmatpush.bf16.msra.mxu0 0
    %3941 = vmatpush.bf16.msra.mxu0 0
    %3942 = vmatpush.bf16.msra.mxu0 0
    %3943 = vmatpush.bf16.msra.mxu0 0
    %3944 = vmatpush.bf16.msra.mxu0 0
    %3945 = vmatpush.bf16.msra.mxu0 %v3679
    %3946 = vmatpush.bf16.msra.mxu0 %v3678
    %3947 = vmatmul.bf16.gmra.mxu0 %v320
    %v3948 = vpop.f32.mrf.mxu0
    %v3949 = vadd.f32 %v87, %v3948
    %v3950 = vpop.f32.mrf.mxu0
    %v3951 = vadd.f32 %v92, %v3950
    %3952 = vmatmul.bf16.gmra.mxu0 %v323
    %v3953 = vpop.f32.mrf.mxu0
    %v3954 = vadd.f32 %v97, %v3953
    %v3955 = vpop.f32.mrf.mxu0
    %v3956 = vadd.f32 %v102, %v3955
    %3957 = vmatmul.bf16.gmra.mxu0 %v326
    %v3958 = vpop.f32.mrf.mxu0
    %v3959 = vadd.f32 %v107, %v3958
    %v3960 = vpop.f32.mrf.mxu0
    %v3961 = vadd.f32 %v112, %v3960
    %3962 = vmatmul.bf16.gmra.mxu0 %v329
    %v3963 = vpop.f32.mrf.mxu0
    %v3964 = vadd.f32 %v117, %v3963
    %v3965 = vpop.f32.mrf.mxu0
    %v3966 = vadd.f32 %v122, %v3965
    %3967 = vmatmul.bf16.gmra.mxu0 %v332
    %v3968 = vpop.f32.mrf.mxu0
    %v3969 = vadd.f32 %v127, %v3968
    %v3970 = vpop.f32.mrf.mxu0
    %v3971 = vadd.f32 %v132, %v3970
    %3972 = vmatmul.bf16.gmra.mxu0 %v335
    %v3973 = vpop.f32.mrf.mxu0
    %v3974 = vadd.f32 %v137, %v3973
    %v3975 = vpop.f32.mrf.mxu0
    %v3976 = vadd.f32 %v142, %v3975
    %3977 = vdwg.mxu0
    %s3978 = scalar_lea.vmem %s0, 672
    %v3979 = vld [vmem:[%s3978] sm:$0xff]
    %v3980 = vld [vmem:[%s3978 + $0x8] sm:$0xff]
    %v3981 = vld [vmem:[%s3978 + $0x10] sm:$0xff]
    %v3982 = vld [vmem:[%s3978 + $0x18] sm:$0xff]
    %v3983 = vld [vmem:[%s3978 + $0x20] sm:$0xff]
    %v3984 = vld [vmem:[%s3978 + $0x28] sm:$0xff]
    %v3985 = vld [vmem:[%s3978 + $0x30] sm:$0xff]
    %v3986 = vld [vmem:[%s3978 + $0x38] sm:$0xff]
    %v3987 = vld [vmem:[%s3978 + $0x40] sm:$0xff]
    %v3988 = vld [vmem:[%s3978 + $0x48] sm:$0xff]
    %v3989 = vld [vmem:[%s3978 + $0x50] sm:$0xff]
    %v3990 = vld [vmem:[%s3978 + $0x58] sm:$0xff]
    %v3991 = vadd.f32 %v3979, %v3949
    %v3992 = vadd.f32 %v3980, %v3951
    %v3993 = vadd.f32 %v3981, %v3954
    %v3994 = vadd.f32 %v3982, %v3956
    %v3995 = vxor.u32 %v3991, 2147483648
    %v3996 = vxor.u32 %v3992, 2147483648
    %v3997 = vxor.u32 %v3993, 2147483648
    %v3998 = vxor.u32 %v3994, 2147483648
    %v3999 = vmul.f32 %v3995, 1.442695
    %v4000 = vpow.pop %v3999
    %v4001 = vmul.f32 %v3996, 1.442695
    %v4002 = vpow.pop %v4001
    %v4003 = vmul.f32 %v3997, 1.442695
    %v4004 = vpow.pop %v4003
    %v4005 = vmul.f32 %v3998, 1.442695
    %v4006 = vpow.pop %v4005
    %v4007 = vadd.f32 %v4000, 1.0
    %v4008 = vadd.f32 %v4002, 1.0
    %v4009 = vadd.f32 %v4004, 1.0
    %v4010 = vadd.f32 %v4006, 1.0
    %v4011 = vrcp.pop %v4007
    %v4012 = vmul.f32 %v4007, %v4011
    %v4013 = vsub.f32 1.0, %v4012
    %v4014 = vmul.f32 %v4011, %v4013
    %v4015 = vadd.f32 %v4011, %v4014
    %vm4016 = vweird.f32 %v4007
    %vm4017 = vweird.f32 %v4011
    %vm4018 = vmor %vm4016, %vm4017
    %v4019 = vsel %vm4018, %v4011, %v4015
    %v4020 = vand.u32 2147483647, %v4007
    %vm4021 = vcmp.eq.f32.partialorder %v4020, 8.507059e+37
    %v4022 = vand.u32 %v4007, 2147483648
    %v4023 = vor.u32 1.1754944e-38, %v4022
    %v4024 = vsel %vm4021, %v4023, %v4019
    %v4025 = vmul.f32 1.0, %v4024
    %v4026 = vrcp.pop %v4008
    %v4027 = vmul.f32 %v4008, %v4026
    %v4028 = vsub.f32 1.0, %v4027
    %v4029 = vmul.f32 %v4026, %v4028
    %v4030 = vadd.f32 %v4026, %v4029
    %vm4031 = vweird.f32 %v4008
    %vm4032 = vweird.f32 %v4026
    %vm4033 = vmor %vm4031, %vm4032
    %v4034 = vsel %vm4033, %v4026, %v4030
    %v4035 = vand.u32 2147483647, %v4008
    %vm4036 = vcmp.eq.f32.partialorder %v4035, 8.507059e+37
    %v4037 = vand.u32 %v4008, 2147483648
    %v4038 = vor.u32 1.1754944e-38, %v4037
    %v4039 = vsel %vm4036, %v4038, %v4034
    %v4040 = vmul.f32 1.0, %v4039
    %v4041 = vrcp.pop %v4009
    %v4042 = vmul.f32 %v4009, %v4041
    %v4043 = vsub.f32 1.0, %v4042
    %v4044 = vmul.f32 %v4041, %v4043
    %v4045 = vadd.f32 %v4041, %v4044
    %vm4046 = vweird.f32 %v4009
    %vm4047 = vweird.f32 %v4041
    %vm4048 = vmor %vm4046, %vm4047
    %v4049 = vsel %vm4048, %v4041, %v4045
    %v4050 = vand.u32 2147483647, %v4009
    %vm4051 = vcmp.eq.f32.partialorder %v4050, 8.507059e+37
    %v4052 = vand.u32 %v4009, 2147483648
    %v4053 = vor.u32 1.1754944e-38, %v4052
    %v4054 = vsel %vm4051, %v4053, %v4049
    %v4055 = vmul.f32 1.0, %v4054
    %v4056 = vrcp.pop %v4010
    %v4057 = vmul.f32 %v4010, %v4056
    %v4058 = vsub.f32 1.0, %v4057
    %v4059 = vmul.f32 %v4056, %v4058
    %v4060 = vadd.f32 %v4056, %v4059
    %vm4061 = vweird.f32 %v4010
    %vm4062 = vweird.f32 %v4056
    %vm4063 = vmor %vm4061, %vm4062
    %v4064 = vsel %vm4063, %v4056, %v4060
    %v4065 = vand.u32 2147483647, %v4010
    %vm4066 = vcmp.eq.f32.partialorder %v4065, 8.507059e+37
    %v4067 = vand.u32 %v4010, 2147483648
    %v4068 = vor.u32 1.1754944e-38, %v4067
    %v4069 = vsel %vm4066, %v4068, %v4064
    %v4070 = vmul.f32 1.0, %v4069
    %v4071 = vadd.f32 %v3983, %v3959
    %v4072 = vadd.f32 %v3984, %v3961
    %v4073 = vadd.f32 %v3985, %v3964
    %v4074 = vadd.f32 %v3986, %v3966
    %v4075 = vxor.u32 %v4071, 2147483648
    %v4076 = vxor.u32 %v4072, 2147483648
    %v4077 = vxor.u32 %v4073, 2147483648
    %v4078 = vxor.u32 %v4074, 2147483648
    %v4079 = vmul.f32 %v4075, 1.442695
    %v4080 = vpow.pop %v4079
    %v4081 = vmul.f32 %v4076, 1.442695
    %v4082 = vpow.pop %v4081
    %v4083 = vmul.f32 %v4077, 1.442695
    %v4084 = vpow.pop %v4083
    %v4085 = vmul.f32 %v4078, 1.442695
    %v4086 = vpow.pop %v4085
    %v4087 = vadd.f32 %v4080, 1.0
    %v4088 = vadd.f32 %v4082, 1.0
    %v4089 = vadd.f32 %v4084, 1.0
    %v4090 = vadd.f32 %v4086, 1.0
    %v4091 = vrcp.pop %v4087
    %v4092 = vmul.f32 %v4087, %v4091
    %v4093 = vsub.f32 1.0, %v4092
    %v4094 = vmul.f32 %v4091, %v4093
    %v4095 = vadd.f32 %v4091, %v4094
    %vm4096 = vweird.f32 %v4087
    %vm4097 = vweird.f32 %v4091
    %vm4098 = vmor %vm4096, %vm4097
    %v4099 = vsel %vm4098, %v4091, %v4095
    %v4100 = vand.u32 2147483647, %v4087
    %vm4101 = vcmp.eq.f32.partialorder %v4100, 8.507059e+37
    %v4102 = vand.u32 %v4087, 2147483648
    %v4103 = vor.u32 1.1754944e-38, %v4102
    %v4104 = vsel %vm4101, %v4103, %v4099
    %v4105 = vmul.f32 1.0, %v4104
    %v4106 = vrcp.pop %v4088
    %v4107 = vmul.f32 %v4088, %v4106
    %v4108 = vsub.f32 1.0, %v4107
    %v4109 = vmul.f32 %v4106, %v4108
    %v4110 = vadd.f32 %v4106, %v4109
    %vm4111 = vweird.f32 %v4088
    %vm4112 = vweird.f32 %v4106
    %vm4113 = vmor %vm4111, %vm4112
    %v4114 = vsel %vm4113, %v4106, %v4110
    %v4115 = vand.u32 2147483647, %v4088
    %vm4116 = vcmp.eq.f32.partialorder %v4115, 8.507059e+37
    %v4117 = vand.u32 %v4088, 2147483648
    %v4118 = vor.u32 1.1754944e-38, %v4117
    %v4119 = vsel %vm4116, %v4118, %v4114
    %v4120 = vmul.f32 1.0, %v4119
    %v4121 = vrcp.pop %v4089
    %v4122 = vmul.f32 %v4089, %v4121
    %v4123 = vsub.f32 1.0, %v4122
    %v4124 = vmul.f32 %v4121, %v4123
    %v4125 = vadd.f32 %v4121, %v4124
    %vm4126 = vweird.f32 %v4089
    %vm4127 = vweird.f32 %v4121
    %vm4128 = vmor %vm4126, %vm4127
    %v4129 = vsel %vm4128, %v4121, %v4125
    %v4130 = vand.u32 2147483647, %v4089
    %vm4131 = vcmp.eq.f32.partialorder %v4130, 8.507059e+37
    %v4132 = vand.u32 %v4089, 2147483648
    %v4133 = vor.u32 1.1754944e-38, %v4132
    %v4134 = vsel %vm4131, %v4133, %v4129
    %v4135 = vmul.f32 1.0, %v4134
    %v4136 = vrcp.pop %v4090
    %v4137 = vmul.f32 %v4090, %v4136
    %v4138 = vsub.f32 1.0, %v4137
    %v4139 = vmul.f32 %v4136, %v4138
    %v4140 = vadd.f32 %v4136, %v4139
    %vm4141 = vweird.f32 %v4090
    %vm4142 = vweird.f32 %v4136
    %vm4143 = vmor %vm4141, %vm4142
    %v4144 = vsel %vm4143, %v4136, %v4140
    %v4145 = vand.u32 2147483647, %v4090
    %vm4146 = vcmp.eq.f32.partialorder %v4145, 8.507059e+37
    %v4147 = vand.u32 %v4090, 2147483648
    %v4148 = vor.u32 1.1754944e-38, %v4147
    %v4149 = vsel %vm4146, %v4148, %v4144
    %v4150 = vmul.f32 1.0, %v4149
    %v4151 = vmul.f32 %v4025, %v3969
    %v4152 = vmul.f32 %v4040, %v3971
    %v4153 = vmul.f32 %v4055, %v3974
    %v4154 = vmul.f32 %v4070, %v3976
    %v4155 = vadd.f32 %v3987, %v4151
    %v4156 = vadd.f32 %v3988, %v4152
    %v4157 = vadd.f32 %v3989, %v4153
    %v4158 = vadd.f32 %v3990, %v4154
    %v4159 = vtanh.pop %v4155
    %v4160 = vtanh.pop %v4156
    %v4161 = vtanh.pop %v4157
    %v4162 = vtanh.pop %v4158
    %v4163 = vsub.f32 1.0, %v4105
    %v4164 = vsub.f32 1.0, %v4120
    %v4165 = vsub.f32 1.0, %v4135
    %v4166 = vsub.f32 1.0, %v4150
    %v4167 = vmul.f32 %v4163, %v4159
    %v4168 = vmul.f32 %v4164, %v4160
    %v4169 = vmul.f32 %v4165, %v4161
    %v4170 = vmul.f32 %v4166, %v4162
    %v4171 = vmul.f32 %v4105, %v3674
    %v4172 = vmul.f32 %v4120, %v3675
    %v4173 = vmul.f32 %v4135, %v3676
    %v4174 = vmul.f32 %v4150, %v3677
    %v4175 = vadd.f32 %v4167, %v4171
    %v4176 = vadd.f32 %v4168, %v4172
    %v4177 = vadd.f32 %v4169, %v4173
    %v4178 = vadd.f32 %v4170, %v4174
    %v4179 = vpack.c.bf16 %v4176, %v4175
    %v4180 = vpack.c.bf16 %v4178, %v4177
    %v4181 = vpack.c.bf16 %v3936, %v3935
    %v4182 = vpack.c.bf16 %v3938, %v3937
    %4183 = vmatpush.bf16.msra.mxu0 0
    %4184 = vmatpush.bf16.msra.mxu0 0
    %4185 = vmatpush.bf16.msra.mxu0 0
    %4186 = vmatpush.bf16.msra.mxu0 0
    %4187 = vmatpush.bf16.msra.mxu0 %v4182
    %4188 = vmatpush.bf16.msra.mxu0 %v4181
    %4189 = vmatpush.bf16.msra.mxu0 %v4180
    %4190 = vmatpush.bf16.msra.mxu0 %v4179
    %4191 = vmatmul.bf16.gmra.mxu0 %v641
    %v4192 = vpop.f32.mrf.mxu0
    %v4193 = vadd.f32 %v171, %v4192
    %v4194 = vpop.f32.mrf.mxu0
    %v4195 = vadd.f32 %v176, %v4194
    %4196 = vmatmul.bf16.gmra.mxu0 %v644
    %v4197 = vpop.f32.mrf.mxu0
    %v4198 = vadd.f32 %v181, %v4197
    %v4199 = vpop.f32.mrf.mxu0
    %v4200 = vadd.f32 %v186, %v4199
    %4201 = vmatmul.bf16.gmra.mxu0 %v647
    %v4202 = vpop.f32.mrf.mxu0
    %v4203 = vadd.f32 %v191, %v4202
    %v4204 = vpop.f32.mrf.mxu0
    %v4205 = vadd.f32 %v196, %v4204
    %4206 = vmatmul.bf16.gmra.mxu0 %v650
    %v4207 = vpop.f32.mrf.mxu0
    %v4208 = vadd.f32 %v201, %v4207
    %v4209 = vpop.f32.mrf.mxu0
    %v4210 = vadd.f32 %v206, %v4209
    %4211 = vmatmul.bf16.gmra.mxu0 %v653
    %v4212 = vpop.f32.mrf.mxu0
    %v4213 = vadd.f32 %v211, %v4212
    %v4214 = vpop.f32.mrf.mxu0
    %v4215 = vadd.f32 %v216, %v4214
    %4216 = vmatmul.bf16.gmra.mxu0 %v656
    %v4217 = vpop.f32.mrf.mxu0
    %v4218 = vadd.f32 %v221, %v4217
    %v4219 = vpop.f32.mrf.mxu0
    %v4220 = vadd.f32 %v226, %v4219
    %4221 = vmatmul.bf16.gmra.mxu0 %v659
    %v4222 = vpop.f32.mrf.mxu0
    %v4223 = vadd.f32 %v231, %v4222
    %v4224 = vpop.f32.mrf.mxu0
    %v4225 = vadd.f32 %v236, %v4224
    %4226 = vmatmul.bf16.gmra.mxu0 %v662
    %v4227 = vpop.f32.mrf.mxu0
    %v4228 = vadd.f32 %v241, %v4227
    %v4229 = vpop.f32.mrf.mxu0
    %v4230 = vadd.f32 %v246, %v4229
    %4231 = vmatmul.bf16.gmra.mxu0 %v665
    %v4232 = vpop.f32.mrf.mxu0
    %v4233 = vadd.f32 %v251, %v4232
    %v4234 = vpop.f32.mrf.mxu0
    %v4235 = vadd.f32 %v256, %v4234
    %4236 = vmatmul.bf16.gmra.mxu0 %v668
    %v4237 = vpop.f32.mrf.mxu0
    %v4238 = vadd.f32 %v261, %v4237
    %v4239 = vpop.f32.mrf.mxu0
    %v4240 = vadd.f32 %v266, %v4239
    %4241 = vmatmul.bf16.gmra.mxu0 %v671
    %v4242 = vpop.f32.mrf.mxu0
    %v4243 = vadd.f32 %v271, %v4242
    %v4244 = vpop.f32.mrf.mxu0
    %v4245 = vadd.f32 %v276, %v4244
    %4246 = vmatmul.bf16.gmra.mxu0 %v674
    %v4247 = vpop.f32.mrf.mxu0
    %v4248 = vadd.f32 %v281, %v4247
    %v4249 = vpop.f32.mrf.mxu0
    %v4250 = vadd.f32 %v286, %v4249
    %4251 = vdwg.mxu0
    %v4252 = vadd.f32 %v4193, %v4223
    %v4253 = vadd.f32 %v4195, %v4225
    %v4254 = vadd.f32 %v4198, %v4228
    %v4255 = vadd.f32 %v4200, %v4230
    %v4256 = vxor.u32 %v4252, 2147483648
    %v4257 = vxor.u32 %v4253, 2147483648
    %v4258 = vxor.u32 %v4254, 2147483648
    %v4259 = vxor.u32 %v4255, 2147483648
    %v4260 = vmul.f32 %v4256, 1.442695
    %v4261 = vpow.pop %v4260
    %v4262 = vmul.f32 %v4257, 1.442695
    %v4263 = vpow.pop %v4262
    %v4264 = vmul.f32 %v4258, 1.442695
    %v4265 = vpow.pop %v4264
    %v4266 = vmul.f32 %v4259, 1.442695
    %v4267 = vpow.pop %v4266
    %v4268 = vadd.f32 %v4261, 1.0
    %v4269 = vadd.f32 %v4263, 1.0
    %v4270 = vadd.f32 %v4265, 1.0
    %v4271 = vadd.f32 %v4267, 1.0
    %v4272 = vrcp.pop %v4268
    %v4273 = vmul.f32 %v4268, %v4272
    %v4274 = vsub.f32 1.0, %v4273
    %v4275 = vmul.f32 %v4272, %v4274
    %v4276 = vadd.f32 %v4272, %v4275
    %vm4277 = vweird.f32 %v4268
    %vm4278 = vweird.f32 %v4272
    %vm4279 = vmor %vm4277, %vm4278
    %v4280 = vsel %vm4279, %v4272, %v4276
    %v4281 = vand.u32 2147483647, %v4268
    %vm4282 = vcmp.eq.f32.partialorder %v4281, 8.507059e+37
    %v4283 = vand.u32 %v4268, 2147483648
    %v4284 = vor.u32 1.1754944e-38, %v4283
    %v4285 = vsel %vm4282, %v4284, %v4280
    %v4286 = vmul.f32 1.0, %v4285
    %v4287 = vrcp.pop %v4269
    %v4288 = vmul.f32 %v4269, %v4287
    %v4289 = vsub.f32 1.0, %v4288
    %v4290 = vmul.f32 %v4287, %v4289
    %v4291 = vadd.f32 %v4287, %v4290
    %vm4292 = vweird.f32 %v4269
    %vm4293 = vweird.f32 %v4287
    %vm4294 = vmor %vm4292, %vm4293
    %v4295 = vsel %vm4294, %v4287, %v4291
    %v4296 = vand.u32 2147483647, %v4269
    %vm4297 = vcmp.eq.f32.partialorder %v4296, 8.507059e+37
    %v4298 = vand.u32 %v4269, 2147483648
    %v4299 = vor.u32 1.1754944e-38, %v4298
    %v4300 = vsel %vm4297, %v4299, %v4295
    %v4301 = vmul.f32 1.0, %v4300
    %v4302 = vrcp.pop %v4270
    %v4303 = vmul.f32 %v4270, %v4302
    %v4304 = vsub.f32 1.0, %v4303
    %v4305 = vmul.f32 %v4302, %v4304
    %v4306 = vadd.f32 %v4302, %v4305
    %vm4307 = vweird.f32 %v4270
    %vm4308 = vweird.f32 %v4302
    %vm4309 = vmor %vm4307, %vm4308
    %v4310 = vsel %vm4309, %v4302, %v4306
    %v4311 = vand.u32 2147483647, %v4270
    %vm4312 = vcmp.eq.f32.partialorder %v4311, 8.507059e+37
    %v4313 = vand.u32 %v4270, 2147483648
    %v4314 = vor.u32 1.1754944e-38, %v4313
    %v4315 = vsel %vm4312, %v4314, %v4310
    %v4316 = vmul.f32 1.0, %v4315
    %v4317 = vrcp.pop %v4271
    %v4318 = vmul.f32 %v4271, %v4317
    %v4319 = vsub.f32 1.0, %v4318
    %v4320 = vmul.f32 %v4317, %v4319
    %v4321 = vadd.f32 %v4317, %v4320
    %vm4322 = vweird.f32 %v4271
    %vm4323 = vweird.f32 %v4317
    %vm4324 = vmor %vm4322, %vm4323
    %v4325 = vsel %vm4324, %v4317, %v4321
    %v4326 = vand.u32 2147483647, %v4271
    %vm4327 = vcmp.eq.f32.partialorder %v4326, 8.507059e+37
    %v4328 = vand.u32 %v4271, 2147483648
    %v4329 = vor.u32 1.1754944e-38, %v4328
    %v4330 = vsel %vm4327, %v4329, %v4325
    %v4331 = vmul.f32 1.0, %v4330
    %v4332 = vadd.f32 %v4203, %v4233
    %v4333 = vadd.f32 %v4205, %v4235
    %v4334 = vadd.f32 %v4208, %v4238
    %v4335 = vadd.f32 %v4210, %v4240
    %v4336 = vxor.u32 %v4332, 2147483648
    %v4337 = vxor.u32 %v4333, 2147483648
    %v4338 = vxor.u32 %v4334, 2147483648
    %v4339 = vxor.u32 %v4335, 2147483648
    %v4340 = vmul.f32 %v4336, 1.442695
    %v4341 = vpow.pop %v4340
    %v4342 = vmul.f32 %v4337, 1.442695
    %v4343 = vpow.pop %v4342
    %v4344 = vmul.f32 %v4338, 1.442695
    %v4345 = vpow.pop %v4344
    %v4346 = vmul.f32 %v4339, 1.442695
    %v4347 = vpow.pop %v4346
    %v4348 = vadd.f32 %v4341, 1.0
    %v4349 = vadd.f32 %v4343, 1.0
    %v4350 = vadd.f32 %v4345, 1.0
    %v4351 = vadd.f32 %v4347, 1.0
    %v4352 = vrcp.pop %v4348
    %v4353 = vmul.f32 %v4348, %v4352
    %v4354 = vsub.f32 1.0, %v4353
    %v4355 = vmul.f32 %v4352, %v4354
    %v4356 = vadd.f32 %v4352, %v4355
    %vm4357 = vweird.f32 %v4348
    %vm4358 = vweird.f32 %v4352
    %vm4359 = vmor %vm4357, %vm4358
    %v4360 = vsel %vm4359, %v4352, %v4356
    %v4361 = vand.u32 2147483647, %v4348
    %vm4362 = vcmp.eq.f32.partialorder %v4361, 8.507059e+37
    %v4363 = vand.u32 %v4348, 2147483648
    %v4364 = vor.u32 1.1754944e-38, %v4363
    %v4365 = vsel %vm4362, %v4364, %v4360
    %v4366 = vmul.f32 1.0, %v4365
    %v4367 = vrcp.pop %v4349
    %v4368 = vmul.f32 %v4349, %v4367
    %v4369 = vsub.f32 1.0, %v4368
    %v4370 = vmul.f32 %v4367, %v4369
    %v4371 = vadd.f32 %v4367, %v4370
    %vm4372 = vweird.f32 %v4349
    %vm4373 = vweird.f32 %v4367
    %vm4374 = vmor %vm4372, %vm4373
    %v4375 = vsel %vm4374, %v4367, %v4371
    %v4376 = vand.u32 2147483647, %v4349
    %vm4377 = vcmp.eq.f32.partialorder %v4376, 8.507059e+37
    %v4378 = vand.u32 %v4349, 2147483648
    %v4379 = vor.u32 1.1754944e-38, %v4378
    %v4380 = vsel %vm4377, %v4379, %v4375
    %v4381 = vmul.f32 1.0, %v4380
    %v4382 = vrcp.pop %v4350
    %v4383 = vmul.f32 %v4350, %v4382
    %v4384 = vsub.f32 1.0, %v4383
    %v4385 = vmul.f32 %v4382, %v4384
    %v4386 = vadd.f32 %v4382, %v4385
    %vm4387 = vweird.f32 %v4350
    %vm4388 = vweird.f32 %v4382
    %vm4389 = vmor %vm4387, %vm4388
    %v4390 = vsel %vm4389, %v4382, %v4386
    %v4391 = vand.u32 2147483647, %v4350
    %vm4392 = vcmp.eq.f32.partialorder %v4391, 8.507059e+37
    %v4393 = vand.u32 %v4350, 2147483648
    %v4394 = vor.u32 1.1754944e-38, %v4393
    %v4395 = vsel %vm4392, %v4394, %v4390
    %v4396 = vmul.f32 1.0, %v4395
    %v4397 = vrcp.pop %v4351
    %v4398 = vmul.f32 %v4351, %v4397
    %v4399 = vsub.f32 1.0, %v4398
    %v4400 = vmul.f32 %v4397, %v4399
    %v4401 = vadd.f32 %v4397, %v4400
    %vm4402 = vweird.f32 %v4351
    %vm4403 = vweird.f32 %v4397
    %vm4404 = vmor %vm4402, %vm4403
    %v4405 = vsel %vm4404, %v4397, %v4401
    %v4406 = vand.u32 2147483647, %v4351
    %vm4407 = vcmp.eq.f32.partialorder %v4406, 8.507059e+37
    %v4408 = vand.u32 %v4351, 2147483648
    %v4409 = vor.u32 1.1754944e-38, %v4408
    %v4410 = vsel %vm4407, %v4409, %v4405
    %v4411 = vmul.f32 1.0, %v4410
    %v4412 = vmul.f32 %v4286, %v4243
    %v4413 = vmul.f32 %v4301, %v4245
    %v4414 = vmul.f32 %v4316, %v4248
    %v4415 = vmul.f32 %v4331, %v4250
    %v4416 = vadd.f32 %v4213, %v4412
    %v4417 = vadd.f32 %v4215, %v4413
    %v4418 = vadd.f32 %v4218, %v4414
    %v4419 = vadd.f32 %v4220, %v4415
    %v4420 = vtanh.pop %v4416
    %v4421 = vtanh.pop %v4417
    %v4422 = vtanh.pop %v4418
    %v4423 = vtanh.pop %v4419
    %v4424 = vsub.f32 1.0, %v4366
    %v4425 = vsub.f32 1.0, %v4381
    %v4426 = vsub.f32 1.0, %v4396
    %v4427 = vsub.f32 1.0, %v4411
    %v4428 = vmul.f32 %v4424, %v4420
    %v4429 = vmul.f32 %v4425, %v4421
    %v4430 = vmul.f32 %v4426, %v4422
    %v4431 = vmul.f32 %v4427, %v4423
    %v4432 = vmul.f32 %v4366, %v3935
    %v4433 = vmul.f32 %v4381, %v3936
    %v4434 = vmul.f32 %v4396, %v3937
    %v4435 = vmul.f32 %v4411, %v3938
    %v4436 = vadd.f32 %v4428, %v4432
    %v4437 = vadd.f32 %v4429, %v4433
    %v4438 = vadd.f32 %v4430, %v4434
    %v4439 = vadd.f32 %v4431, %v4435
    %v4440 = vld [vmem:[%s5] sm:$0xf]
    %v4441 = vld [vmem:[%s5 + $0x4] sm:$0xf]
    %v4442 = vpack.c.bf16 %v4437, %v4436
    %v4443 = vpack.c.bf16 %v4439, %v4438
    %v4444 = vld [vmem:[%s6] sm:$0xff]
    %v4445 = vld [vmem:[%s6 + $0x8] sm:$0xff]
    %4447 = vset.pattern.permute.xlu0 0
    %4448 = vperm.xlu0 %4447, %v4444
    %v4449 = vpop.permute.xlu0 %4448
    %4452 = vset.pattern.permute.xlu0 0
    %4453 = vperm.xlu0 %4452, %v4445
    %v4454 = vpop.permute.xlu0 %4453
    %v4458 = vunpack.c.l.b16 %v4440
    %v4459 = vunpack.c.l.b16 %v4441
    %v4460 = vpack.c.b16 %v4459, %v4458
    %v4462 = vsel %vm318, %v4460, 0
    %4464 = vmatpush.bf16.msra.mxu0 0
    %4465 = vmatpush.bf16.msra.mxu0 0
    %4466 = vmatpush.bf16.msra.mxu0 0
    %4467 = vmatpush.bf16.msra.mxu0 0
    %4468 = vmatpush.bf16.msra.mxu0 0
    %4469 = vmatpush.bf16.msra.mxu0 0
    %4470 = vmatpush.bf16.msra.mxu0 %v4443
    %4471 = vmatpush.bf16.msra.mxu0 %v4442
    %4472 = vmatmul.bf16.gmra.mxu0 %v4462
    %v4473 = vpop.f32.mrf.mxu0
    %v4474 = vadd.f32 %v4449, %v4473
    %v4475 = vpop.f32.mrf.mxu0
    %v4476 = vadd.f32 %v4454, %v4475
    %4477 = vdwg.mxu0
    %v4478 = vmax.f32 %v4474, 0.0
    %v4479 = vmax.f32 %v4476, 0.0
    %v4480 = vld [vmem:[%s7] sm:$0x1]
    %v4481 = vpack.c.bf16 %v4479, %v4478
    %v4482 = vld [vmem:[#allocation2] sm:$0x1]
    %4484 = vset.pattern.permute.xlu0 0
    %4485 = vperm.xlu0 %4484, %v4482
    %v4486 = vpop.permute.xlu0 %4485
    %v4488 = vperm.slane %v4486, 0
    %vm4489 = vcmask 130048
    %v4491 = vsel %vm4489, %v4480, 0
    %4493 = vmatpush.bf16.msra.mxu0 0
    %4494 = vmatpush.bf16.msra.mxu0 0
    %4495 = vmatpush.bf16.msra.mxu0 0
    %4496 = vmatpush.bf16.msra.mxu0 0
    %4497 = vmatpush.bf16.msra.mxu0 0
    %4498 = vmatpush.bf16.msra.mxu0 0
    %4499 = vmatpush.bf16.msra.mxu0 0
    %4500 = vmatpush.bf16.msra.mxu0 %v4481
    %4501 = vmatmul.bf16.gmra.mxu0 %v4491
    %v4502 = vpop.f32.mrf.mxu0
    %v4503 = vadd.f32 %v4488, %v4502
    %v4504 = vpop.f32.mrf.mxu0
    %4505 = vdwg.mxu0
    %vm4506 = vcmask 8192
    %4507 = vst.msk [vmem:[#allocation3] sm:$0x1] %vm4506, %v4503
    // Predicated region
    $region38: #{tpu_custom_call.1} parent=1 // pred_check
      _
    $region39: #{tpu_custom_call.1} parent=1 // pred_check_branch
      %4509 = sbr.rel (0) target = $region41
    $region40: #{tpu_custom_call.1} parent=1 // pred_region
      %4511 = vsyncadd [#allocation4], 0
      %s4513 = sshll.u32 [#allocation3], 4
      %s4514 = int_to_ptr.vmem [resolvable:$true] %s4513
      %s4515 = sshll.u32 %s9, 4
      %s4516 = int_to_ptr.hbm [resolvable:$true] %s4515
      %4518 = dma.vmem_to_hbm [thread:$0]  %s4514, 16, %s4516, [#allocation4]
    $region41: #{tpu_custom_call.1} parent=1 // pred_fallthru
      _
    // Predicated region
    $region42: #{tpu_custom_call.1} parent=1 // pred_check
      _
    $region43: #{tpu_custom_call.1} parent=1 // pred_check_branch
      %4520 = sbr.rel (0) target = $region45
    $region44: #{tpu_custom_call.1} parent=1 // pred_region
      %4522 = dma.done [#allocation4], 16
    $region45: #{tpu_custom_call.1} parent=1 // pred_fallthru
      _
    %4523 = vsyncpa [#allocation4], 1

</llo_original>
